<compile_context>
chip_gen: v7x
topology: tpu7x:2x2x1
jax: 0.10.0
libtpu: 0.0.40
codegen_flags: <defaults>
</compile_context>

<pallas_src>
import functools

import jax
import jax.numpy as jnp
from jax.experimental import pallas as pl
from jax.experimental.pallas import tpu as pltpu

EPS = 1e-5                      # nn.BatchNorm2d default


# ----------------------------------------------------------------------------
# small helpers
# ----------------------------------------------------------------------------
def _round_up(n, m=128):
    return ((n + m - 1) // m) * m


def _row_tile(m, target=1024, align=16):
    """Largest divisor of m that is <= target, preferring multiples of `align`
    (bf16 sublane packing), then 8, then any divisor."""
    for a in (align, 8, 1):
        t = min(m, target)
        t -= t % a
        while t >= a:
            if m % t == 0:
                return t
            t -= a
    return m


def _vmem_limit_bytes():
    """Generation-aware scoped-VMEM budget (~half of physical VMEM)."""
    try:
        cap = int(pltpu.get_tpu_info().vmem_capacity_bytes)
        return int(min(max(cap // 2, 32 << 20), 96 << 20))
    except Exception:
        return 32 << 20


def _const_spec(shape):
    nd = len(shape)
    return pl.BlockSpec(shape, lambda *_: (0,) * nd)


def _part_spec(c):
    """Per-grid-step partial-stats block: (1, 1, C) over a (grid, 1, C) array."""
    return pl.BlockSpec((1, 1, c), lambda i: (i, 0, 0))


def _bn_affine(sum_, sq_, g, b, m):
    """Batch-stats BN as per-channel scale/shift (tiny XLA op on (1,C) arrays)."""
    mean = sum_ / m
    var = jnp.maximum(sq_ / m - mean * mean, 0.0)     # biased variance
    scale = jax.lax.rsqrt(var + EPS) * g
    shift = b - mean * scale
    return scale, shift


def make_divisible(v, divisor=8, min_value=None):
    if min_value is None:
        min_value = divisor
    new_v = max(min_value, int(v + divisor / 2) // divisor * divisor)
    if new_v < 0.9 * v:
        new_v += divisor
    return new_v


# ----------------------------------------------------------------------------
# Pallas kernels
# ----------------------------------------------------------------------------
def _conv1_stats_kernel(x_ref, w1_ref, y1_ref, s_ref, sq_ref):
    """Pass 1: y1 = x @ w1 (1x1 conv), emit y1 (bf16) + per-tile BN1 partials."""
    y1 = jnp.dot(x_ref[...], w1_ref[...], preferred_element_type=jnp.float32)
    y1_ref[...] = y1.astype(y1_ref.dtype)
    s_ref[0] = jnp.sum(y1, axis=0, keepdims=True)
    sq_ref[0] = jnp.sum(y1 * y1, axis=0, keepdims=True)


def _conv2_kernel(y1_ref, sc1_ref, sh1_ref, w2p_ref, w2l_ref,
                  y2_ref, s2_ref, s2q_ref, pp_ref, *, stride, hdim, wdim):
    """Pass 2 (per image): BN1+ReLU on y1, 3x3 conv2 (stride 1 or 2) as K-paired
    accumulated matmuls over a zero-halo VMEM scratch, emit y2 + BN2 partials."""
    cmid = w2l_ref.shape[0]
    f32 = jnp.float32

    # BN1 (precomputed affine) + ReLU, in f32
    h1n = jnp.maximum(y1_ref[0].astype(f32) * sc1_ref[...] + sh1_ref[...], 0.0)

    if stride == 1:
        ho, wo = hdim, wdim
        w16 = wdim + 16
        # zero only the halo strips the taps read (megacore-safe, no reliance
        # on scratch state from other grid steps); interior fully overwritten
        pp_ref[0:1, :, :] = jnp.zeros((1, w16, cmid), f32)
        pp_ref[hdim + 1:hdim + 2, :, :] = jnp.zeros((1, w16, cmid), f32)
        pp_ref[:, 0:8, :] = jnp.zeros((hdim + 2, 8, cmid), f32)
        pp_ref[:, 8 + wdim:, :] = jnp.zeros((hdim + 2, 8, cmid), f32)
        pp_ref[1:hdim + 1, 8:8 + wdim, :] = h1n.reshape(hdim, wdim, cmid)

        def patch(i, j):
            return pp_ref[i:i + ho, 7 + j:7 + j + wo, :]
    else:
        ho, wo = hdim // 2, wdim // 2
        w16 = wo + 16
        pp_ref[:, 0:1, :, :] = jnp.zeros((4, 1, w16, cmid), f32)
        pp_ref[:, ho:ho + 1, :, :] = jnp.zeros((4, 1, w16, cmid), f32)
        pp_ref[:, :, 0:8, :] = jnp.zeros((4, ho + 1, 8, cmid), f32)
        pp_ref[:, :, 8 + wo:, :] = jnp.zeros((4, ho + 1, 8, cmid), f32)
        h1n4 = h1n.reshape(4, ho, wo, cmid)            # polyphase components
        for dpi in range(2):
            rs = slice(1, ho + 1) if dpi == 0 else slice(0, ho)
            for dpj in range(2):
                src = 2 * (1 - dpi) + (1 - dpj)
                pp_ref[2 * dpi + dpj, rs, 8:8 + wo, :] = h1n4[src]

        def patch(i, j):
            cb = 7 if (j % 2 == 0) else 8
            return pp_ref[2 * (i % 2) + (j % 2),
                          (i // 2):(i // 2) + ho,
                          cb + (j // 2):cb + (j // 2) + wo, :]

    def tap_lhs(t):
        i, j = divmod(t, 3)
        return patch(i, j).reshape(ho * wo, cmid).astype(jnp.bfloat16)

    # 3x3 conv = 4 K=2*cmid matmuls + 1 K=cmid matmul (taps paired along the
    # contraction dim for the 256-deep v6e/v7x MXU); accumulator is a value
    # initialized from the first pair (no zero-store / first RMW).
    y2 = jnp.dot(jnp.concatenate([tap_lhs(0), tap_lhs(1)], axis=1),
                 w2p_ref[0], preferred_element_type=f32)
    for p in range(1, 4):
        y2 = y2 + jnp.dot(
            jnp.concatenate([tap_lhs(2 * p), tap_lhs(2 * p + 1)], axis=1),
            w2p_ref[p], preferred_element_type=f32)
    y2 = y2 + jnp.dot(tap_lhs(8), w2l_ref[...], preferred_element_type=f32)

    y2_ref[0] = y2.astype(y2_ref.dtype)
    s2_ref[0] = jnp.sum(y2, axis=0, keepdims=True)
    s2q_ref[0] = jnp.sum(y2 * y2, axis=0, keepdims=True)


def _stats3_res_kernel(y2_ref, w3_ref, sc2_ref, sh2_ref, s3_ref, s3q_ref):
    """Pass 3 (identity-residual): BN2+ReLU -> conv3, emit BN3 partial stats."""
    h2n = jnp.maximum(
        y2_ref[...].astype(jnp.float32) * sc2_ref[...] + sh2_ref[...], 0.0)
    y3 = jnp.dot(h2n.astype(jnp.bfloat16), w3_ref[...],
                 preferred_element_type=jnp.float32)
    s3_ref[0] = jnp.sum(y3, axis=0, keepdims=True)
    s3q_ref[0] = jnp.sum(y3 * y3, axis=0, keepdims=True)


def _stats3_sc_kernel(y2_ref, xs_ref, w3_ref, ws_ref, sc2_ref, sh2_ref,
                      s3_ref, s3q_ref, ss_ref, ssq_ref):
    """Pass 3 (projection): same as above + shortcut-conv BN partial stats."""
    h2n = jnp.maximum(
        y2_ref[...].astype(jnp.float32) * sc2_ref[...] + sh2_ref[...], 0.0)
    y3 = jnp.dot(h2n.astype(jnp.bfloat16), w3_ref[...],
                 preferred_element_type=jnp.float32)
    s3_ref[0] = jnp.sum(y3, axis=0, keepdims=True)
    s3q_ref[0] = jnp.sum(y3 * y3, axis=0, keepdims=True)

    ysc = jnp.dot(xs_ref[...], ws_ref[...], preferred_element_type=jnp.float32)
    ss_ref[0] = jnp.sum(ysc, axis=0, keepdims=True)
    ssq_ref[0] = jnp.sum(ysc * ysc, axis=0, keepdims=True)


def _final_res_kernel(y2_ref, res_ref, w3_ref, sc2_ref, sh2_ref,
                      sc3_ref, sh3_ref, o_ref):
    """Pass 4 (identity-residual): relu(BN3(conv3(relu(BN2(y2)))) + x)."""
    h2n = jnp.maximum(
        y2_ref[...].astype(jnp.float32) * sc2_ref[...] + sh2_ref[...], 0.0)
    y3 = jnp.dot(h2n.astype(jnp.bfloat16), w3_ref[...],
                 preferred_element_type=jnp.float32)
    o_ref[...] = jnp.maximum(
        y3 * sc3_ref[...] + sh3_ref[...] + res_ref[...].astype(jnp.float32), 0.0)


def _final_sc_kernel(y2_ref, xs_ref, w3_ref, ws_ref, sc2_ref, sh2_ref,
                     sc3_ref, sh3_ref, scs_ref, shs_ref, o_ref):
    """Pass 4 (projection): relu(BN3(conv3(...)) + BNs(shortcut_conv(x)))."""
    h2n = jnp.maximum(
        y2_ref[...].astype(jnp.float32) * sc2_ref[...] + sh2_ref[...], 0.0)
    y3 = jnp.dot(h2n.astype(jnp.bfloat16), w3_ref[...],
                 preferred_element_type=jnp.float32)
    ysc = jnp.dot(xs_ref[...], ws_ref[...], preferred_element_type=jnp.float32)
    o_ref[...] = jnp.maximum(
        y3 * sc3_ref[...] + sh3_ref[...] + ysc * scs_ref[...] + shs_ref[...],
        0.0)


# ----------------------------------------------------------------------------
# Block forward (wrapper: one-time layout glue + 4 gridded pallas_calls)
# ----------------------------------------------------------------------------
def block_forward(x, params, *, stride, residual_connection, dom=0):
    n, cin, hdim, wdim = x.shape
    midp = params["w1"].shape[0]
    outp = params["w3"].shape[0]
    assert stride in (1, 2)
    if stride == 2:
        assert hdim % 2 == 0 and wdim % 2 == 0
    assert wdim % 8 == 0

    f32, bf16 = jnp.float32, jnp.bfloat16
    cin_p, mid_p, out_p = _round_up(cin), _round_up(midp), _round_up(outp)
    vmem_limit = _vmem_limit_bytes()

    def cparams():
        return pltpu.CompilerParams(dimension_semantics=("parallel",),
                                    vmem_limit_bytes=vmem_limit)

    # ---- one-time layout glue: NHWC, channel pad to 128, bf16 cast ----------
    x_nhwc = jnp.transpose(x, (0, 2, 3, 1))
    x_nhwc = jnp.pad(x_nhwc, ((0, 0), (0, 0), (0, 0),
                              (0, cin_p - cin))).astype(bf16)

    def conv_mat(w2d, rin, rout):        # torch (Cout, Cin) -> padded (Cin, Cout)
        m = jnp.transpose(w2d, (1, 0))
        return jnp.pad(m, ((0, rin - m.shape[0]),
                           (0, rout - m.shape[1]))).astype(bf16)

    w1 = conv_mat(params["w1"][:, :, 0, 0], cin_p, mid_p)
    w3 = conv_mat(params["w3"][:, :, 0, 0], mid_p, out_p)
    taps = [conv_mat(params["w2"][:, :, i, j], mid_p, mid_p)
            for i in range(3) for j in range(3)]
    # pair taps along K for the 256-deep MXU (v6e/v7x)
    w2_pairs = jnp.stack(
        [jnp.concatenate([taps[2 * p], taps[2 * p + 1]], axis=0)
         for p in range(4)], axis=0)                      # (4, 2*mid_p, mid_p)
    w2_last = taps[8]                                     # (mid_p, mid_p)

    def bn_vec(name, cpad):              # domain-specific BN params, zero-padded
        g = params["g_" + name][dom]
        b = params["b_" + name][dom]
        g = jnp.pad(g, (0, cpad - g.shape[-1])).astype(f32)
        b = jnp.pad(b, (0, cpad - b.shape[-1])).astype(f32)
        return g[None, :], b[None, :]

    g1, b1 = bn_vec("bn1", mid_p)
    g2, b2 = bn_vec("bn2", mid_p)
    g3, b3 = bn_vec("bn3", out_p)

    ho, wo = hdim // stride, wdim // stride
    m1 = n * hdim * wdim
    m2 = n * ho * wo

    if stride == 1:
        x_img = x_nhwc.reshape(n, hdim * wdim, cin_p)
        pp_shape = (hdim + 2, wdim + 16, mid_p)
    else:                                # polyphase split (component = 2*pi+pj)
        comps = [x_nhwc[:, pi::2, pj::2, :] for pi in range(2) for pj in range(2)]
        x_img = jnp.stack(comps, axis=1).reshape(n, 4 * ho * wo, cin_p)
        pp_shape = (4, ho + 1, wo + 16, mid_p)
    rows_per_img = x_img.shape[1]
    x_rows = x_img.reshape(m1, cin_p)

    # ---- pass 1: conv1 -> y1 (bf16) + per-tile BN1 partial stats -------------
    tm1 = _row_tile(m1)
    grid1 = m1 // tm1
    y1_rows, s1p, s1q = pl.pallas_call(
        _conv1_stats_kernel,
        grid=(grid1,),
        in_specs=[pl.BlockSpec((tm1, cin_p), lambda i: (i, 0)),
                  _const_spec((cin_p, mid_p))],
        out_specs=(pl.BlockSpec((tm1, mid_p), lambda i: (i, 0)),
                   _part_spec(mid_p), _part_spec(mid_p)),
        out_shape=(jax.ShapeDtypeStruct((m1, mid_p), bf16),
                   jax.ShapeDtypeStruct((grid1, 1, mid_p), f32),
                   jax.ShapeDtypeStruct((grid1, 1, mid_p), f32)),
        compiler_params=cparams(),
    )(x_rows, w1)
    sc1, sh1 = _bn_affine(s1p.sum(axis=0), s1q.sum(axis=0), g1, b1, float(m1))

    # ---- pass 2: fused BN1+ReLU + 3x3 conv2, per image, + BN2 partials -------
    y1_img = y1_rows.reshape(n, rows_per_img, mid_p)
    y2_img, s2p, s2q = pl.pallas_call(
        functools.partial(_conv2_kernel, stride=stride, hdim=hdim, wdim=wdim),
        grid=(n,),
        in_specs=[pl.BlockSpec((1, rows_per_img, mid_p), lambda b: (b, 0, 0)),
                  _const_spec((1, mid_p)), _const_spec((1, mid_p)),
                  _const_spec((4, 2 * mid_p, mid_p)),
                  _const_spec((mid_p, mid_p))],
        out_specs=(pl.BlockSpec((1, ho * wo, mid_p), lambda b: (b, 0, 0)),
                   _part_spec(mid_p), _part_spec(mid_p)),
        out_shape=(jax.ShapeDtypeStruct((n, ho * wo, mid_p), bf16),
                   jax.ShapeDtypeStruct((n, 1, mid_p), f32),
                   jax.ShapeDtypeStruct((n, 1, mid_p), f32)),
        scratch_shapes=[pltpu.VMEM(pp_shape, f32)],
        compiler_params=cparams(),
    )(y1_img, sc1, sh1, w2_pairs, w2_last)
    sc2, sh2 = _bn_affine(s2p.sum(axis=0), s2q.sum(axis=0), g2, b2, float(m2))
    y2_rows = y2_img.reshape(m2, mid_p)

    # ---- passes 3/4: conv3 (+ shortcut), BN stats then fused epilogue --------
    tm2 = _row_tile(m2)
    grid2 = m2 // tm2
    row_y2 = pl.BlockSpec((tm2, mid_p), lambda i: (i, 0))
    row_x = pl.BlockSpec((tm2, cin_p), lambda i: (i, 0))
    row_out = pl.BlockSpec((tm2, out_p), lambda i: (i, 0))
    vec_m = _const_spec((1, mid_p))
    vec_o = _const_spec((1, out_p))
    w3_spec = _const_spec((mid_p, out_p))
    stat_o_part = jax.ShapeDtypeStruct((grid2, 1, out_p), f32)

    if residual_connection:
        s3p, s3q = pl.pallas_call(
            _stats3_res_kernel,
            grid=(grid2,),
            in_specs=[row_y2, w3_spec, vec_m, vec_m],
            out_specs=(_part_spec(out_p), _part_spec(out_p)),
            out_shape=(stat_o_part, stat_o_part),
            compiler_params=cparams(),
        )(y2_rows, w3, sc2, sh2)
        sc3, sh3 = _bn_affine(s3p.sum(axis=0), s3q.sum(axis=0), g3, b3, float(m2))
        out_rows = pl.pallas_call(
            _final_res_kernel,
            grid=(grid2,),
            in_specs=[row_y2, row_x, w3_spec, vec_m, vec_m, vec_o, vec_o],
            out_specs=row_out,
            out_shape=jax.ShapeDtypeStruct((m2, out_p), f32),
            compiler_params=cparams(),
        )(y2_rows, x_rows, w3, sc2, sh2, sc3, sh3)
    else:
        gs_, bs_ = bn_vec("bns", out_p)
        ws_mat = conv_mat(params["ws"][:, :, 0, 0], cin_p, out_p)
        ws_spec = _const_spec((cin_p, out_p))
        # strided shortcut input = polyphase component (0,0) (no extra gather)
        xs_rows = (x_rows if stride == 1
                   else x_img[:, :ho * wo, :].reshape(m2, cin_p))
        s3p, s3q, ssp, ssq = pl.pallas_call(
            _stats3_sc_kernel,
            grid=(grid2,),
            in_specs=[row_y2, row_x, w3_spec, ws_spec, vec_m, vec_m],
            out_specs=(_part_spec(out_p),) * 4,
            out_shape=(stat_o_part,) * 4,
            compiler_params=cparams(),
        )(y2_rows, xs_rows, w3, ws_mat, sc2, sh2)
        sc3, sh3 = _bn_affine(s3p.sum(axis=0), s3q.sum(axis=0), g3, b3, float(m2))
        scs, shs = _bn_affine(ssp.sum(axis=0), ssq.sum(axis=0), gs_, bs_, float(m2))
        out_rows = pl.pallas_call(
            _final_sc_kernel,
            grid=(grid2,),
            in_specs=[row_y2, row_x, w3_spec, ws_spec,
                      vec_m, vec_m, vec_o, vec_o, vec_o, vec_o],
            out_specs=row_out,
            out_shape=jax.ShapeDtypeStruct((m2, out_p), f32),
            compiler_params=cparams(),
        )(y2_rows, xs_rows, w3, ws_mat, sc2, sh2, sc3, sh3, scs, shs)

    out = out_rows.reshape(n, ho, wo, out_p)[..., :outp]
    return jnp.transpose(out, (0, 3, 1, 2))


# ----------------------------------------------------------------------------
# Pure-JAX f32 reference (mirrors the PyTorch module semantics)
# ----------------------------------------------------------------------------
def block_forward_ref(x, params, *, stride, residual_connection, dom=0):
    def conv(v, w, s=1, pad=0):
        return jax.lax.conv_general_dilated(
            v, w, (s, s), [(pad, pad), (pad, pad)],
            dimension_numbers=("NCHW", "OIHW", "NCHW"))

    def bn(y, name):
        g = params["g_" + name][dom][None, :, None, None]
        b = params["b_" + name][dom][None, :, None, None]
        mean = jnp.mean(y, axis=(0, 2, 3), keepdims=True)
        var = jnp.mean((y - mean) ** 2, axis=(0, 2, 3), keepdims=True)
        return (y - mean) * jax.lax.rsqrt(var + EPS) * g + b

    h1 = jax.nn.relu(bn(conv(x, params["w1"]), "bn1"))
    h2 = jax.nn.relu(bn(conv(h1, params["w2"], s=stride, pad=1), "bn2"))
    y3 = bn(conv(h2, params["w3"]), "bn3")
    if residual_connection:
        res = x
    else:
        res = bn(conv(x, params["ws"], s=stride), "bns")
    return jax.nn.relu(y3 + res)


# ----------------------------------------------------------------------------
# Deterministic parameter construction (PyTorch layouts per Block.__init__)
# ----------------------------------------------------------------------------
def init_params(key, inp, outp, midp, residual_connection):
    ks = jax.random.split(key, 12)

    def conv_w(k, cout, cin, kh, kw):
        return 0.1 * jax.random.normal(k, (cout, cin, kh, kw), jnp.float32)

    def bn_pair(kg, kb, c):              # 2 domains (DomainSpecificBatchNorm2d)
        g = 1.0 + 0.1 * jax.random.normal(kg, (2, c), jnp.float32)
        b = 0.1 * jax.random.normal(kb, (2, c), jnp.float32)
        return g, b

    p = {"w1": conv_w(ks[0], midp, inp, 1, 1),
         "w2": conv_w(ks[1], midp, midp, 3, 3),
         "w3": conv_w(ks[2], outp, midp, 1, 1)}
    p["g_bn1"], p["b_bn1"] = bn_pair(ks[3], ks[4], midp)
    p["g_bn2"], p["b_bn2"] = bn_pair(ks[5], ks[6], midp)
    p["g_bn3"], p["b_bn3"] = bn_pair(ks[7], ks[8], outp)
    if not residual_connection:
        p["ws"] = conv_w(ks[9], outp, inp, 1, 1)
        p["g_bns"], p["b_bns"] = bn_pair(ks[10], ks[11], outp)
    return p


if __name__ == "__main__":
    key = jax.random.PRNGKey(0)

    # Case 1: stride-2 projection-shortcut branch (inp=8 -> outp=16).
    n, inp, hdim, wdim, outp, stride = 2, 8, 16, 16, 16, 2
    midp = make_divisible(outp // 4)
    residual = (stride == 1 and inp == outp)
    kx, kp, key = jax.random.split(key, 3)
    x = jax.random.normal(kx, (n, inp, hdim, wdim), jnp.float32)
    params = init_params(kp, inp, outp, midp, residual)
    fwd = jax.jit(functools.partial(block_forward, stride=stride,
                                    residual_connection=residual, dom=0))
    out = jax.block_until_ready(fwd(x, params))
    ref = block_forward_ref(x, params, stride=stride,
                            residual_connection=residual, dom=0)
    assert out.shape == (n, outp, hdim // stride, wdim // stride), out.shape
    assert bool(jnp.allclose(out, ref, rtol=5e-2, atol=5e-2)), \
        f"shortcut branch mismatch: max|diff|={jnp.max(jnp.abs(out - ref))}"

    # Case 2: stride-1 identity-residual branch (inp = outp = 16).
    n, inp, hdim, wdim, outp, stride = 2, 16, 16, 16, 16, 1
    midp = make_divisible(outp // 4)
    residual = (stride == 1 and inp == outp)
    kx, kp, key = jax.random.split(key, 3)
    x = jax.random.normal(kx, (n, inp, hdim, wdim), jnp.float32)
    params = init_params(kp, inp, outp, midp, residual)
    fwd = jax.jit(functools.partial(block_forward, stride=stride,
                                    residual_connection=residual, dom=0))
    out = jax.block_until_ready(fwd(x, params))
    ref = block_forward_ref(x, params, stride=stride,
                            residual_connection=residual, dom=0)
    assert out.shape == (n, outp, hdim, wdim), out.shape
    assert bool(jnp.allclose(out, ref, rtol=5e-2, atol=5e-2)), \
        f"residual branch mismatch: max|diff|={jnp.max(jnp.abs(out - ref))}"

    print("KERNEL_OK")
</pallas_src>

<mosaic_0001>
module attributes {stable_mosaic.version = 11 : i64} {
  func.func @_conv1_stats_kernel(%arg0: i32, %arg1: memref<512x128xbf16, #tpu.memory_space<vmem>>, %arg2: memref<128x128xbf16, #tpu.memory_space<vmem>>, %arg3: memref<512x128xbf16, #tpu.memory_space<vmem>>, %arg4: memref<1x1x128xf32, #tpu.memory_space<vmem>>, %arg5: memref<1x1x128xf32, #tpu.memory_space<vmem>>) attributes {dimension_semantics = [#tpu.dimension_semantics<parallel>], iteration_bounds = array<i64: 1>, scalar_prefetch = 0 : i64, scratch_operands = 0 : i64, tpu.core_type = #tpu.core_type<tc>, window_params = [{transform_indices = @transform_0, window_bounds = array<i64: 512, 128>}, {pipeline_mode = #tpu.pipeline_mode<synchronous>, transform_indices = @transform_1, window_bounds = array<i64: 128, 128>}, {transform_indices = @transform_2, window_bounds = array<i64: 512, 128>}, {transform_indices = @transform_3, window_bounds = array<i64: 1, 1, 128>}, {transform_indices = @transform_4, window_bounds = array<i64: 1, 1, 128>}]} {
    %c0 = arith.constant 0 : index
    %c0_0 = arith.constant 0 : index
    %0 = vector.load %arg1[%c0, %c0_0] : memref<512x128xbf16, #tpu.memory_space<vmem>>, vector<512x128xbf16>
    %c0_1 = arith.constant 0 : index
    %c0_2 = arith.constant 0 : index
    %1 = vector.load %arg2[%c0_1, %c0_2] : memref<128x128xbf16, #tpu.memory_space<vmem>>, vector<128x128xbf16>
    %cst = arith.constant dense<0.000000e+00> : vector<512x128xf32>
    %2 = tpu.matmul %0, %1, %cst {dimension_numbers = #tpu.dot_dimension_numbers<[1], [0], [0], [1], [0, 0, 1, 1], [], []>} : vector<512x128xbf16>, vector<128x128xbf16>, vector<512x128xf32> -> vector<512x128xf32>
    %3 = arith.truncf %2 : vector<512x128xf32> to vector<512x128xbf16>
    %c0_3 = arith.constant 0 : index
    %c0_4 = arith.constant 0 : index
    %4 = vector.load %arg3[%c0_3, %c0_4] : memref<512x128xbf16, #tpu.memory_space<vmem>>, vector<512x128xbf16>
    tpu.vector_store %arg3[%c0_3, %c0_4], %3 {strides = array<i32>} : memref<512x128xbf16, #tpu.memory_space<vmem>>, vector<512x128xbf16>,
    %cst_5 = arith.constant dense<0.000000e+00> : vector<128xf32>
    %5 = vector.multi_reduction <add>, %2, %cst_5 [0] : vector<512x128xf32> to vector<128xf32>
    %6 = vector.shape_cast %5 : vector<128xf32> to vector<1x128xf32>
    %c0_6 = arith.constant 0 : index
    %c0_7 = arith.constant 0 : index
    %c0_8 = arith.constant 0 : index
    %7 = vector.load %arg4[%c0_6, %c0_7, %c0_8] : memref<1x1x128xf32, #tpu.memory_space<vmem>>, vector<1x1x128xf32>
    %8 = vector.shape_cast %7 : vector<1x1x128xf32> to vector<1x128xf32>
    %9 = vector.shape_cast %6 : vector<1x128xf32> to vector<1x1x128xf32>
    tpu.vector_store %arg4[%c0_6, %c0_7, %c0_8], %9 {strides = array<i32>} : memref<1x1x128xf32, #tpu.memory_space<vmem>>, vector<1x1x128xf32>,
    %10 = arith.mulf %2, %2 : vector<512x128xf32>
    %cst_9 = arith.constant dense<0.000000e+00> : vector<128xf32>
    %11 = vector.multi_reduction <add>, %10, %cst_9 [0] : vector<512x128xf32> to vector<128xf32>
    %12 = vector.shape_cast %11 : vector<128xf32> to vector<1x128xf32>
    %c0_10 = arith.constant 0 : index
    %c0_11 = arith.constant 0 : index
    %c0_12 = arith.constant 0 : index
    %13 = vector.load %arg5[%c0_10, %c0_11, %c0_12] : memref<1x1x128xf32, #tpu.memory_space<vmem>>, vector<1x1x128xf32>
    %14 = vector.shape_cast %13 : vector<1x1x128xf32> to vector<1x128xf32>
    %15 = vector.shape_cast %12 : vector<1x128xf32> to vector<1x1x128xf32>
    tpu.vector_store %arg5[%c0_10, %c0_11, %c0_12], %15 {strides = array<i32>} : memref<1x1x128xf32, #tpu.memory_space<vmem>>, vector<1x1x128xf32>,
    return
  }
  func.func @transform_0(%arg0: i32) -> (i32, i32) {
    %c0_i32 = arith.constant 0 : i32
    %c0_i32_0 = arith.constant 0 : i32
    return %arg0, %c0_i32 : i32, i32
  }
  func.func @transform_1(%arg0: i32) -> (i32, i32) {
    %c0_i32 = arith.constant 0 : i32
    %c0_i32_0 = arith.constant 0 : i32
    %c0_i32_1 = arith.constant 0 : i32
    return %c0_i32, %c0_i32_0 : i32, i32
  }
  func.func @transform_2(%arg0: i32) -> (i32, i32) {
    %c0_i32 = arith.constant 0 : i32
    %c0_i32_0 = arith.constant 0 : i32
    return %arg0, %c0_i32 : i32, i32
  }
  func.func @transform_3(%arg0: i32) -> (i32, i32, i32) {
    %c0_i32 = arith.constant 0 : i32
    %c0_i32_0 = arith.constant 0 : i32
    %c0_i32_1 = arith.constant 0 : i32
    return %arg0, %c0_i32, %c0_i32_0 : i32, i32, i32
  }
  func.func @transform_4(%arg0: i32) -> (i32, i32, i32) {
    %c0_i32 = arith.constant 0 : i32
    %c0_i32_0 = arith.constant 0 : i32
    %c0_i32_1 = arith.constant 0 : i32
    return %arg0, %c0_i32, %c0_i32_0 : i32, i32, i32
  }
}

module attributes {stable_mosaic.version = 11 : i64} {
  func.func @_conv2_kernel(%arg0: i32, %arg1: memref<1x256x128xbf16, #tpu.memory_space<vmem>>, %arg2: memref<1x128xf32, #tpu.memory_space<vmem>>, %arg3: memref<1x128xf32, #tpu.memory_space<vmem>>, %arg4: memref<4x256x128xbf16, #tpu.memory_space<vmem>>, %arg5: memref<128x128xbf16, #tpu.memory_space<vmem>>, %arg6: memref<1x64x128xbf16, #tpu.memory_space<vmem>>, %arg7: memref<1x1x128xf32, #tpu.memory_space<vmem>>, %arg8: memref<1x1x128xf32, #tpu.memory_space<vmem>>, %arg9: memref<4x9x24x128xf32, #tpu.memory_space<vmem>>) attributes {dimension_semantics = [#tpu.dimension_semantics<parallel>], iteration_bounds = array<i64: 2>, scalar_prefetch = 0 : i64, scratch_operands = 1 : i64, tpu.core_type = #tpu.core_type<tc>, window_params = [{transform_indices = @transform_0, window_bounds = array<i64: 1, 256, 128>}, {pipeline_mode = #tpu.pipeline_mode<synchronous>, transform_indices = @transform_1, window_bounds = array<i64: 1, 128>}, {pipeline_mode = #tpu.pipeline_mode<synchronous>, transform_indices = @transform_2, window_bounds = array<i64: 1, 128>}, {pipeline_mode = #tpu.pipeline_mode<synchronous>, transform_indices = @transform_3, window_bounds = array<i64: 4, 256, 128>}, {pipeline_mode = #tpu.pipeline_mode<synchronous>, transform_indices = @transform_4, window_bounds = array<i64: 128, 128>}, {transform_indices = @transform_5, window_bounds = array<i64: 1, 64, 128>}, {transform_indices = @transform_6, window_bounds = array<i64: 1, 1, 128>}, {transform_indices = @transform_7, window_bounds = array<i64: 1, 1, 128>}]} {
    %c0 = arith.constant 0 : index
    %c0_0 = arith.constant 0 : index
    %c0_1 = arith.constant 0 : index
    %0 = vector.load %arg1[%c0, %c0_0, %c0_1] : memref<1x256x128xbf16, #tpu.memory_space<vmem>>, vector<1x256x128xbf16>
    %1 = vector.shape_cast %0 : vector<1x256x128xbf16> to vector<256x128xbf16>
    %2 = arith.extf %1 : vector<256x128xbf16> to vector<256x128xf32>
    %c0_2 = arith.constant 0 : index
    %c0_3 = arith.constant 0 : index
    %3 = vector.load %arg2[%c0_2, %c0_3] : memref<1x128xf32, #tpu.memory_space<vmem>>, vector<1x128xf32>
    %4 = vector.broadcast %3 : vector<1x128xf32> to vector<256x128xf32>
    %5 = arith.mulf %2, %4 : vector<256x128xf32>
    %c0_4 = arith.constant 0 : index
    %c0_5 = arith.constant 0 : index
    %6 = vector.load %arg3[%c0_4, %c0_5] : memref<1x128xf32, #tpu.memory_space<vmem>>, vector<1x128xf32>
    %7 = vector.broadcast %6 : vector<1x128xf32> to vector<256x128xf32>
    %8 = arith.addf %5, %7 : vector<256x128xf32>
    %cst = arith.constant 0.000000e+00 : f32
    %9 = vector.broadcast %cst : f32 to vector<256x128xf32>
    %10 = arith.maximumf %8, %9 : vector<256x128xf32>
    %cst_6 = arith.constant 0.000000e+00 : f32
    %11 = vector.broadcast %cst_6 : f32 to vector<4x1x24x128xf32>
    %c0_7 = arith.constant 0 : index
    %c0_8 = arith.constant 0 : index
    %c0_9 = arith.constant 0 : index
    %c0_10 = arith.constant 0 : index
    %12 = vector.load %arg9[%c0_7, %c0_8, %c0_9, %c0_10] : memref<4x9x24x128xf32, #tpu.memory_space<vmem>>, vector<4x1x24x128xf32>
    tpu.vector_store %arg9[%c0_7, %c0_8, %c0_9, %c0_10], %11 {strides = array<i32>} : memref<4x9x24x128xf32, #tpu.memory_space<vmem>>, vector<4x1x24x128xf32>,
    %cst_11 = arith.constant 0.000000e+00 : f32
    %13 = vector.broadcast %cst_11 : f32 to vector<4x1x24x128xf32>
    %c0_12 = arith.constant 0 : index
    %c8 = arith.constant 8 : index
    %c0_13 = arith.constant 0 : index
    %c0_14 = arith.constant 0 : index
    %14 = vector.load %arg9[%c0_12, %c8, %c0_13, %c0_14] : memref<4x9x24x128xf32, #tpu.memory_space<vmem>>, vector<4x1x24x128xf32>
    tpu.vector_store %arg9[%c0_12, %c8, %c0_13, %c0_14], %13 {strides = array<i32>} : memref<4x9x24x128xf32, #tpu.memory_space<vmem>>, vector<4x1x24x128xf32>,
    %cst_15 = arith.constant 0.000000e+00 : f32
    %15 = vector.broadcast %cst_15 : f32 to vector<4x9x8x128xf32>
    %c0_16 = arith.constant 0 : index
    %c0_17 = arith.constant 0 : index
    %c0_18 = arith.constant 0 : index
    %c0_19 = arith.constant 0 : index
    %16 = vector.load %arg9[%c0_16, %c0_17, %c0_18, %c0_19] : memref<4x9x24x128xf32, #tpu.memory_space<vmem>>, vector<4x9x8x128xf32>
    tpu.vector_store %arg9[%c0_16, %c0_17, %c0_18, %c0_19], %15 {strides = array<i32>} : memref<4x9x24x128xf32, #tpu.memory_space<vmem>>, vector<4x9x8x128xf32>,
    %cst_20 = arith.constant 0.000000e+00 : f32
    %17 = vector.broadcast %cst_20 : f32 to vector<4x9x8x128xf32>
    %c0_21 = arith.constant 0 : index
    %c0_22 = arith.constant 0 : index
    %c16 = arith.constant 16 : index
    %c0_23 = arith.constant 0 : index
    %18 = vector.load %arg9[%c0_21, %c0_22, %c16, %c0_23] : memref<4x9x24x128xf32, #tpu.memory_space<vmem>>, vector<4x9x8x128xf32>
    tpu.vector_store %arg9[%c0_21, %c0_22, %c16, %c0_23], %17 {strides = array<i32>} : memref<4x9x24x128xf32, #tpu.memory_space<vmem>>, vector<4x9x8x128xf32>,
    %19 = vector.shape_cast %10 : vector<256x128xf32> to vector<4x8x8x128xf32>
    %20 = vector.extract_strided_slice %19 {offsets = [3, 0, 0, 0], sizes = [1, 8, 8, 128], strides = [1, 1, 1, 1]} : vector<4x8x8x128xf32> to vector<1x8x8x128xf32>
    %21 = vector.shape_cast %20 : vector<1x8x8x128xf32> to vector<8x8x128xf32>
    %c0_24 = arith.constant 0 : index
    %c1 = arith.constant 1 : index
    %c8_25 = arith.constant 8 : index
    %c0_26 = arith.constant 0 : index
    %22 = vector.load %arg9[%c0_24, %c1, %c8_25, %c0_26] : memref<4x9x24x128xf32, #tpu.memory_space<vmem>>, vector<1x8x8x128xf32>
    %23 = vector.shape_cast %22 : vector<1x8x8x128xf32> to vector<8x8x128xf32>
    %24 = vector.shape_cast %21 : vector<8x8x128xf32> to vector<1x8x8x128xf32>
    tpu.vector_store %arg9[%c0_24, %c1, %c8_25, %c0_26], %24 {strides = array<i32>} : memref<4x9x24x128xf32, #tpu.memory_space<vmem>>, vector<1x8x8x128xf32>,
    %25 = vector.extract_strided_slice %19 {offsets = [2, 0, 0, 0], sizes = [1, 8, 8, 128], strides = [1, 1, 1, 1]} : vector<4x8x8x128xf32> to vector<1x8x8x128xf32>
    %26 = vector.shape_cast %25 : vector<1x8x8x128xf32> to vector<8x8x128xf32>
    %c1_27 = arith.constant 1 : index
    %c1_28 = arith.constant 1 : index
    %c8_29 = arith.constant 8 : index
    %c0_30 = arith.constant 0 : index
    %27 = vector.load %arg9[%c1_27, %c1_28, %c8_29, %c0_30] : memref<4x9x24x128xf32, #tpu.memory_space<vmem>>, vector<1x8x8x128xf32>
    %28 = vector.shape_cast %27 : vector<1x8x8x128xf32> to vector<8x8x128xf32>
    %29 = vector.shape_cast %26 : vector<8x8x128xf32> to vector<1x8x8x128xf32>
    tpu.vector_store %arg9[%c1_27, %c1_28, %c8_29, %c0_30], %29 {strides = array<i32>} : memref<4x9x24x128xf32, #tpu.memory_space<vmem>>, vector<1x8x8x128xf32>,
    %30 = vector.extract_strided_slice %19 {offsets = [1, 0, 0, 0], sizes = [1, 8, 8, 128], strides = [1, 1, 1, 1]} : vector<4x8x8x128xf32> to vector<1x8x8x128xf32>
    %31 = vector.shape_cast %30 : vector<1x8x8x128xf32> to vector<8x8x128xf32>
    %c2 = arith.constant 2 : index
    %c0_31 = arith.constant 0 : index
    %c8_32 = arith.constant 8 : index
    %c0_33 = arith.constant 0 : index
    %32 = vector.load %arg9[%c2, %c0_31, %c8_32, %c0_33] : memref<4x9x24x128xf32, #tpu.memory_space<vmem>>, vector<1x8x8x128xf32>
    %33 = vector.shape_cast %32 : vector<1x8x8x128xf32> to vector<8x8x128xf32>
    %34 = vector.shape_cast %31 : vector<8x8x128xf32> to vector<1x8x8x128xf32>
    tpu.vector_store %arg9[%c2, %c0_31, %c8_32, %c0_33], %34 {strides = array<i32>} : memref<4x9x24x128xf32, #tpu.memory_space<vmem>>, vector<1x8x8x128xf32>,
    %35 = vector.extract_strided_slice %19 {offsets = [0, 0, 0, 0], sizes = [1, 8, 8, 128], strides = [1, 1, 1, 1]} : vector<4x8x8x128xf32> to vector<1x8x8x128xf32>
    %36 = vector.shape_cast %35 : vector<1x8x8x128xf32> to vector<8x8x128xf32>
    %c3 = arith.constant 3 : index
    %c0_34 = arith.constant 0 : index
    %c8_35 = arith.constant 8 : index
    %c0_36 = arith.constant 0 : index
    %37 = vector.load %arg9[%c3, %c0_34, %c8_35, %c0_36] : memref<4x9x24x128xf32, #tpu.memory_space<vmem>>, vector<1x8x8x128xf32>
    %38 = vector.shape_cast %37 : vector<1x8x8x128xf32> to vector<8x8x128xf32>
    %39 = vector.shape_cast %36 : vector<8x8x128xf32> to vector<1x8x8x128xf32>
    tpu.vector_store %arg9[%c3, %c0_34, %c8_35, %c0_36], %39 {strides = array<i32>} : memref<4x9x24x128xf32, #tpu.memory_space<vmem>>, vector<1x8x8x128xf32>,
    %c0_37 = arith.constant 0 : index
    %c0_38 = arith.constant 0 : index
    %c7 = arith.constant 7 : index
    %c0_39 = arith.constant 0 : index
    %40 = vector.load %arg9[%c0_37, %c0_38, %c7, %c0_39] : memref<4x9x24x128xf32, #tpu.memory_space<vmem>>, vector<1x8x8x128xf32>
    %41 = vector.shape_cast %40 : vector<1x8x8x128xf32> to vector<8x8x128xf32>
    %42 = vector.shape_cast %41 : vector<8x8x128xf32> to vector<64x128xf32>
    %43 = arith.truncf %42 : vector<64x128xf32> to vector<64x128xbf16>
    %c1_40 = arith.constant 1 : index
    %c0_41 = arith.constant 0 : index
    %c8_42 = arith.constant 8 : index
    %c0_43 = arith.constant 0 : index
    %44 = vector.load %arg9[%c1_40, %c0_41, %c8_42, %c0_43] : memref<4x9x24x128xf32, #tpu.memory_space<vmem>>, vector<1x8x8x128xf32>
    %45 = vector.shape_cast %44 : vector<1x8x8x128xf32> to vector<8x8x128xf32>
    %46 = vector.shape_cast %45 : vector<8x8x128xf32> to vector<64x128xf32>
    %47 = arith.truncf %46 : vector<64x128xf32> to vector<64x128xbf16>
    %48 = tpu.concatenate %43, %47 in 1 : vector<64x128xbf16>, vector<64x128xbf16> -> vector<64x256xbf16>
    %c0_44 = arith.constant 0 : index
    %c0_45 = arith.constant 0 : index
    %c0_46 = arith.constant 0 : index
    %49 = vector.load %arg4[%c0_44, %c0_45, %c0_46] : memref<4x256x128xbf16, #tpu.memory_space<vmem>>, vector<1x256x128xbf16>
    %50 = vector.shape_cast %49 : vector<1x256x128xbf16> to vector<256x128xbf16>
    %cst_47 = arith.constant dense<0.000000e+00> : vector<64x128xf32>
    %51 = tpu.matmul %48, %50, %cst_47 {dimension_numbers = #tpu.dot_dimension_numbers<[1], [0], [0], [1], [0, 0, 1, 1], [], []>} : vector<64x256xbf16>, vector<256x128xbf16>, vector<64x128xf32> -> vector<64x128xf32>
    %c0_48 = arith.constant 0 : index
    %c0_49 = arith.constant 0 : index
    %c8_50 = arith.constant 8 : index
    %c0_51 = arith.constant 0 : index
    %52 = vector.load %arg9[%c0_48, %c0_49, %c8_50, %c0_51] : memref<4x9x24x128xf32, #tpu.memory_space<vmem>>, vector<1x8x8x128xf32>
    %53 = vector.shape_cast %52 : vector<1x8x8x128xf32> to vector<8x8x128xf32>
    %54 = vector.shape_cast %53 : vector<8x8x128xf32> to vector<64x128xf32>
    %55 = arith.truncf %54 : vector<64x128xf32> to vector<64x128xbf16>
    %c2_52 = arith.constant 2 : index
    %c0_53 = arith.constant 0 : index
    %c7_54 = arith.constant 7 : index
    %c0_55 = arith.constant 0 : index
    %56 = vector.load %arg9[%c2_52, %c0_53, %c7_54, %c0_55] : memref<4x9x24x128xf32, #tpu.memory_space<vmem>>, vector<1x8x8x128xf32>
    %57 = vector.shape_cast %56 : vector<1x8x8x128xf32> to vector<8x8x128xf32>
    %58 = vector.shape_cast %57 : vector<8x8x128xf32> to vector<64x128xf32>
    %59 = arith.truncf %58 : vector<64x128xf32> to vector<64x128xbf16>
    %60 = tpu.concatenate %55, %59 in 1 : vector<64x128xbf16>, vector<64x128xbf16> -> vector<64x256xbf16>
    %c1_56 = arith.constant 1 : index
    %c0_57 = arith.constant 0 : index
    %c0_58 = arith.constant 0 : index
    %61 = vector.load %arg4[%c1_56, %c0_57, %c0_58] : memref<4x256x128xbf16, #tpu.memory_space<vmem>>, vector<1x256x128xbf16>
    %62 = vector.shape_cast %61 : vector<1x256x128xbf16> to vector<256x128xbf16>
    %cst_59 = arith.constant dense<0.000000e+00> : vector<64x128xf32>
    %63 = tpu.matmul %60, %62, %cst_59 {dimension_numbers = #tpu.dot_dimension_numbers<[1], [0], [0], [1], [0, 0, 1, 1], [], []>} : vector<64x256xbf16>, vector<256x128xbf16>, vector<64x128xf32> -> vector<64x128xf32>
    %64 = arith.addf %51, %63 : vector<64x128xf32>
    %c3_60 = arith.constant 3 : index
    %c0_61 = arith.constant 0 : index
    %c8_62 = arith.constant 8 : index
    %c0_63 = arith.constant 0 : index
    %65 = vector.load %arg9[%c3_60, %c0_61, %c8_62, %c0_63] : memref<4x9x24x128xf32, #tpu.memory_space<vmem>>, vector<1x8x8x128xf32>
    %66 = vector.shape_cast %65 : vector<1x8x8x128xf32> to vector<8x8x128xf32>
    %67 = vector.shape_cast %66 : vector<8x8x128xf32> to vector<64x128xf32>
    %68 = arith.truncf %67 : vector<64x128xf32> to vector<64x128xbf16>
    %c2_64 = arith.constant 2 : index
    %c0_65 = arith.constant 0 : index
    %c8_66 = arith.constant 8 : index
    %c0_67 = arith.constant 0 : index
    %69 = vector.load %arg9[%c2_64, %c0_65, %c8_66, %c0_67] : memref<4x9x24x128xf32, #tpu.memory_space<vmem>>, vector<1x8x8x128xf32>
    %70 = vector.shape_cast %69 : vector<1x8x8x128xf32> to vector<8x8x128xf32>
    %71 = vector.shape_cast %70 : vector<8x8x128xf32> to vector<64x128xf32>
    %72 = arith.truncf %71 : vector<64x128xf32> to vector<64x128xbf16>
    %73 = tpu.concatenate %68, %72 in 1 : vector<64x128xbf16>, vector<64x128xbf16> -> vector<64x256xbf16>
    %c2_68 = arith.constant 2 : index
    %c0_69 = arith.constant 0 : index
    %c0_70 = arith.constant 0 : index
    %74 = vector.load %arg4[%c2_68, %c0_69, %c0_70] : memref<4x256x128xbf16, #tpu.memory_space<vmem>>, vector<1x256x128xbf16>
    %75 = vector.shape_cast %74 : vector<1x256x128xbf16> to vector<256x128xbf16>
    %cst_71 = arith.constant dense<0.000000e+00> : vector<64x128xf32>
    %76 = tpu.matmul %73, %75, %cst_71 {dimension_numbers = #tpu.dot_dimension_numbers<[1], [0], [0], [1], [0, 0, 1, 1], [], []>} : vector<64x256xbf16>, vector<256x128xbf16>, vector<64x128xf32> -> vector<64x128xf32>
    %77 = arith.addf %64, %76 : vector<64x128xf32>
    %c0_72 = arith.constant 0 : index
    %c1_73 = arith.constant 1 : index
    %c7_74 = arith.constant 7 : index
    %c0_75 = arith.constant 0 : index
    %78 = vector.load %arg9[%c0_72, %c1_73, %c7_74, %c0_75] : memref<4x9x24x128xf32, #tpu.memory_space<vmem>>, vector<1x8x8x128xf32>
    %79 = vector.shape_cast %78 : vector<1x8x8x128xf32> to vector<8x8x128xf32>
    %80 = vector.shape_cast %79 : vector<8x8x128xf32> to vector<64x128xf32>
    %81 = arith.truncf %80 : vector<64x128xf32> to vector<64x128xbf16>
    %c1_76 = arith.constant 1 : index
    %c1_77 = arith.constant 1 : index
    %c8_78 = arith.constant 8 : index
    %c0_79 = arith.constant 0 : index
    %82 = vector.load %arg9[%c1_76, %c1_77, %c8_78, %c0_79] : memref<4x9x24x128xf32, #tpu.memory_space<vmem>>, vector<1x8x8x128xf32>
    %83 = vector.shape_cast %82 : vector<1x8x8x128xf32> to vector<8x8x128xf32>
    %84 = vector.shape_cast %83 : vector<8x8x128xf32> to vector<64x128xf32>
    %85 = arith.truncf %84 : vector<64x128xf32> to vector<64x128xbf16>
    %86 = tpu.concatenate %81, %85 in 1 : vector<64x128xbf16>, vector<64x128xbf16> -> vector<64x256xbf16>
    %c3_80 = arith.constant 3 : index
    %c0_81 = arith.constant 0 : index
    %c0_82 = arith.constant 0 : index
    %87 = vector.load %arg4[%c3_80, %c0_81, %c0_82] : memref<4x256x128xbf16, #tpu.memory_space<vmem>>, vector<1x256x128xbf16>
    %88 = vector.shape_cast %87 : vector<1x256x128xbf16> to vector<256x128xbf16>
    %cst_83 = arith.constant dense<0.000000e+00> : vector<64x128xf32>
    %89 = tpu.matmul %86, %88, %cst_83 {dimension_numbers = #tpu.dot_dimension_numbers<[1], [0], [0], [1], [0, 0, 1, 1], [], []>} : vector<64x256xbf16>, vector<256x128xbf16>, vector<64x128xf32> -> vector<64x128xf32>
    %90 = arith.addf %77, %89 : vector<64x128xf32>
    %c0_84 = arith.constant 0 : index
    %c1_85 = arith.constant 1 : index
    %c8_86 = arith.constant 8 : index
    %c0_87 = arith.constant 0 : index
    %91 = vector.load %arg9[%c0_84, %c1_85, %c8_86, %c0_87] : memref<4x9x24x128xf32, #tpu.memory_space<vmem>>, vector<1x8x8x128xf32>
    %92 = vector.shape_cast %91 : vector<1x8x8x128xf32> to vector<8x8x128xf32>
    %93 = vector.shape_cast %92 : vector<8x8x128xf32> to vector<64x128xf32>
    %94 = arith.truncf %93 : vector<64x128xf32> to vector<64x128xbf16>
    %c0_88 = arith.constant 0 : index
    %c0_89 = arith.constant 0 : index
    %95 = vector.load %arg5[%c0_88, %c0_89] : memref<128x128xbf16, #tpu.memory_space<vmem>>, vector<128x128xbf16>
    %cst_90 = arith.constant dense<0.000000e+00> : vector<64x128xf32>
    %96 = tpu.matmul %94, %95, %cst_90 {dimension_numbers = #tpu.dot_dimension_numbers<[1], [0], [0], [1], [0, 0, 1, 1], [], []>} : vector<64x128xbf16>, vector<128x128xbf16>, vector<64x128xf32> -> vector<64x128xf32>
    %97 = arith.addf %90, %96 : vector<64x128xf32>
    %98 = arith.truncf %97 : vector<64x128xf32> to vector<64x128xbf16>
    %c0_91 = arith.constant 0 : index
    %c0_92 = arith.constant 0 : index
    %c0_93 = arith.constant 0 : index
    %99 = vector.load %arg6[%c0_91, %c0_92, %c0_93] : memref<1x64x128xbf16, #tpu.memory_space<vmem>>, vector<1x64x128xbf16>
    %100 = vector.shape_cast %99 : vector<1x64x128xbf16> to vector<64x128xbf16>
    %101 = vector.shape_cast %98 : vector<64x128xbf16> to vector<1x64x128xbf16>
    tpu.vector_store %arg6[%c0_91, %c0_92, %c0_93], %101 {strides = array<i32>} : memref<1x64x128xbf16, #tpu.memory_space<vmem>>, vector<1x64x128xbf16>,
    %cst_94 = arith.constant dense<0.000000e+00> : vector<128xf32>
    %102 = vector.multi_reduction <add>, %97, %cst_94 [0] : vector<64x128xf32> to vector<128xf32>
    %103 = vector.shape_cast %102 : vector<128xf32> to vector<1x128xf32>
    %c0_95 = arith.constant 0 : index
    %c0_96 = arith.constant 0 : index
    %c0_97 = arith.constant 0 : index
    %104 = vector.load %arg7[%c0_95, %c0_96, %c0_97] : memref<1x1x128xf32, #tpu.memory_space<vmem>>, vector<1x1x128xf32>
    %105 = vector.shape_cast %104 : vector<1x1x128xf32> to vector<1x128xf32>
    %106 = vector.shape_cast %103 : vector<1x128xf32> to vector<1x1x128xf32>
    tpu.vector_store %arg7[%c0_95, %c0_96, %c0_97], %106 {strides = array<i32>} : memref<1x1x128xf32, #tpu.memory_space<vmem>>, vector<1x1x128xf32>,
    %107 = arith.mulf %97, %97 : vector<64x128xf32>
    %cst_98 = arith.constant dense<0.000000e+00> : vector<128xf32>
    %108 = vector.multi_reduction <add>, %107, %cst_98 [0] : vector<64x128xf32> to vector<128xf32>
    %109 = vector.shape_cast %108 : vector<128xf32> to vector<1x128xf32>
    %c0_99 = arith.constant 0 : index
    %c0_100 = arith.constant 0 : index
    %c0_101 = arith.constant 0 : index
    %110 = vector.load %arg8[%c0_99, %c0_100, %c0_101] : memref<1x1x128xf32, #tpu.memory_space<vmem>>, vector<1x1x128xf32>
    %111 = vector.shape_cast %110 : vector<1x1x128xf32> to vector<1x128xf32>
    %112 = vector.shape_cast %109 : vector<1x128xf32> to vector<1x1x128xf32>
    tpu.vector_store %arg8[%c0_99, %c0_100, %c0_101], %112 {strides = array<i32>} : memref<1x1x128xf32, #tpu.memory_space<vmem>>, vector<1x1x128xf32>,
    return
  }
  func.func @transform_0(%arg0: i32) -> (i32, i32, i32) {
    %c0_i32 = arith.constant 0 : i32
    %c0_i32_0 = arith.constant 0 : i32
    %c0_i32_1 = arith.constant 0 : i32
    return %arg0, %c0_i32, %c0_i32_0 : i32, i32, i32
  }
  func.func @transform_1(%arg0: i32) -> (i32, i32) {
    %c0_i32 = arith.constant 0 : i32
    %c0_i32_0 = arith.constant 0 : i32
    %c0_i32_1 = arith.constant 0 : i32
    return %c0_i32, %c0_i32_0 : i32, i32
  }
  func.func @transform_2(%arg0: i32) -> (i32, i32) {
    %c0_i32 = arith.constant 0 : i32
    %c0_i32_0 = arith.constant 0 : i32
    %c0_i32_1 = arith.constant 0 : i32
    return %c0_i32, %c0_i32_0 : i32, i32
  }
  func.func @transform_3(%arg0: i32) -> (i32, i32, i32) {
    %c0_i32 = arith.constant 0 : i32
    %c0_i32_0 = arith.constant 0 : i32
    %c0_i32_1 = arith.constant 0 : i32
    %c0_i32_2 = arith.constant 0 : i32
    return %c0_i32, %c0_i32_0, %c0_i32_1 : i32, i32, i32
  }
  func.func @transform_4(%arg0: i32) -> (i32, i32) {
    %c0_i32 = arith.constant 0 : i32
    %c0_i32_0 = arith.constant 0 : i32
    %c0_i32_1 = arith.constant 0 : i32
    return %c0_i32, %c0_i32_0 : i32, i32
  }
  func.func @transform_5(%arg0: i32) -> (i32, i32, i32) {
    %c0_i32 = arith.constant 0 : i32
    %c0_i32_0 = arith.constant 0 : i32
    %c0_i32_1 = arith.constant 0 : i32
    return %arg0, %c0_i32, %c0_i32_0 : i32, i32, i32
  }
  func.func @transform_6(%arg0: i32) -> (i32, i32, i32) {
    %c0_i32 = arith.constant 0 : i32
    %c0_i32_0 = arith.constant 0 : i32
    %c0_i32_1 = arith.constant 0 : i32
    return %arg0, %c0_i32, %c0_i32_0 : i32, i32, i32
  }
  func.func @transform_7(%arg0: i32) -> (i32, i32, i32) {
    %c0_i32 = arith.constant 0 : i32
    %c0_i32_0 = arith.constant 0 : i32
    %c0_i32_1 = arith.constant 0 : i32
    return %arg0, %c0_i32, %c0_i32_0 : i32, i32, i32
  }
}

module attributes {stable_mosaic.version = 11 : i64} {
  func.func @_stats3_sc_kernel(%arg0: i32, %arg1: memref<128x128xbf16, #tpu.memory_space<vmem>>, %arg2: memref<128x128xbf16, #tpu.memory_space<vmem>>, %arg3: memref<128x128xbf16, #tpu.memory_space<vmem>>, %arg4: memref<128x128xbf16, #tpu.memory_space<vmem>>, %arg5: memref<1x128xf32, #tpu.memory_space<vmem>>, %arg6: memref<1x128xf32, #tpu.memory_space<vmem>>, %arg7: memref<1x1x128xf32, #tpu.memory_space<vmem>>, %arg8: memref<1x1x128xf32, #tpu.memory_space<vmem>>, %arg9: memref<1x1x128xf32, #tpu.memory_space<vmem>>, %arg10: memref<1x1x128xf32, #tpu.memory_space<vmem>>) attributes {dimension_semantics = [#tpu.dimension_semantics<parallel>], iteration_bounds = array<i64: 1>, scalar_prefetch = 0 : i64, scratch_operands = 0 : i64, tpu.core_type = #tpu.core_type<tc>, window_params = [{transform_indices = @transform_0, window_bounds = array<i64: 128, 128>}, {transform_indices = @transform_1, window_bounds = array<i64: 128, 128>}, {pipeline_mode = #tpu.pipeline_mode<synchronous>, transform_indices = @transform_2, window_bounds = array<i64: 128, 128>}, {pipeline_mode = #tpu.pipeline_mode<synchronous>, transform_indices = @transform_3, window_bounds = array<i64: 128, 128>}, {pipeline_mode = #tpu.pipeline_mode<synchronous>, transform_indices = @transform_4, window_bounds = array<i64: 1, 128>}, {pipeline_mode = #tpu.pipeline_mode<synchronous>, transform_indices = @transform_5, window_bounds = array<i64: 1, 128>}, {transform_indices = @transform_6, window_bounds = array<i64: 1, 1, 128>}, {transform_indices = @transform_7, window_bounds = array<i64: 1, 1, 128>}, {transform_indices = @transform_8, window_bounds = array<i64: 1, 1, 128>}, {transform_indices = @transform_9, window_bounds = array<i64: 1, 1, 128>}]} {
    %c0 = arith.constant 0 : index
    %c0_0 = arith.constant 0 : index
    %0 = vector.load %arg1[%c0, %c0_0] : memref<128x128xbf16, #tpu.memory_space<vmem>>, vector<128x128xbf16>
    %1 = arith.extf %0 : vector<128x128xbf16> to vector<128x128xf32>
    %c0_1 = arith.constant 0 : index
    %c0_2 = arith.constant 0 : index
    %2 = vector.load %arg5[%c0_1, %c0_2] : memref<1x128xf32, #tpu.memory_space<vmem>>, vector<1x128xf32>
    %3 = vector.broadcast %2 : vector<1x128xf32> to vector<128x128xf32>
    %4 = arith.mulf %1, %3 : vector<128x128xf32>
    %c0_3 = arith.constant 0 : index
    %c0_4 = arith.constant 0 : index
    %5 = vector.load %arg6[%c0_3, %c0_4] : memref<1x128xf32, #tpu.memory_space<vmem>>, vector<1x128xf32>
    %6 = vector.broadcast %5 : vector<1x128xf32> to vector<128x128xf32>
    %7 = arith.addf %4, %6 : vector<128x128xf32>
    %cst = arith.constant 0.000000e+00 : f32
    %8 = vector.broadcast %cst : f32 to vector<128x128xf32>
    %9 = arith.maximumf %7, %8 : vector<128x128xf32>
    %10 = arith.truncf %9 : vector<128x128xf32> to vector<128x128xbf16>
    %c0_5 = arith.constant 0 : index
    %c0_6 = arith.constant 0 : index
    %11 = vector.load %arg3[%c0_5, %c0_6] : memref<128x128xbf16, #tpu.memory_space<vmem>>, vector<128x128xbf16>
    %cst_7 = arith.constant dense<0.000000e+00> : vector<128x128xf32>
    %12 = tpu.matmul %10, %11, %cst_7 {dimension_numbers = #tpu.dot_dimension_numbers<[1], [0], [0], [1], [0, 0, 1, 1], [], []>} : vector<128x128xbf16>, vector<128x128xbf16>, vector<128x128xf32> -> vector<128x128xf32>
    %cst_8 = arith.constant dense<0.000000e+00> : vector<128xf32>
    %13 = vector.multi_reduction <add>, %12, %cst_8 [0] : vector<128x128xf32> to vector<128xf32>
    %14 = vector.shape_cast %13 : vector<128xf32> to vector<1x128xf32>
    %c0_9 = arith.constant 0 : index
    %c0_10 = arith.constant 0 : index
    %c0_11 = arith.constant 0 : index
    %15 = vector.load %arg7[%c0_9, %c0_10, %c0_11] : memref<1x1x128xf32, #tpu.memory_space<vmem>>, vector<1x1x128xf32>
    %16 = vector.shape_cast %15 : vector<1x1x128xf32> to vector<1x128xf32>
    %17 = vector.shape_cast %14 : vector<1x128xf32> to vector<1x1x128xf32>
    tpu.vector_store %arg7[%c0_9, %c0_10, %c0_11], %17 {strides = array<i32>} : memref<1x1x128xf32, #tpu.memory_space<vmem>>, vector<1x1x128xf32>,
    %18 = arith.mulf %12, %12 : vector<128x128xf32>
    %cst_12 = arith.constant dense<0.000000e+00> : vector<128xf32>
    %19 = vector.multi_reduction <add>, %18, %cst_12 [0] : vector<128x128xf32> to vector<128xf32>
    %20 = vector.shape_cast %19 : vector<128xf32> to vector<1x128xf32>
    %c0_13 = arith.constant 0 : index
    %c0_14 = arith.constant 0 : index
    %c0_15 = arith.constant 0 : index
    %21 = vector.load %arg8[%c0_13, %c0_14, %c0_15] : memref<1x1x128xf32, #tpu.memory_space<vmem>>, vector<1x1x128xf32>
    %22 = vector.shape_cast %21 : vector<1x1x128xf32> to vector<1x128xf32>
    %23 = vector.shape_cast %20 : vector<1x128xf32> to vector<1x1x128xf32>
    tpu.vector_store %arg8[%c0_13, %c0_14, %c0_15], %23 {strides = array<i32>} : memref<1x1x128xf32, #tpu.memory_space<vmem>>, vector<1x1x128xf32>,
    %c0_16 = arith.constant 0 : index
    %c0_17 = arith.constant 0 : index
    %24 = vector.load %arg2[%c0_16, %c0_17] : memref<128x128xbf16, #tpu.memory_space<vmem>>, vector<128x128xbf16>
    %c0_18 = arith.constant 0 : index
    %c0_19 = arith.constant 0 : index
    %25 = vector.load %arg4[%c0_18, %c0_19] : memref<128x128xbf16, #tpu.memory_space<vmem>>, vector<128x128xbf16>
    %cst_20 = arith.constant dense<0.000000e+00> : vector<128x128xf32>
    %26 = tpu.matmul %24, %25, %cst_20 {dimension_numbers = #tpu.dot_dimension_numbers<[1], [0], [0], [1], [0, 0, 1, 1], [], []>} : vector<128x128xbf16>, vector<128x128xbf16>, vector<128x128xf32> -> vector<128x128xf32>
    %cst_21 = arith.constant dense<0.000000e+00> : vector<128xf32>
    %27 = vector.multi_reduction <add>, %26, %cst_21 [0] : vector<128x128xf32> to vector<128xf32>
    %28 = vector.shape_cast %27 : vector<128xf32> to vector<1x128xf32>
    %c0_22 = arith.constant 0 : index
    %c0_23 = arith.constant 0 : index
    %c0_24 = arith.constant 0 : index
    %29 = vector.load %arg9[%c0_22, %c0_23, %c0_24] : memref<1x1x128xf32, #tpu.memory_space<vmem>>, vector<1x1x128xf32>
    %30 = vector.shape_cast %29 : vector<1x1x128xf32> to vector<1x128xf32>
    %31 = vector.shape_cast %28 : vector<1x128xf32> to vector<1x1x128xf32>
    tpu.vector_store %arg9[%c0_22, %c0_23, %c0_24], %31 {strides = array<i32>} : memref<1x1x128xf32, #tpu.memory_space<vmem>>, vector<1x1x128xf32>,
    %32 = arith.mulf %26, %26 : vector<128x128xf32>
    %cst_25 = arith.constant dense<0.000000e+00> : vector<128xf32>
    %33 = vector.multi_reduction <add>, %32, %cst_25 [0] : vector<128x128xf32> to vector<128xf32>
    %34 = vector.shape_cast %33 : vector<128xf32> to vector<1x128xf32>
    %c0_26 = arith.constant 0 : index
    %c0_27 = arith.constant 0 : index
    %c0_28 = arith.constant 0 : index
    %35 = vector.load %arg10[%c0_26, %c0_27, %c0_28] : memref<1x1x128xf32, #tpu.memory_space<vmem>>, vector<1x1x128xf32>
    %36 = vector.shape_cast %35 : vector<1x1x128xf32> to vector<1x128xf32>
    %37 = vector.shape_cast %34 : vector<1x128xf32> to vector<1x1x128xf32>
    tpu.vector_store %arg10[%c0_26, %c0_27, %c0_28], %37 {strides = array<i32>} : memref<1x1x128xf32, #tpu.memory_space<vmem>>, vector<1x1x128xf32>,
    return
  }
  func.func @transform_0(%arg0: i32) -> (i32, i32) {
    %c0_i32 = arith.constant 0 : i32
    %c0_i32_0 = arith.constant 0 : i32
    return %arg0, %c0_i32 : i32, i32
  }
  func.func @transform_1(%arg0: i32) -> (i32, i32) {
    %c0_i32 = arith.constant 0 : i32
    %c0_i32_0 = arith.constant 0 : i32
    return %arg0, %c0_i32 : i32, i32
  }
  func.func @transform_2(%arg0: i32) -> (i32, i32) {
    %c0_i32 = arith.constant 0 : i32
    %c0_i32_0 = arith.constant 0 : i32
    %c0_i32_1 = arith.constant 0 : i32
    return %c0_i32, %c0_i32_0 : i32, i32
  }
  func.func @transform_3(%arg0: i32) -> (i32, i32) {
    %c0_i32 = arith.constant 0 : i32
    %c0_i32_0 = arith.constant 0 : i32
    %c0_i32_1 = arith.constant 0 : i32
    return %c0_i32, %c0_i32_0 : i32, i32
  }
  func.func @transform_4(%arg0: i32) -> (i32, i32) {
    %c0_i32 = arith.constant 0 : i32
    %c0_i32_0 = arith.constant 0 : i32
    %c0_i32_1 = arith.constant 0 : i32
    return %c0_i32, %c0_i32_0 : i32, i32
  }
  func.func @transform_5(%arg0: i32) -> (i32, i32) {
    %c0_i32 = arith.constant 0 : i32
    %c0_i32_0 = arith.constant 0 : i32
    %c0_i32_1 = arith.constant 0 : i32
    return %c0_i32, %c0_i32_0 : i32, i32
  }
  func.func @transform_6(%arg0: i32) -> (i32, i32, i32) {
    %c0_i32 = arith.constant 0 : i32
    %c0_i32_0 = arith.constant 0 : i32
    %c0_i32_1 = arith.constant 0 : i32
    return %arg0, %c0_i32, %c0_i32_0 : i32, i32, i32
  }
  func.func @transform_7(%arg0: i32) -> (i32, i32, i32) {
    %c0_i32 = arith.constant 0 : i32
    %c0_i32_0 = arith.constant 0 : i32
    %c0_i32_1 = arith.constant 0 : i32
    return %arg0, %c0_i32, %c0_i32_0 : i32, i32, i32
  }
  func.func @transform_8(%arg0: i32) -> (i32, i32, i32) {
    %c0_i32 = arith.constant 0 : i32
    %c0_i32_0 = arith.constant 0 : i32
    %c0_i32_1 = arith.constant 0 : i32
    return %arg0, %c0_i32, %c0_i32_0 : i32, i32, i32
  }
  func.func @transform_9(%arg0: i32) -> (i32, i32, i32) {
    %c0_i32 = arith.constant 0 : i32
    %c0_i32_0 = arith.constant 0 : i32
    %c0_i32_1 = arith.constant 0 : i32
    return %arg0, %c0_i32, %c0_i32_0 : i32, i32, i32
  }
}

module attributes {stable_mosaic.version = 11 : i64} {
  func.func @_final_sc_kernel(%arg0: i32, %arg1: memref<128x128xbf16, #tpu.memory_space<vmem>>, %arg2: memref<128x128xbf16, #tpu.memory_space<vmem>>, %arg3: memref<128x128xbf16, #tpu.memory_space<vmem>>, %arg4: memref<128x128xbf16, #tpu.memory_space<vmem>>, %arg5: memref<1x128xf32, #tpu.memory_space<vmem>>, %arg6: memref<1x128xf32, #tpu.memory_space<vmem>>, %arg7: memref<1x128xf32, #tpu.memory_space<vmem>>, %arg8: memref<1x128xf32, #tpu.memory_space<vmem>>, %arg9: memref<1x128xf32, #tpu.memory_space<vmem>>, %arg10: memref<1x128xf32, #tpu.memory_space<vmem>>, %arg11: memref<128x128xf32, #tpu.memory_space<vmem>>) attributes {dimension_semantics = [#tpu.dimension_semantics<parallel>], iteration_bounds = array<i64: 1>, scalar_prefetch = 0 : i64, scratch_operands = 0 : i64, tpu.core_type = #tpu.core_type<tc>, window_params = [{transform_indices = @transform_0, window_bounds = array<i64: 128, 128>}, {transform_indices = @transform_1, window_bounds = array<i64: 128, 128>}, {pipeline_mode = #tpu.pipeline_mode<synchronous>, transform_indices = @transform_2, window_bounds = array<i64: 128, 128>}, {pipeline_mode = #tpu.pipeline_mode<synchronous>, transform_indices = @transform_3, window_bounds = array<i64: 128, 128>}, {pipeline_mode = #tpu.pipeline_mode<synchronous>, transform_indices = @transform_4, window_bounds = array<i64: 1, 128>}, {pipeline_mode = #tpu.pipeline_mode<synchronous>, transform_indices = @transform_5, window_bounds = array<i64: 1, 128>}, {pipeline_mode = #tpu.pipeline_mode<synchronous>, transform_indices = @transform_6, window_bounds = array<i64: 1, 128>}, {pipeline_mode = #tpu.pipeline_mode<synchronous>, transform_indices = @transform_7, window_bounds = array<i64: 1, 128>}, {pipeline_mode = #tpu.pipeline_mode<synchronous>, transform_indices = @transform_8, window_bounds = array<i64: 1, 128>}, {pipeline_mode = #tpu.pipeline_mode<synchronous>, transform_indices = @transform_9, window_bounds = array<i64: 1, 128>}, {transform_indices = @transform_10, window_bounds = array<i64: 128, 128>}]} {
    %c0 = arith.constant 0 : index
    %c0_0 = arith.constant 0 : index
    %0 = vector.load %arg1[%c0, %c0_0] : memref<128x128xbf16, #tpu.memory_space<vmem>>, vector<128x128xbf16>
    %1 = arith.extf %0 : vector<128x128xbf16> to vector<128x128xf32>
    %c0_1 = arith.constant 0 : index
    %c0_2 = arith.constant 0 : index
    %2 = vector.load %arg5[%c0_1, %c0_2] : memref<1x128xf32, #tpu.memory_space<vmem>>, vector<1x128xf32>
    %3 = vector.broadcast %2 : vector<1x128xf32> to vector<128x128xf32>
    %4 = arith.mulf %1, %3 : vector<128x128xf32>
    %c0_3 = arith.constant 0 : index
    %c0_4 = arith.constant 0 : index
    %5 = vector.load %arg6[%c0_3, %c0_4] : memref<1x128xf32, #tpu.memory_space<vmem>>, vector<1x128xf32>
    %6 = vector.broadcast %5 : vector<1x128xf32> to vector<128x128xf32>
    %7 = arith.addf %4, %6 : vector<128x128xf32>
    %cst = arith.constant 0.000000e+00 : f32
    %8 = vector.broadcast %cst : f32 to vector<128x128xf32>
    %9 = arith.maximumf %7, %8 : vector<128x128xf32>
    %10 = arith.truncf %9 : vector<128x128xf32> to vector<128x128xbf16>
    %c0_5 = arith.constant 0 : index
    %c0_6 = arith.constant 0 : index
    %11 = vector.load %arg3[%c0_5, %c0_6] : memref<128x128xbf16, #tpu.memory_space<vmem>>, vector<128x128xbf16>
    %cst_7 = arith.constant dense<0.000000e+00> : vector<128x128xf32>
    %12 = tpu.matmul %10, %11, %cst_7 {dimension_numbers = #tpu.dot_dimension_numbers<[1], [0], [0], [1], [0, 0, 1, 1], [], []>} : vector<128x128xbf16>, vector<128x128xbf16>, vector<128x128xf32> -> vector<128x128xf32>
    %c0_8 = arith.constant 0 : index
    %c0_9 = arith.constant 0 : index
    %13 = vector.load %arg2[%c0_8, %c0_9] : memref<128x128xbf16, #tpu.memory_space<vmem>>, vector<128x128xbf16>
    %c0_10 = arith.constant 0 : index
    %c0_11 = arith.constant 0 : index
    %14 = vector.load %arg4[%c0_10, %c0_11] : memref<128x128xbf16, #tpu.memory_space<vmem>>, vector<128x128xbf16>
    %cst_12 = arith.constant dense<0.000000e+00> : vector<128x128xf32>
    %15 = tpu.matmul %13, %14, %cst_12 {dimension_numbers = #tpu.dot_dimension_numbers<[1], [0], [0], [1], [0, 0, 1, 1], [], []>} : vector<128x128xbf16>, vector<128x128xbf16>, vector<128x128xf32> -> vector<128x128xf32>
    %c0_13 = arith.constant 0 : index
    %c0_14 = arith.constant 0 : index
    %16 = vector.load %arg7[%c0_13, %c0_14] : memref<1x128xf32, #tpu.memory_space<vmem>>, vector<1x128xf32>
    %17 = vector.broadcast %16 : vector<1x128xf32> to vector<128x128xf32>
    %18 = arith.mulf %12, %17 : vector<128x128xf32>
    %c0_15 = arith.constant 0 : index
    %c0_16 = arith.constant 0 : index
    %19 = vector.load %arg8[%c0_15, %c0_16] : memref<1x128xf32, #tpu.memory_space<vmem>>, vector<1x128xf32>
    %20 = vector.broadcast %19 : vector<1x128xf32> to vector<128x128xf32>
    %21 = arith.addf %18, %20 : vector<128x128xf32>
    %c0_17 = arith.constant 0 : index
    %c0_18 = arith.constant 0 : index
    %22 = vector.load %arg9[%c0_17, %c0_18] : memref<1x128xf32, #tpu.memory_space<vmem>>, vector<1x128xf32>
    %23 = vector.broadcast %22 : vector<1x128xf32> to vector<128x128xf32>
    %24 = arith.mulf %15, %23 : vector<128x128xf32>
    %25 = arith.addf %21, %24 : vector<128x128xf32>
    %c0_19 = arith.constant 0 : index
    %c0_20 = arith.constant 0 : index
    %26 = vector.load %arg10[%c0_19, %c0_20] : memref<1x128xf32, #tpu.memory_space<vmem>>, vector<1x128xf32>
    %27 = vector.broadcast %26 : vector<1x128xf32> to vector<128x128xf32>
    %28 = arith.addf %25, %27 : vector<128x128xf32>
    %cst_21 = arith.constant 0.000000e+00 : f32
    %29 = vector.broadcast %cst_21 : f32 to vector<128x128xf32>
    %30 = arith.maximumf %28, %29 : vector<128x128xf32>
    %c0_22 = arith.constant 0 : index
    %c0_23 = arith.constant 0 : index
    %31 = vector.load %arg11[%c0_22, %c0_23] : memref<128x128xf32, #tpu.memory_space<vmem>>, vector<128x128xf32>
    tpu.vector_store %arg11[%c0_22, %c0_23], %30 {strides = array<i32>} : memref<128x128xf32, #tpu.memory_space<vmem>>, vector<128x128xf32>,
    return
  }
  func.func @transform_0(%arg0: i32) -> (i32, i32) {
    %c0_i32 = arith.constant 0 : i32
    %c0_i32_0 = arith.constant 0 : i32
    return %arg0, %c0_i32 : i32, i32
  }
  func.func @transform_1(%arg0: i32) -> (i32, i32) {
    %c0_i32 = arith.constant 0 : i32
    %c0_i32_0 = arith.constant 0 : i32
    return %arg0, %c0_i32 : i32, i32
  }
  func.func @transform_2(%arg0: i32) -> (i32, i32) {
    %c0_i32 = arith.constant 0 : i32
    %c0_i32_0 = arith.constant 0 : i32
    %c0_i32_1 = arith.constant 0 : i32
    return %c0_i32, %c0_i32_0 : i32, i32
  }
  func.func @transform_3(%arg0: i32) -> (i32, i32) {
    %c0_i32 = arith.constant 0 : i32
    %c0_i32_0 = arith.constant 0 : i32
    %c0_i32_1 = arith.constant 0 : i32
    return %c0_i32, %c0_i32_0 : i32, i32
  }
  func.func @transform_4(%arg0: i32) -> (i32, i32) {
    %c0_i32 = arith.constant 0 : i32
    %c0_i32_0 = arith.constant 0 : i32
    %c0_i32_1 = arith.constant 0 : i32
    return %c0_i32, %c0_i32_0 : i32, i32
  }
  func.func @transform_5(%arg0: i32) -> (i32, i32) {
    %c0_i32 = arith.constant 0 : i32
    %c0_i32_0 = arith.constant 0 : i32
    %c0_i32_1 = arith.constant 0 : i32
    return %c0_i32, %c0_i32_0 : i32, i32
  }
  func.func @transform_6(%arg0: i32) -> (i32, i32) {
    %c0_i32 = arith.constant 0 : i32
    %c0_i32_0 = arith.constant 0 : i32
    %c0_i32_1 = arith.constant 0 : i32
    return %c0_i32, %c0_i32_0 : i32, i32
  }
  func.func @transform_7(%arg0: i32) -> (i32, i32) {
    %c0_i32 = arith.constant 0 : i32
    %c0_i32_0 = arith.constant 0 : i32
    %c0_i32_1 = arith.constant 0 : i32
    return %c0_i32, %c0_i32_0 : i32, i32
  }
  func.func @transform_8(%arg0: i32) -> (i32, i32) {
    %c0_i32 = arith.constant 0 : i32
    %c0_i32_0 = arith.constant 0 : i32
    %c0_i32_1 = arith.constant 0 : i32
    return %c0_i32, %c0_i32_0 : i32, i32
  }
  func.func @transform_9(%arg0: i32) -> (i32, i32) {
    %c0_i32 = arith.constant 0 : i32
    %c0_i32_0 = arith.constant 0 : i32
    %c0_i32_1 = arith.constant 0 : i32
    return %c0_i32, %c0_i32_0 : i32, i32
  }
  func.func @transform_10(%arg0: i32) -> (i32, i32) {
    %c0_i32 = arith.constant 0 : i32
    %c0_i32_0 = arith.constant 0 : i32
    return %arg0, %c0_i32 : i32, i32
  }
}

</mosaic_0001>

<llo_original>
// kernel: block_forward.4
$region0: #{block_forward.4}
  #allocation0 [shape = 'u32[]', space=smem, size = 0x4, offset = 0x4, fixed_abs, tag = 'smem constant byte address 0x4 - core index']
  #allocation1 [shape = 'u32[144,128]{1,0:T(1,128)}', space=vmem, size = 0x12000, scoped, tag = 'internal scratch']
  %s0 = inlined_call_operand.vmem [shape: bf16[512,128], index: 0, kind: input, shape index: {}]
  %s1 = inlined_call_operand.vmem [shape: bf16[128,128], index: 1, kind: input, shape index: {}]
  %s2 = inlined_call_operand.vmem [shape: bf16[512,128], index: 2, kind: output, shape index: {0}]
  %s3 = inlined_call_operand.vmem [shape: f32[1,1,128], index: 3, kind: output, shape index: {1}]
  %s4 = inlined_call_operand.vmem [shape: f32[1,1,128], index: 4, kind: output, shape index: {2}]
  %5 = xla_tuple %s2, %s3, %s4
  %s6 = sld [smem:[#allocation0]]
  $region34: #{block_forward.4} parent=0
    _
  %s8 = ssub.s32 1, %s6
  %s9 = scalar_select 0, %s8, %s6
  // Predicated region
  $region2: #{block_forward.4} parent=0 // pred_check
    _
  $region3: #{block_forward.4} parent=0 // pred_check_branch
    %11 = sbr.rel (0) target = $region5
  $region4: #{block_forward.4} parent=0 // pred_region
    _
  $region5: #{block_forward.4} parent=0 // pred_fallthru
    _
  // Predicated region
  $region6: #{block_forward.4} parent=0 // pred_check
    _
  $region7: #{block_forward.4} parent=0 // pred_check_branch
    %13 = sbr.rel (0) target = $region9
  $region8: #{block_forward.4} parent=0 // pred_region
    _
  $region9: #{block_forward.4} parent=0 // pred_fallthru
    _
  %v15 = vld [vmem:[%s0] sm:$0xf]
  %v16 = vld [vmem:[%s0 + $0x4] sm:$0xf]
  %v17 = vld [vmem:[%s0 + $0x8] sm:$0xf]
  %v18 = vld [vmem:[%s0 + $0xc] sm:$0xf]
  %v19 = vld [vmem:[%s0 + $0x10] sm:$0xf]
  %v20 = vld [vmem:[%s0 + $0x14] sm:$0xf]
  %v21 = vld [vmem:[%s0 + $0x18] sm:$0xf]
  %v22 = vld [vmem:[%s0 + $0x1c] sm:$0xf]
  %v23 = vld [vmem:[%s0 + $0x20] sm:$0xf]
  %v24 = vld [vmem:[%s0 + $0x24] sm:$0xf]
  %v25 = vld [vmem:[%s0 + $0x28] sm:$0xf]
  %v26 = vld [vmem:[%s0 + $0x2c] sm:$0xf]
  %v27 = vld [vmem:[%s0 + $0x30] sm:$0xf]
  %v28 = vld [vmem:[%s0 + $0x34] sm:$0xf]
  %v29 = vld [vmem:[%s0 + $0x38] sm:$0xf]
  %v30 = vld [vmem:[%s0 + $0x3c] sm:$0xf]
  %v31 = vld [vmem:[%s0 + $0x40] sm:$0xf]
  %v32 = vld [vmem:[%s0 + $0x44] sm:$0xf]
  %v33 = vld [vmem:[%s0 + $0x48] sm:$0xf]
  %v34 = vld [vmem:[%s0 + $0x4c] sm:$0xf]
  %v35 = vld [vmem:[%s0 + $0x50] sm:$0xf]
  %v36 = vld [vmem:[%s0 + $0x54] sm:$0xf]
  %v37 = vld [vmem:[%s0 + $0x58] sm:$0xf]
  %v38 = vld [vmem:[%s0 + $0x5c] sm:$0xf]
  %v39 = vld [vmem:[%s0 + $0x60] sm:$0xf]
  %v40 = vld [vmem:[%s0 + $0x64] sm:$0xf]
  %v41 = vld [vmem:[%s0 + $0x68] sm:$0xf]
  %v42 = vld [vmem:[%s0 + $0x6c] sm:$0xf]
  %v43 = vld [vmem:[%s0 + $0x70] sm:$0xf]
  %v44 = vld [vmem:[%s0 + $0x74] sm:$0xf]
  %v45 = vld [vmem:[%s0 + $0x78] sm:$0xf]
  %v46 = vld [vmem:[%s0 + $0x7c] sm:$0xf]
  %v47 = vld [vmem:[%s0 + $0x80] sm:$0xf]
  %v48 = vld [vmem:[%s0 + $0x84] sm:$0xf]
  %v49 = vld [vmem:[%s0 + $0x88] sm:$0xf]
  %v50 = vld [vmem:[%s0 + $0x8c] sm:$0xf]
  %v51 = vld [vmem:[%s0 + $0x90] sm:$0xf]
  %v52 = vld [vmem:[%s0 + $0x94] sm:$0xf]
  %v53 = vld [vmem:[%s0 + $0x98] sm:$0xf]
  %v54 = vld [vmem:[%s0 + $0x9c] sm:$0xf]
  %v55 = vld [vmem:[%s0 + $0xa0] sm:$0xf]
  %v56 = vld [vmem:[%s0 + $0xa4] sm:$0xf]
  %v57 = vld [vmem:[%s0 + $0xa8] sm:$0xf]
  %v58 = vld [vmem:[%s0 + $0xac] sm:$0xf]
  %v59 = vld [vmem:[%s0 + $0xb0] sm:$0xf]
  %v60 = vld [vmem:[%s0 + $0xb4] sm:$0xf]
  %v61 = vld [vmem:[%s0 + $0xb8] sm:$0xf]
  %v62 = vld [vmem:[%s0 + $0xbc] sm:$0xf]
  %v63 = vld [vmem:[%s0 + $0xc0] sm:$0xf]
  %v64 = vld [vmem:[%s0 + $0xc4] sm:$0xf]
  %v65 = vld [vmem:[%s0 + $0xc8] sm:$0xf]
  %v66 = vld [vmem:[%s0 + $0xcc] sm:$0xf]
  %v67 = vld [vmem:[%s0 + $0xd0] sm:$0xf]
  %v68 = vld [vmem:[%s0 + $0xd4] sm:$0xf]
  %v69 = vld [vmem:[%s0 + $0xd8] sm:$0xf]
  %v70 = vld [vmem:[%s0 + $0xdc] sm:$0xf]
  %v71 = vld [vmem:[%s0 + $0xe0] sm:$0xf]
  %v72 = vld [vmem:[%s0 + $0xe4] sm:$0xf]
  %v73 = vld [vmem:[%s0 + $0xe8] sm:$0xf]
  %v74 = vld [vmem:[%s0 + $0xec] sm:$0xf]
  %v75 = vld [vmem:[%s0 + $0xf0] sm:$0xf]
  %v76 = vld [vmem:[%s0 + $0xf4] sm:$0xf]
  %v77 = vld [vmem:[%s0 + $0xf8] sm:$0xf]
  %v78 = vld [vmem:[%s0 + $0xfc] sm:$0xf]
  %v79 = vld [vmem:[%s1] sm:$0xf]
  %v80 = vld [vmem:[%s1 + $0x4] sm:$0xf]
  %v81 = vld [vmem:[%s1 + $0x8] sm:$0xf]
  %v82 = vld [vmem:[%s1 + $0xc] sm:$0xf]
  %v83 = vld [vmem:[%s1 + $0x10] sm:$0xf]
  %v84 = vld [vmem:[%s1 + $0x14] sm:$0xf]
  %v85 = vld [vmem:[%s1 + $0x18] sm:$0xf]
  %v86 = vld [vmem:[%s1 + $0x1c] sm:$0xf]
  %v87 = vld [vmem:[%s1 + $0x20] sm:$0xf]
  %v88 = vld [vmem:[%s1 + $0x24] sm:$0xf]
  %v89 = vld [vmem:[%s1 + $0x28] sm:$0xf]
  %v90 = vld [vmem:[%s1 + $0x2c] sm:$0xf]
  %v91 = vld [vmem:[%s1 + $0x30] sm:$0xf]
  %v92 = vld [vmem:[%s1 + $0x34] sm:$0xf]
  %v93 = vld [vmem:[%s1 + $0x38] sm:$0xf]
  %v94 = vld [vmem:[%s1 + $0x3c] sm:$0xf]
  %v159 = vunpack.c.l.b16 %v15
  %v160 = vunpack.c.l.b16 %v16
  %v161 = vunpack.c.l.b16 %v17
  %v162 = vunpack.c.l.b16 %v18
  %v163 = vunpack.c.l.b16 %v19
  %v164 = vunpack.c.l.b16 %v20
  %v165 = vunpack.c.l.b16 %v21
  %v166 = vunpack.c.l.b16 %v22
  %v167 = vunpack.c.l.b16 %v23
  %v168 = vunpack.c.l.b16 %v24
  %v169 = vunpack.c.l.b16 %v25
  %v170 = vunpack.c.l.b16 %v26
  %v171 = vunpack.c.l.b16 %v27
  %v172 = vunpack.c.l.b16 %v28
  %v173 = vunpack.c.l.b16 %v29
  %v174 = vunpack.c.l.b16 %v30
  %v175 = vunpack.c.l.b16 %v31
  %v176 = vunpack.c.l.b16 %v32
  %v177 = vunpack.c.l.b16 %v33
  %v178 = vunpack.c.l.b16 %v34
  %v179 = vunpack.c.l.b16 %v35
  %v180 = vunpack.c.l.b16 %v36
  %v181 = vunpack.c.l.b16 %v37
  %v182 = vunpack.c.l.b16 %v38
  %v183 = vunpack.c.l.b16 %v39
  %v184 = vunpack.c.l.b16 %v40
  %v185 = vunpack.c.l.b16 %v41
  %v186 = vunpack.c.l.b16 %v42
  %v187 = vunpack.c.l.b16 %v43
  %v188 = vunpack.c.l.b16 %v44
  %v189 = vunpack.c.l.b16 %v45
  %v190 = vunpack.c.l.b16 %v46
  %v191 = vunpack.c.l.b16 %v47
  %v192 = vunpack.c.l.b16 %v48
  %v193 = vunpack.c.l.b16 %v49
  %v194 = vunpack.c.l.b16 %v50
  %v195 = vunpack.c.l.b16 %v51
  %v196 = vunpack.c.l.b16 %v52
  %v197 = vunpack.c.l.b16 %v53
  %v198 = vunpack.c.l.b16 %v54
  %v199 = vunpack.c.l.b16 %v55
  %v200 = vunpack.c.l.b16 %v56
  %v201 = vunpack.c.l.b16 %v57
  %v202 = vunpack.c.l.b16 %v58
  %v203 = vunpack.c.l.b16 %v59
  %v204 = vunpack.c.l.b16 %v60
  %v205 = vunpack.c.l.b16 %v61
  %v206 = vunpack.c.l.b16 %v62
  %v207 = vunpack.c.l.b16 %v63
  %v208 = vunpack.c.l.b16 %v64
  %v209 = vunpack.c.l.b16 %v65
  %v210 = vunpack.c.l.b16 %v66
  %v211 = vunpack.c.l.b16 %v67
  %v212 = vunpack.c.l.b16 %v68
  %v213 = vunpack.c.l.b16 %v69
  %v214 = vunpack.c.l.b16 %v70
  %v215 = vunpack.c.l.b16 %v71
  %v216 = vunpack.c.l.b16 %v72
  %v217 = vunpack.c.l.b16 %v73
  %v218 = vunpack.c.l.b16 %v74
  %v219 = vunpack.c.l.b16 %v75
  %v220 = vunpack.c.l.b16 %v76
  %v221 = vunpack.c.l.b16 %v77
  %v222 = vunpack.c.l.b16 %v78
  %v223 = vpack.c.b16 %v160, %v159
  %v224 = vpack.c.b16 %v162, %v161
  %v225 = vpack.c.b16 %v164, %v163
  %v226 = vpack.c.b16 %v166, %v165
  %v227 = vpack.c.b16 %v168, %v167
  %v228 = vpack.c.b16 %v170, %v169
  %v229 = vpack.c.b16 %v172, %v171
  %v230 = vpack.c.b16 %v174, %v173
  %v231 = vpack.c.b16 %v176, %v175
  %v232 = vpack.c.b16 %v178, %v177
  %v233 = vpack.c.b16 %v180, %v179
  %v234 = vpack.c.b16 %v182, %v181
  %v235 = vpack.c.b16 %v184, %v183
  %v236 = vpack.c.b16 %v186, %v185
  %v237 = vpack.c.b16 %v188, %v187
  %v238 = vpack.c.b16 %v190, %v189
  %v239 = vpack.c.b16 %v192, %v191
  %v240 = vpack.c.b16 %v194, %v193
  %v241 = vpack.c.b16 %v196, %v195
  %v242 = vpack.c.b16 %v198, %v197
  %v243 = vpack.c.b16 %v200, %v199
  %v244 = vpack.c.b16 %v202, %v201
  %v245 = vpack.c.b16 %v204, %v203
  %v246 = vpack.c.b16 %v206, %v205
  %v247 = vpack.c.b16 %v208, %v207
  %v248 = vpack.c.b16 %v210, %v209
  %v249 = vpack.c.b16 %v212, %v211
  %v250 = vpack.c.b16 %v214, %v213
  %v251 = vpack.c.b16 %v216, %v215
  %v252 = vpack.c.b16 %v218, %v217
  %v253 = vpack.c.b16 %v220, %v219
  %v254 = vpack.c.b16 %v222, %v221
  %v303 = vunpack.c.l.b16 %v79
  %v304 = vunpack.c.l.b16 %v80
  %v305 = vunpack.c.l.b16 %v81
  %v306 = vunpack.c.l.b16 %v82
  %v307 = vunpack.c.l.b16 %v83
  %v308 = vunpack.c.l.b16 %v84
  %v309 = vunpack.c.l.b16 %v85
  %v310 = vunpack.c.l.b16 %v86
  %v311 = vunpack.c.l.b16 %v87
  %v312 = vunpack.c.l.b16 %v88
  %v313 = vunpack.c.l.b16 %v89
  %v314 = vunpack.c.l.b16 %v90
  %v315 = vunpack.c.l.b16 %v91
  %v316 = vunpack.c.l.b16 %v92
  %v317 = vunpack.c.l.b16 %v93
  %v318 = vunpack.c.l.b16 %v94
  %v319 = vpack.c.b16 %v304, %v303
  %v320 = vpack.c.b16 %v306, %v305
  %v321 = vpack.c.b16 %v308, %v307
  %v322 = vpack.c.b16 %v310, %v309
  %v323 = vpack.c.b16 %v312, %v311
  %v324 = vpack.c.b16 %v314, %v313
  %v325 = vpack.c.b16 %v316, %v315
  %v326 = vpack.c.b16 %v318, %v317
  %335 = vmatprep.subr.bf16.mxu0 0
  %336 = vmatpush1.bf16.msra.mxu0 %v319
  %337 = vmatprep.subr.bf16.mxu0 0
  %338 = vmatpush1.bf16.msra.mxu0 %v320
  %339 = vmatprep.subr.bf16.mxu0 0
  %340 = vmatpush1.bf16.msra.mxu0 %v321
  %341 = vmatprep.subr.bf16.mxu0 0
  %342 = vmatpush1.bf16.msra.mxu0 %v322
  %343 = vmatprep.subr.bf16.mxu0 0
  %344 = vmatpush1.bf16.msra.mxu0 %v323
  %345 = vmatprep.subr.bf16.mxu0 0
  %346 = vmatpush1.bf16.msra.mxu0 %v324
  %347 = vmatprep.subr.bf16.mxu0 0
  %348 = vmatpush1.bf16.msra.mxu0 %v325
  %349 = vmatprep.subr.bf16.mxu0 0
  %350 = vmatpush1.bf16.msra.mxu0 %v326
  %351 = vmatprep.subr.bf16.mxu0 0
  %352 = vmatpush1.bf16.msra.mxu0 0
  %353 = vmatprep.subr.bf16.mxu0 0
  %354 = vmatpush1.bf16.msra.mxu0 0
  %355 = vmatprep.subr.bf16.mxu0 0
  %356 = vmatpush1.bf16.msra.mxu0 0
  %357 = vmatprep.subr.bf16.mxu0 0
  %358 = vmatpush1.bf16.msra.mxu0 0
  %359 = vmatprep.subr.bf16.mxu0 0
  %360 = vmatpush1.bf16.msra.mxu0 0
  %361 = vmatprep.subr.bf16.mxu0 0
  %362 = vmatpush1.bf16.msra.mxu0 0
  %363 = vmatprep.subr.bf16.mxu0 0
  %364 = vmatpush1.bf16.msra.mxu0 0
  %365 = vmatprep.subr.bf16.mxu0 0
  %366 = vmatpush1.bf16.msra.mxu0 0
  %367 = vmatprep.mubr.bf16.mxu0 0
  %368 = vmatmul.mubr.bf16.gmra.mrb[0].mxu0 %v223
  %v369 = vpop.f32.mrb[0].mxu0
  %v370 = vadd.f32 0.0, %v369
  %v371 = vpop.f32.mrb[0].mxu0
  %v372 = vpop.f32.mrb[0].mxu0
  %v373 = vadd.f32 0.0, %v372
  %v374 = vpop.f32.mrb[0].mxu0
  %375 = vmatprep.mubr.bf16.mxu0 0
  %376 = vmatmul.mubr.bf16.gmra.mrb[0].mxu0 %v224
  %v377 = vpop.f32.mrb[0].mxu0
  %v378 = vadd.f32 0.0, %v377
  %v379 = vpop.f32.mrb[0].mxu0
  %v380 = vpop.f32.mrb[0].mxu0
  %v381 = vadd.f32 0.0, %v380
  %v382 = vpop.f32.mrb[0].mxu0
  %383 = vmatprep.mubr.bf16.mxu0 0
  %384 = vmatmul.mubr.bf16.gmra.mrb[0].mxu0 %v225
  %v385 = vpop.f32.mrb[0].mxu0
  %v386 = vadd.f32 0.0, %v385
  %v387 = vpop.f32.mrb[0].mxu0
  %v388 = vpop.f32.mrb[0].mxu0
  %v389 = vadd.f32 0.0, %v388
  %v390 = vpop.f32.mrb[0].mxu0
  %391 = vmatprep.mubr.bf16.mxu0 0
  %392 = vmatmul.mubr.bf16.gmra.mrb[0].mxu0 %v226
  %v393 = vpop.f32.mrb[0].mxu0
  %v394 = vadd.f32 0.0, %v393
  %v395 = vpop.f32.mrb[0].mxu0
  %v396 = vpop.f32.mrb[0].mxu0
  %v397 = vadd.f32 0.0, %v396
  %v398 = vpop.f32.mrb[0].mxu0
  %399 = vmatprep.mubr.bf16.mxu0 0
  %400 = vmatmul.mubr.bf16.gmra.mrb[0].mxu0 %v227
  %v401 = vpop.f32.mrb[0].mxu0
  %v402 = vadd.f32 0.0, %v401
  %v403 = vpop.f32.mrb[0].mxu0
  %v404 = vpop.f32.mrb[0].mxu0
  %v405 = vadd.f32 0.0, %v404
  %v406 = vpop.f32.mrb[0].mxu0
  %407 = vmatprep.mubr.bf16.mxu0 0
  %408 = vmatmul.mubr.bf16.gmra.mrb[0].mxu0 %v228
  %v409 = vpop.f32.mrb[0].mxu0
  %v410 = vadd.f32 0.0, %v409
  %v411 = vpop.f32.mrb[0].mxu0
  %v412 = vpop.f32.mrb[0].mxu0
  %v413 = vadd.f32 0.0, %v412
  %v414 = vpop.f32.mrb[0].mxu0
  %415 = vmatprep.mubr.bf16.mxu0 0
  %416 = vmatmul.mubr.bf16.gmra.mrb[0].mxu0 %v229
  %v417 = vpop.f32.mrb[0].mxu0
  %v418 = vadd.f32 0.0, %v417
  %v419 = vpop.f32.mrb[0].mxu0
  %v420 = vpop.f32.mrb[0].mxu0
  %v421 = vadd.f32 0.0, %v420
  %v422 = vpop.f32.mrb[0].mxu0
  %423 = vmatprep.mubr.bf16.mxu0 0
  %424 = vmatmul.mubr.bf16.gmra.mrb[0].mxu0 %v230
  %v425 = vpop.f32.mrb[0].mxu0
  %v426 = vadd.f32 0.0, %v425
  %v427 = vpop.f32.mrb[0].mxu0
  %v428 = vpop.f32.mrb[0].mxu0
  %v429 = vadd.f32 0.0, %v428
  %v430 = vpop.f32.mrb[0].mxu0
  %431 = vmatprep.mubr.bf16.mxu0 0
  %432 = vmatmul.mubr.bf16.gmra.mrb[0].mxu0 %v231
  %v433 = vpop.f32.mrb[0].mxu0
  %v434 = vadd.f32 0.0, %v433
  %v435 = vpop.f32.mrb[0].mxu0
  %v436 = vpop.f32.mrb[0].mxu0
  %v437 = vadd.f32 0.0, %v436
  %v438 = vpop.f32.mrb[0].mxu0
  %439 = vmatprep.mubr.bf16.mxu0 0
  %440 = vmatmul.mubr.bf16.gmra.mrb[0].mxu0 %v232
  %v441 = vpop.f32.mrb[0].mxu0
  %v442 = vadd.f32 0.0, %v441
  %v443 = vpop.f32.mrb[0].mxu0
  %v444 = vpop.f32.mrb[0].mxu0
  %v445 = vadd.f32 0.0, %v444
  %v446 = vpop.f32.mrb[0].mxu0
  %447 = vmatprep.mubr.bf16.mxu0 0
  %448 = vmatmul.mubr.bf16.gmra.mrb[0].mxu0 %v233
  %v449 = vpop.f32.mrb[0].mxu0
  %v450 = vadd.f32 0.0, %v449
  %v451 = vpop.f32.mrb[0].mxu0
  %v452 = vpop.f32.mrb[0].mxu0
  %v453 = vadd.f32 0.0, %v452
  %v454 = vpop.f32.mrb[0].mxu0
  %455 = vmatprep.mubr.bf16.mxu0 0
  %456 = vmatmul.mubr.bf16.gmra.mrb[0].mxu0 %v234
  %v457 = vpop.f32.mrb[0].mxu0
  %v458 = vadd.f32 0.0, %v457
  %v459 = vpop.f32.mrb[0].mxu0
  %v460 = vpop.f32.mrb[0].mxu0
  %v461 = vadd.f32 0.0, %v460
  %v462 = vpop.f32.mrb[0].mxu0
  %463 = vmatprep.mubr.bf16.mxu0 0
  %464 = vmatmul.mubr.bf16.gmra.mrb[0].mxu0 %v235
  %v465 = vpop.f32.mrb[0].mxu0
  %v466 = vadd.f32 0.0, %v465
  %v467 = vpop.f32.mrb[0].mxu0
  %v468 = vpop.f32.mrb[0].mxu0
  %v469 = vadd.f32 0.0, %v468
  %v470 = vpop.f32.mrb[0].mxu0
  %471 = vmatprep.mubr.bf16.mxu0 0
  %472 = vmatmul.mubr.bf16.gmra.mrb[0].mxu0 %v236
  %v473 = vpop.f32.mrb[0].mxu0
  %v474 = vadd.f32 0.0, %v473
  %v475 = vpop.f32.mrb[0].mxu0
  %v476 = vpop.f32.mrb[0].mxu0
  %v477 = vadd.f32 0.0, %v476
  %v478 = vpop.f32.mrb[0].mxu0
  %479 = vmatprep.mubr.bf16.mxu0 0
  %480 = vmatmul.mubr.bf16.gmra.mrb[0].mxu0 %v237
  %v481 = vpop.f32.mrb[0].mxu0
  %v482 = vadd.f32 0.0, %v481
  %v483 = vpop.f32.mrb[0].mxu0
  %v484 = vpop.f32.mrb[0].mxu0
  %v485 = vadd.f32 0.0, %v484
  %v486 = vpop.f32.mrb[0].mxu0
  %487 = vmatprep.mubr.bf16.mxu0 0
  %488 = vmatmul.mubr.bf16.gmra.mrb[0].mxu0 %v238
  %v489 = vpop.f32.mrb[0].mxu0
  %v490 = vadd.f32 0.0, %v489
  %v491 = vpop.f32.mrb[0].mxu0
  %v492 = vpop.f32.mrb[0].mxu0
  %v493 = vadd.f32 0.0, %v492
  %v494 = vpop.f32.mrb[0].mxu0
  %495 = vmatprep.mubr.bf16.mxu0 0
  %496 = vmatmul.mubr.bf16.gmra.mrb[0].mxu0 %v239
  %v497 = vpop.f32.mrb[0].mxu0
  %v498 = vadd.f32 0.0, %v497
  %v499 = vpop.f32.mrb[0].mxu0
  %v500 = vpop.f32.mrb[0].mxu0
  %v501 = vadd.f32 0.0, %v500
  %v502 = vpop.f32.mrb[0].mxu0
  %503 = vmatprep.mubr.bf16.mxu0 0
  %504 = vmatmul.mubr.bf16.gmra.mrb[0].mxu0 %v240
  %v505 = vpop.f32.mrb[0].mxu0
  %v506 = vadd.f32 0.0, %v505
  %v507 = vpop.f32.mrb[0].mxu0
  %v508 = vpop.f32.mrb[0].mxu0
  %v509 = vadd.f32 0.0, %v508
  %v510 = vpop.f32.mrb[0].mxu0
  %511 = vmatprep.mubr.bf16.mxu0 0
  %512 = vmatmul.mubr.bf16.gmra.mrb[0].mxu0 %v241
  %v513 = vpop.f32.mrb[0].mxu0
  %v514 = vadd.f32 0.0, %v513
  %v515 = vpop.f32.mrb[0].mxu0
  %v516 = vpop.f32.mrb[0].mxu0
  %v517 = vadd.f32 0.0, %v516
  %v518 = vpop.f32.mrb[0].mxu0
  %519 = vmatprep.mubr.bf16.mxu0 0
  %520 = vmatmul.mubr.bf16.gmra.mrb[0].mxu0 %v242
  %v521 = vpop.f32.mrb[0].mxu0
  %v522 = vadd.f32 0.0, %v521
  %v523 = vpop.f32.mrb[0].mxu0
  %v524 = vpop.f32.mrb[0].mxu0
  %v525 = vadd.f32 0.0, %v524
  %v526 = vpop.f32.mrb[0].mxu0
  %527 = vmatprep.mubr.bf16.mxu0 0
  %528 = vmatmul.mubr.bf16.gmra.mrb[0].mxu0 %v243
  %v529 = vpop.f32.mrb[0].mxu0
  %v530 = vadd.f32 0.0, %v529
  %v531 = vpop.f32.mrb[0].mxu0
  %v532 = vpop.f32.mrb[0].mxu0
  %v533 = vadd.f32 0.0, %v532
  %v534 = vpop.f32.mrb[0].mxu0
  %535 = vmatprep.mubr.bf16.mxu0 0
  %536 = vmatmul.mubr.bf16.gmra.mrb[0].mxu0 %v244
  %v537 = vpop.f32.mrb[0].mxu0
  %v538 = vadd.f32 0.0, %v537
  %v539 = vpop.f32.mrb[0].mxu0
  %v540 = vpop.f32.mrb[0].mxu0
  %v541 = vadd.f32 0.0, %v540
  %v542 = vpop.f32.mrb[0].mxu0
  %543 = vmatprep.mubr.bf16.mxu0 0
  %544 = vmatmul.mubr.bf16.gmra.mrb[0].mxu0 %v245
  %v545 = vpop.f32.mrb[0].mxu0
  %v546 = vadd.f32 0.0, %v545
  %v547 = vpop.f32.mrb[0].mxu0
  %v548 = vpop.f32.mrb[0].mxu0
  %v549 = vadd.f32 0.0, %v548
  %v550 = vpop.f32.mrb[0].mxu0
  %551 = vmatprep.mubr.bf16.mxu0 0
  %552 = vmatmul.mubr.bf16.gmra.mrb[0].mxu0 %v246
  %v553 = vpop.f32.mrb[0].mxu0
  %v554 = vadd.f32 0.0, %v553
  %v555 = vpop.f32.mrb[0].mxu0
  %v556 = vpop.f32.mrb[0].mxu0
  %v557 = vadd.f32 0.0, %v556
  %v558 = vpop.f32.mrb[0].mxu0
  %559 = vmatprep.mubr.bf16.mxu0 0
  %560 = vmatmul.mubr.bf16.gmra.mrb[0].mxu0 %v247
  %v561 = vpop.f32.mrb[0].mxu0
  %v562 = vadd.f32 0.0, %v561
  %v563 = vpop.f32.mrb[0].mxu0
  %v564 = vpop.f32.mrb[0].mxu0
  %v565 = vadd.f32 0.0, %v564
  %v566 = vpop.f32.mrb[0].mxu0
  %567 = vmatprep.mubr.bf16.mxu0 0
  %568 = vmatmul.mubr.bf16.gmra.mrb[0].mxu0 %v248
  %v569 = vpop.f32.mrb[0].mxu0
  %v570 = vadd.f32 0.0, %v569
  %v571 = vpop.f32.mrb[0].mxu0
  %v572 = vpop.f32.mrb[0].mxu0
  %v573 = vadd.f32 0.0, %v572
  %v574 = vpop.f32.mrb[0].mxu0
  %575 = vmatprep.mubr.bf16.mxu0 0
  %576 = vmatmul.mubr.bf16.gmra.mrb[0].mxu0 %v249
  %v577 = vpop.f32.mrb[0].mxu0
  %v578 = vadd.f32 0.0, %v577
  %v579 = vpop.f32.mrb[0].mxu0
  %v580 = vpop.f32.mrb[0].mxu0
  %v581 = vadd.f32 0.0, %v580
  %v582 = vpop.f32.mrb[0].mxu0
  %583 = vmatprep.mubr.bf16.mxu0 0
  %584 = vmatmul.mubr.bf16.gmra.mrb[0].mxu0 %v250
  %v585 = vpop.f32.mrb[0].mxu0
  %v586 = vadd.f32 0.0, %v585
  %v587 = vpop.f32.mrb[0].mxu0
  %v588 = vpop.f32.mrb[0].mxu0
  %v589 = vadd.f32 0.0, %v588
  %v590 = vpop.f32.mrb[0].mxu0
  %591 = vmatprep.mubr.bf16.mxu0 0
  %592 = vmatmul.mubr.bf16.gmra.mrb[0].mxu0 %v251
  %v593 = vpop.f32.mrb[0].mxu0
  %v594 = vadd.f32 0.0, %v593
  %v595 = vpop.f32.mrb[0].mxu0
  %v596 = vpop.f32.mrb[0].mxu0
  %v597 = vadd.f32 0.0, %v596
  %v598 = vpop.f32.mrb[0].mxu0
  %599 = vmatprep.mubr.bf16.mxu0 0
  %600 = vmatmul.mubr.bf16.gmra.mrb[0].mxu0 %v252
  %v601 = vpop.f32.mrb[0].mxu0
  %v602 = vadd.f32 0.0, %v601
  %v603 = vpop.f32.mrb[0].mxu0
  %v604 = vpop.f32.mrb[0].mxu0
  %v605 = vadd.f32 0.0, %v604
  %v606 = vpop.f32.mrb[0].mxu0
  %607 = vmatprep.mubr.bf16.mxu0 0
  %608 = vmatmul.mubr.bf16.gmra.mrb[0].mxu0 %v253
  %v609 = vpop.f32.mrb[0].mxu0
  %v610 = vadd.f32 0.0, %v609
  %v611 = vpop.f32.mrb[0].mxu0
  %v612 = vpop.f32.mrb[0].mxu0
  %v613 = vadd.f32 0.0, %v612
  %v614 = vpop.f32.mrb[0].mxu0
  %615 = vmatprep.mubr.bf16.mxu0 0
  %616 = vmatmul.mubr.bf16.gmra.mrb[0].mxu0 %v254
  %v617 = vpop.f32.mrb[0].mxu0
  %v618 = vadd.f32 0.0, %v617
  %v619 = vpop.f32.mrb[0].mxu0
  %v620 = vpop.f32.mrb[0].mxu0
  %v621 = vadd.f32 0.0, %v620
  %v622 = vpop.f32.mrb[0].mxu0
  %623 = vdwg.mxu0
  %v624 = vpack.c.bf16 %v373, %v370
  %v625 = vpack.c.bf16 %v381, %v378
  %v626 = vpack.c.bf16 %v389, %v386
  %v627 = vpack.c.bf16 %v397, %v394
  %v628 = vpack.c.bf16 %v405, %v402
  %v629 = vpack.c.bf16 %v413, %v410
  %v630 = vpack.c.bf16 %v421, %v418
  %v631 = vpack.c.bf16 %v429, %v426
  %v632 = vpack.c.bf16 %v437, %v434
  %v633 = vpack.c.bf16 %v445, %v442
  %v634 = vpack.c.bf16 %v453, %v450
  %v635 = vpack.c.bf16 %v461, %v458
  %v636 = vpack.c.bf16 %v469, %v466
  %v637 = vpack.c.bf16 %v477, %v474
  %v638 = vpack.c.bf16 %v485, %v482
  %v639 = vpack.c.bf16 %v493, %v490
  %v640 = vpack.c.bf16 %v501, %v498
  %v641 = vpack.c.bf16 %v509, %v506
  %v642 = vpack.c.bf16 %v517, %v514
  %v643 = vpack.c.bf16 %v525, %v522
  %v644 = vpack.c.bf16 %v533, %v530
  %v645 = vpack.c.bf16 %v541, %v538
  %v646 = vpack.c.bf16 %v549, %v546
  %v647 = vpack.c.bf16 %v557, %v554
  %v648 = vpack.c.bf16 %v565, %v562
  %v649 = vpack.c.bf16 %v573, %v570
  %v650 = vpack.c.bf16 %v581, %v578
  %v651 = vpack.c.bf16 %v589, %v586
  %v652 = vpack.c.bf16 %v597, %v594
  %v653 = vpack.c.bf16 %v605, %v602
  %v654 = vpack.c.bf16 %v613, %v610
  %v655 = vpack.c.bf16 %v621, %v618
  %v688 = vunpack.c.l.b16 %v624
  %v689 = vunpack.c.h.b16 %v624
  %v690 = vunpack.c.l.b16 %v625
  %v691 = vunpack.c.h.b16 %v625
  %v692 = vunpack.c.l.b16 %v626
  %v693 = vunpack.c.h.b16 %v626
  %v694 = vunpack.c.l.b16 %v627
  %v695 = vunpack.c.h.b16 %v627
  %v696 = vunpack.c.l.b16 %v628
  %v697 = vunpack.c.h.b16 %v628
  %v698 = vunpack.c.l.b16 %v629
  %v699 = vunpack.c.h.b16 %v629
  %v700 = vunpack.c.l.b16 %v630
  %v701 = vunpack.c.h.b16 %v630
  %v702 = vunpack.c.l.b16 %v631
  %v703 = vunpack.c.h.b16 %v631
  %v704 = vunpack.c.l.b16 %v632
  %v705 = vunpack.c.h.b16 %v632
  %v706 = vunpack.c.l.b16 %v633
  %v707 = vunpack.c.h.b16 %v633
  %v708 = vunpack.c.l.b16 %v634
  %v709 = vunpack.c.h.b16 %v634
  %v710 = vunpack.c.l.b16 %v635
  %v711 = vunpack.c.h.b16 %v635
  %v712 = vunpack.c.l.b16 %v636
  %v713 = vunpack.c.h.b16 %v636
  %v714 = vunpack.c.l.b16 %v637
  %v715 = vunpack.c.h.b16 %v637
  %v716 = vunpack.c.l.b16 %v638
  %v717 = vunpack.c.h.b16 %v638
  %v718 = vunpack.c.l.b16 %v639
  %v719 = vunpack.c.h.b16 %v639
  %v720 = vunpack.c.l.b16 %v640
  %v721 = vunpack.c.h.b16 %v640
  %v722 = vunpack.c.l.b16 %v641
  %v723 = vunpack.c.h.b16 %v641
  %v724 = vunpack.c.l.b16 %v642
  %v725 = vunpack.c.h.b16 %v642
  %v726 = vunpack.c.l.b16 %v643
  %v727 = vunpack.c.h.b16 %v643
  %v728 = vunpack.c.l.b16 %v644
  %v729 = vunpack.c.h.b16 %v644
  %v730 = vunpack.c.l.b16 %v645
  %v731 = vunpack.c.h.b16 %v645
  %v732 = vunpack.c.l.b16 %v646
  %v733 = vunpack.c.h.b16 %v646
  %v734 = vunpack.c.l.b16 %v647
  %v735 = vunpack.c.h.b16 %v647
  %v736 = vunpack.c.l.b16 %v648
  %v737 = vunpack.c.h.b16 %v648
  %v738 = vunpack.c.l.b16 %v649
  %v739 = vunpack.c.h.b16 %v649
  %v740 = vunpack.c.l.b16 %v650
  %v741 = vunpack.c.h.b16 %v650
  %v742 = vunpack.c.l.b16 %v651
  %v743 = vunpack.c.h.b16 %v651
  %v744 = vunpack.c.l.b16 %v652
  %v745 = vunpack.c.h.b16 %v652
  %v746 = vunpack.c.l.b16 %v653
  %v747 = vunpack.c.h.b16 %v653
  %v748 = vunpack.c.l.b16 %v654
  %v749 = vunpack.c.h.b16 %v654
  %v750 = vunpack.c.l.b16 %v655
  %v751 = vunpack.c.h.b16 %v655
  %v752 = vpack.c.b16 %v688, %v688
  %v753 = vpack.c.b16 %v689, %v689
  %v754 = vpack.c.b16 %v690, %v690
  %v755 = vpack.c.b16 %v691, %v691
  %v756 = vpack.c.b16 %v692, %v692
  %v757 = vpack.c.b16 %v693, %v693
  %v758 = vpack.c.b16 %v694, %v694
  %v759 = vpack.c.b16 %v695, %v695
  %v760 = vpack.c.b16 %v696, %v696
  %v761 = vpack.c.b16 %v697, %v697
  %v762 = vpack.c.b16 %v698, %v698
  %v763 = vpack.c.b16 %v699, %v699
  %v764 = vpack.c.b16 %v700, %v700
  %v765 = vpack.c.b16 %v701, %v701
  %v766 = vpack.c.b16 %v702, %v702
  %v767 = vpack.c.b16 %v703, %v703
  %v768 = vpack.c.b16 %v704, %v704
  %v769 = vpack.c.b16 %v705, %v705
  %v770 = vpack.c.b16 %v706, %v706
  %v771 = vpack.c.b16 %v707, %v707
  %v772 = vpack.c.b16 %v708, %v708
  %v773 = vpack.c.b16 %v709, %v709
  %v774 = vpack.c.b16 %v710, %v710
  %v775 = vpack.c.b16 %v711, %v711
  %v776 = vpack.c.b16 %v712, %v712
  %v777 = vpack.c.b16 %v713, %v713
  %v778 = vpack.c.b16 %v714, %v714
  %v779 = vpack.c.b16 %v715, %v715
  %v780 = vpack.c.b16 %v716, %v716
  %v781 = vpack.c.b16 %v717, %v717
  %v782 = vpack.c.b16 %v718, %v718
  %v783 = vpack.c.b16 %v719, %v719
  %v784 = vpack.c.b16 %v720, %v720
  %v785 = vpack.c.b16 %v721, %v721
  %v786 = vpack.c.b16 %v722, %v722
  %v787 = vpack.c.b16 %v723, %v723
  %v788 = vpack.c.b16 %v724, %v724
  %v789 = vpack.c.b16 %v725, %v725
  %v790 = vpack.c.b16 %v726, %v726
  %v791 = vpack.c.b16 %v727, %v727
  %v792 = vpack.c.b16 %v728, %v728
  %v793 = vpack.c.b16 %v729, %v729
  %v794 = vpack.c.b16 %v730, %v730
  %v795 = vpack.c.b16 %v731, %v731
  %v796 = vpack.c.b16 %v732, %v732
  %v797 = vpack.c.b16 %v733, %v733
  %v798 = vpack.c.b16 %v734, %v734
  %v799 = vpack.c.b16 %v735, %v735
  %v800 = vpack.c.b16 %v736, %v736
  %v801 = vpack.c.b16 %v737, %v737
  %v802 = vpack.c.b16 %v738, %v738
  %v803 = vpack.c.b16 %v739, %v739
  %v804 = vpack.c.b16 %v740, %v740
  %v805 = vpack.c.b16 %v741, %v741
  %v806 = vpack.c.b16 %v742, %v742
  %v807 = vpack.c.b16 %v743, %v743
  %v808 = vpack.c.b16 %v744, %v744
  %v809 = vpack.c.b16 %v745, %v745
  %v810 = vpack.c.b16 %v746, %v746
  %v811 = vpack.c.b16 %v747, %v747
  %v812 = vpack.c.b16 %v748, %v748
  %v813 = vpack.c.b16 %v749, %v749
  %v814 = vpack.c.b16 %v750, %v750
  %v815 = vpack.c.b16 %v751, %v751
  %880 = vst [vmem:[%s2] sm:$0xf] %v752
  %881 = vst [vmem:[%s2 + $0x4] sm:$0xf] %v753
  %882 = vst [vmem:[%s2 + $0x8] sm:$0xf] %v754
  %883 = vst [vmem:[%s2 + $0xc] sm:$0xf] %v755
  %884 = vst [vmem:[%s2 + $0x10] sm:$0xf] %v756
  %885 = vst [vmem:[%s2 + $0x14] sm:$0xf] %v757
  %886 = vst [vmem:[%s2 + $0x18] sm:$0xf] %v758
  %887 = vst [vmem:[%s2 + $0x1c] sm:$0xf] %v759
  %888 = vst [vmem:[%s2 + $0x20] sm:$0xf] %v760
  %889 = vst [vmem:[%s2 + $0x24] sm:$0xf] %v761
  %890 = vst [vmem:[%s2 + $0x28] sm:$0xf] %v762
  %891 = vst [vmem:[%s2 + $0x2c] sm:$0xf] %v763
  %892 = vst [vmem:[%s2 + $0x30] sm:$0xf] %v764
  %893 = vst [vmem:[%s2 + $0x34] sm:$0xf] %v765
  %894 = vst [vmem:[%s2 + $0x38] sm:$0xf] %v766
  %895 = vst [vmem:[%s2 + $0x3c] sm:$0xf] %v767
  %896 = vst [vmem:[%s2 + $0x40] sm:$0xf] %v768
  %897 = vst [vmem:[%s2 + $0x44] sm:$0xf] %v769
  %898 = vst [vmem:[%s2 + $0x48] sm:$0xf] %v770
  %899 = vst [vmem:[%s2 + $0x4c] sm:$0xf] %v771
  %900 = vst [vmem:[%s2 + $0x50] sm:$0xf] %v772
  %901 = vst [vmem:[%s2 + $0x54] sm:$0xf] %v773
  %902 = vst [vmem:[%s2 + $0x58] sm:$0xf] %v774
  %903 = vst [vmem:[%s2 + $0x5c] sm:$0xf] %v775
  %904 = vst [vmem:[%s2 + $0x60] sm:$0xf] %v776
  %905 = vst [vmem:[%s2 + $0x64] sm:$0xf] %v777
  %906 = vst [vmem:[%s2 + $0x68] sm:$0xf] %v778
  %907 = vst [vmem:[%s2 + $0x6c] sm:$0xf] %v779
  %908 = vst [vmem:[%s2 + $0x70] sm:$0xf] %v780
  %909 = vst [vmem:[%s2 + $0x74] sm:$0xf] %v781
  %910 = vst [vmem:[%s2 + $0x78] sm:$0xf] %v782
  %911 = vst [vmem:[%s2 + $0x7c] sm:$0xf] %v783
  %912 = vst [vmem:[%s2 + $0x80] sm:$0xf] %v784
  %913 = vst [vmem:[%s2 + $0x84] sm:$0xf] %v785
  %914 = vst [vmem:[%s2 + $0x88] sm:$0xf] %v786
  %915 = vst [vmem:[%s2 + $0x8c] sm:$0xf] %v787
  %916 = vst [vmem:[%s2 + $0x90] sm:$0xf] %v788
  %917 = vst [vmem:[%s2 + $0x94] sm:$0xf] %v789
  %918 = vst [vmem:[%s2 + $0x98] sm:$0xf] %v790
  %919 = vst [vmem:[%s2 + $0x9c] sm:$0xf] %v791
  %920 = vst [vmem:[%s2 + $0xa0] sm:$0xf] %v792
  %921 = vst [vmem:[%s2 + $0xa4] sm:$0xf] %v793
  %922 = vst [vmem:[%s2 + $0xa8] sm:$0xf] %v794
  %923 = vst [vmem:[%s2 + $0xac] sm:$0xf] %v795
  %924 = vst [vmem:[%s2 + $0xb0] sm:$0xf] %v796
  %925 = vst [vmem:[%s2 + $0xb4] sm:$0xf] %v797
  %926 = vst [vmem:[%s2 + $0xb8] sm:$0xf] %v798
  %927 = vst [vmem:[%s2 + $0xbc] sm:$0xf] %v799
  %928 = vst [vmem:[%s2 + $0xc0] sm:$0xf] %v800
  %929 = vst [vmem:[%s2 + $0xc4] sm:$0xf] %v801
  %930 = vst [vmem:[%s2 + $0xc8] sm:$0xf] %v802
  %931 = vst [vmem:[%s2 + $0xcc] sm:$0xf] %v803
  %932 = vst [vmem:[%s2 + $0xd0] sm:$0xf] %v804
  %933 = vst [vmem:[%s2 + $0xd4] sm:$0xf] %v805
  %934 = vst [vmem:[%s2 + $0xd8] sm:$0xf] %v806
  %935 = vst [vmem:[%s2 + $0xdc] sm:$0xf] %v807
  %936 = vst [vmem:[%s2 + $0xe0] sm:$0xf] %v808
  %937 = vst [vmem:[%s2 + $0xe4] sm:$0xf] %v809
  %938 = vst [vmem:[%s2 + $0xe8] sm:$0xf] %v810
  %939 = vst [vmem:[%s2 + $0xec] sm:$0xf] %v811
  %940 = vst [vmem:[%s2 + $0xf0] sm:$0xf] %v812
  %941 = vst [vmem:[%s2 + $0xf4] sm:$0xf] %v813
  %942 = vst [vmem:[%s2 + $0xf8] sm:$0xf] %v814
  %943 = vst [vmem:[%s2 + $0xfc] sm:$0xf] %v815
  %v944 = vadd.f32 %v370, %v373
  %v945 = vadd.f32 %v944, %v378
  %v946 = vadd.f32 %v945, %v381
  %v947 = vadd.f32 %v946, %v386
  %v948 = vadd.f32 %v947, %v389
  %v949 = vadd.f32 %v948, %v394
  %v950 = vadd.f32 %v949, %v397
  %v951 = vadd.f32 %v950, %v402
  %v952 = vadd.f32 %v951, %v405
  %v953 = vadd.f32 %v952, %v410
  %v954 = vadd.f32 %v953, %v413
  %v955 = vadd.f32 %v954, %v418
  %v956 = vadd.f32 %v955, %v421
  %v957 = vadd.f32 %v956, %v426
  %v958 = vadd.f32 %v957, %v429
  %v959 = vadd.f32 %v958, %v434
  %v960 = vadd.f32 %v959, %v437
  %v961 = vadd.f32 %v960, %v442
  %v962 = vadd.f32 %v961, %v445
  %v963 = vadd.f32 %v962, %v450
  %v964 = vadd.f32 %v963, %v453
  %v965 = vadd.f32 %v964, %v458
  %v966 = vadd.f32 %v965, %v461
  %v967 = vadd.f32 %v966, %v466
  %v968 = vadd.f32 %v967, %v469
  %v969 = vadd.f32 %v968, %v474
  %v970 = vadd.f32 %v969, %v477
  %v971 = vadd.f32 %v970, %v482
  %v972 = vadd.f32 %v971, %v485
  %v973 = vadd.f32 %v972, %v490
  %v974 = vadd.f32 %v973, %v493
  %v975 = vadd.f32 %v974, %v498
  %v976 = vadd.f32 %v975, %v501
  %v977 = vadd.f32 %v976, %v506
  %v978 = vadd.f32 %v977, %v509
  %v979 = vadd.f32 %v978, %v514
  %v980 = vadd.f32 %v979, %v517
  %v981 = vadd.f32 %v980, %v522
  %v982 = vadd.f32 %v981, %v525
  %v983 = vadd.f32 %v982, %v530
  %v984 = vadd.f32 %v983, %v533
  %v985 = vadd.f32 %v984, %v538
  %v986 = vadd.f32 %v985, %v541
  %v987 = vadd.f32 %v986, %v546
  %v988 = vadd.f32 %v987, %v549
  %v989 = vadd.f32 %v988, %v554
  %v990 = vadd.f32 %v989, %v557
  %v991 = vadd.f32 %v990, %v562
  %v992 = vadd.f32 %v991, %v565
  %v993 = vadd.f32 %v992, %v570
  %v994 = vadd.f32 %v993, %v573
  %v995 = vadd.f32 %v994, %v578
  %v996 = vadd.f32 %v995, %v581
  %v997 = vadd.f32 %v996, %v586
  %v998 = vadd.f32 %v997, %v589
  %v999 = vadd.f32 %v998, %v594
  %v1000 = vadd.f32 %v999, %v597
  %v1001 = vadd.f32 %v1000, %v602
  %v1002 = vadd.f32 %v1001, %v605
  %v1003 = vadd.f32 %v1002, %v610
  %v1004 = vadd.f32 %v1003, %v613
  %v1005 = vadd.f32 %v1004, %v618
  %v1006 = vadd.f32 %v1005, %v621
  %v1007 = vrot.slane %v1006, 4
  %v1008 = vadd.f32 %v1006, %v1007
  %v1009 = vrot.slane %v1008, 2
  %v1010 = vadd.f32 %v1008, %v1009
  %v1011 = vrot.slane %v1010, 1
  %v1012 = vadd.f32 %v1010, %v1011
  %1013 = vst [vmem:[%s3] sm:$0x1] %v1012
  %v1014 = vmul.f32 %v370, %v370
  %v1015 = vmul.f32 %v373, %v373
  %v1016 = vmul.f32 %v378, %v378
  %v1017 = vmul.f32 %v381, %v381
  %v1018 = vmul.f32 %v386, %v386
  %v1019 = vmul.f32 %v389, %v389
  %v1020 = vmul.f32 %v394, %v394
  %v1021 = vmul.f32 %v397, %v397
  %v1022 = vmul.f32 %v402, %v402
  %v1023 = vmul.f32 %v405, %v405
  %v1024 = vmul.f32 %v410, %v410
  %v1025 = vmul.f32 %v413, %v413
  %v1026 = vmul.f32 %v418, %v418
  %v1027 = vmul.f32 %v421, %v421
  %v1028 = vmul.f32 %v426, %v426
  %v1029 = vmul.f32 %v429, %v429
  %v1030 = vmul.f32 %v434, %v434
  %v1031 = vmul.f32 %v437, %v437
  %v1032 = vmul.f32 %v442, %v442
  %v1033 = vmul.f32 %v445, %v445
  %v1034 = vmul.f32 %v450, %v450
  %v1035 = vmul.f32 %v453, %v453
  %v1036 = vmul.f32 %v458, %v458
  %v1037 = vmul.f32 %v461, %v461
  %v1038 = vmul.f32 %v466, %v466
  %v1039 = vmul.f32 %v469, %v469
  %v1040 = vmul.f32 %v474, %v474
  %v1041 = vmul.f32 %v477, %v477
  %v1042 = vmul.f32 %v482, %v482
  %v1043 = vmul.f32 %v485, %v485
  %v1044 = vmul.f32 %v490, %v490
  %v1045 = vmul.f32 %v493, %v493
  %v1046 = vmul.f32 %v498, %v498
  %v1047 = vmul.f32 %v501, %v501
  %v1048 = vmul.f32 %v506, %v506
  %v1049 = vmul.f32 %v509, %v509
  %v1050 = vmul.f32 %v514, %v514
  %v1051 = vmul.f32 %v517, %v517
  %v1052 = vmul.f32 %v522, %v522
  %v1053 = vmul.f32 %v525, %v525
  %v1054 = vmul.f32 %v530, %v530
  %v1055 = vmul.f32 %v533, %v533
  %v1056 = vmul.f32 %v538, %v538
  %v1057 = vmul.f32 %v541, %v541
  %v1058 = vmul.f32 %v546, %v546
  %v1059 = vmul.f32 %v549, %v549
  %v1060 = vmul.f32 %v554, %v554
  %v1061 = vmul.f32 %v557, %v557
  %v1062 = vmul.f32 %v562, %v562
  %v1063 = vmul.f32 %v565, %v565
  %v1064 = vmul.f32 %v570, %v570
  %v1065 = vmul.f32 %v573, %v573
  %v1066 = vmul.f32 %v578, %v578
  %v1067 = vmul.f32 %v581, %v581
  %v1068 = vmul.f32 %v586, %v586
  %v1069 = vmul.f32 %v589, %v589
  %v1070 = vmul.f32 %v594, %v594
  %v1071 = vmul.f32 %v597, %v597
  %v1072 = vmul.f32 %v602, %v602
  %v1073 = vmul.f32 %v605, %v605
  %v1074 = vmul.f32 %v610, %v610
  %v1075 = vmul.f32 %v613, %v613
  %v1076 = vmul.f32 %v618, %v618
  %v1077 = vmul.f32 %v621, %v621
  %v1078 = vadd.f32 %v1014, %v1015
  %v1079 = vadd.f32 %v1078, %v1016
  %v1080 = vadd.f32 %v1079, %v1017
  %v1081 = vadd.f32 %v1080, %v1018
  %v1082 = vadd.f32 %v1081, %v1019
  %v1083 = vadd.f32 %v1082, %v1020
  %v1084 = vadd.f32 %v1083, %v1021
  %v1085 = vadd.f32 %v1084, %v1022
  %v1086 = vadd.f32 %v1085, %v1023
  %v1087 = vadd.f32 %v1086, %v1024
  %v1088 = vadd.f32 %v1087, %v1025
  %v1089 = vadd.f32 %v1088, %v1026
  %v1090 = vadd.f32 %v1089, %v1027
  %v1091 = vadd.f32 %v1090, %v1028
  %v1092 = vadd.f32 %v1091, %v1029
  %v1093 = vadd.f32 %v1092, %v1030
  %v1094 = vadd.f32 %v1093, %v1031
  %v1095 = vadd.f32 %v1094, %v1032
  %v1096 = vadd.f32 %v1095, %v1033
  %v1097 = vadd.f32 %v1096, %v1034
  %v1098 = vadd.f32 %v1097, %v1035
  %v1099 = vadd.f32 %v1098, %v1036
  %v1100 = vadd.f32 %v1099, %v1037
  %v1101 = vadd.f32 %v1100, %v1038
  %v1102 = vadd.f32 %v1101, %v1039
  %v1103 = vadd.f32 %v1102, %v1040
  %v1104 = vadd.f32 %v1103, %v1041
  %v1105 = vadd.f32 %v1104, %v1042
  %v1106 = vadd.f32 %v1105, %v1043
  %v1107 = vadd.f32 %v1106, %v1044
  %v1108 = vadd.f32 %v1107, %v1045
  %v1109 = vadd.f32 %v1108, %v1046
  %v1110 = vadd.f32 %v1109, %v1047
  %v1111 = vadd.f32 %v1110, %v1048
  %v1112 = vadd.f32 %v1111, %v1049
  %v1113 = vadd.f32 %v1112, %v1050
  %v1114 = vadd.f32 %v1113, %v1051
  %v1115 = vadd.f32 %v1114, %v1052
  %v1116 = vadd.f32 %v1115, %v1053
  %v1117 = vadd.f32 %v1116, %v1054
  %v1118 = vadd.f32 %v1117, %v1055
  %v1119 = vadd.f32 %v1118, %v1056
  %v1120 = vadd.f32 %v1119, %v1057
  %v1121 = vadd.f32 %v1120, %v1058
  %v1122 = vadd.f32 %v1121, %v1059
  %v1123 = vadd.f32 %v1122, %v1060
  %v1124 = vadd.f32 %v1123, %v1061
  %v1125 = vadd.f32 %v1124, %v1062
  %v1126 = vadd.f32 %v1125, %v1063
  %v1127 = vadd.f32 %v1126, %v1064
  %v1128 = vadd.f32 %v1127, %v1065
  %v1129 = vadd.f32 %v1128, %v1066
  %v1130 = vadd.f32 %v1129, %v1067
  %v1131 = vadd.f32 %v1130, %v1068
  %v1132 = vadd.f32 %v1131, %v1069
  %v1133 = vadd.f32 %v1132, %v1070
  %v1134 = vadd.f32 %v1133, %v1071
  %v1135 = vadd.f32 %v1134, %v1072
  %v1136 = vadd.f32 %v1135, %v1073
  %v1137 = vadd.f32 %v1136, %v1074
  %v1138 = vadd.f32 %v1137, %v1075
  %v1139 = vadd.f32 %v1138, %v1076
  %v1140 = vadd.f32 %v1139, %v1077
  %v1141 = vrot.slane %v1140, 4
  %v1142 = vadd.f32 %v1140, %v1141
  %v1143 = vrot.slane %v1142, 2
  %v1144 = vadd.f32 %v1142, %v1143
  %v1145 = vrot.slane %v1144, 1
  %v1146 = vadd.f32 %v1144, %v1145
  %1147 = vst [vmem:[%s4] sm:$0x1] %v1146
  // Predicated region
  $region10: #{block_forward.4} parent=0 // pred_check
    _
  $region11: #{block_forward.4} parent=0 // pred_check_branch
    %1149 = sbr.rel (0) target = $region13
  $region12: #{block_forward.4} parent=0 // pred_region
    _
  $region13: #{block_forward.4} parent=0 // pred_fallthru
    _
  // Predicated region
  $region14: #{block_forward.4} parent=0 // pred_check
    _
  $region15: #{block_forward.4} parent=0 // pred_check_branch
    %1151 = sbr.rel (0) target = $region17
  $region16: #{block_forward.4} parent=0 // pred_region
    _
  $region17: #{block_forward.4} parent=0 // pred_fallthru
    _
  // Predicated region
  $region18: #{block_forward.4} parent=0 // pred_check
    _
  $region19: #{block_forward.4} parent=0 // pred_check_branch
    %1153 = sbr.rel (0) target = $region21
  $region20: #{block_forward.4} parent=0 // pred_region
    _
  $region21: #{block_forward.4} parent=0 // pred_fallthru
    _
  // Predicated region
  $region22: #{block_forward.4} parent=0 // pred_check
    _
  $region23: #{block_forward.4} parent=0 // pred_check_branch
    %1155 = sbr.rel (0) target = $region25
  $region24: #{block_forward.4} parent=0 // pred_region
    _
  $region25: #{block_forward.4} parent=0 // pred_fallthru
    _
  // Predicated region
  $region26: #{block_forward.4} parent=0 // pred_check
    _
  $region27: #{block_forward.4} parent=0 // pred_check_branch
    %1157 = sbr.rel (0) target = $region29
  $region28: #{block_forward.4} parent=0 // pred_region
    _
  $region29: #{block_forward.4} parent=0 // pred_fallthru
    _
  // Predicated region
  $region30: #{block_forward.4} parent=0 // pred_check
    _
  $region31: #{block_forward.4} parent=0 // pred_check_branch
    %1159 = sbr.rel (0) target = $region33
  $region32: #{block_forward.4} parent=0 // pred_region
    _
  $region33: #{block_forward.4} parent=0 // pred_fallthru
    _

// kernel: block_forward.5
$region0: #{block_forward.5}
  #allocation0 [shape = 'u32[]', space=smem, size = 0x4, offset = 0x4, fixed_abs, tag = 'smem constant byte address 0x4 - core index']
  #allocation1 [shape = 'u32[144,128]{1,0:T(1,128)}', space=vmem, size = 0x12000, scoped, tag = 'internal scratch']
  #allocation2 [shape = 'f32[4,9,24,128]{3,2,1,0:T(8,128)}', space=vmem, size = 0x6c000, scoped, tag = 'scratch operand']
  %s0 = inlined_call_operand.vmem [shape: bf16[2,256,128], index: 0, kind: input, shape index: {}]
  %s1 = inlined_call_operand.vmem [shape: f32[1,128], index: 1, kind: input, shape index: {}]
  %s2 = inlined_call_operand.vmem [shape: f32[1,128], index: 2, kind: input, shape index: {}]
  %s3 = inlined_call_operand.vmem [shape: bf16[4,256,128], index: 3, kind: input, shape index: {}]
  %s4 = inlined_call_operand.vmem [shape: bf16[128,128], index: 4, kind: input, shape index: {}]
  %s5 = inlined_call_operand.vmem [shape: bf16[2,64,128], index: 5, kind: output, shape index: {0}]
  %s6 = inlined_call_operand.vmem [shape: f32[2,1,128], index: 6, kind: output, shape index: {1}]
  %s7 = inlined_call_operand.vmem [shape: f32[2,1,128], index: 7, kind: output, shape index: {2}]
  %8 = xla_tuple %s5, %s6, %s7
  %s9 = sld [smem:[#allocation0]]
  $region69: #{block_forward.5} parent=0
    _
  %s11 = ssub.s32 1, %s9
  %s12 = scalar_select 0, %s11, %s9
  loop: start=0, step=1, limit=4
  $region2: #{block_forward.5} parent=0 // loop_pre_header
    _
  $region3: #{block_forward.5} parent=0 // loop_header
    %s14 = sphi 0, %s18
    %p15 = scmp.ge.s32.totalorder %s14, 4
    %s24 = sphi 0, %s26
    %s27 = sphi 0, %s24
    %s28 = sphi 0, %s27
    %s44 = sphi 0, %s28
    %s48 = sphi 0, %s48
    %s50 = sphi 0, %s48
    %s51 = sphi 0, %s50
    %s65 = sphi 0, %s51
    %s69 = sphi 0, %s69
    %s71 = sphi 0, %s69
    %s72 = sphi 0, %s71
    %s86 = sphi 0, %s72
    %s90 = sphi 0, %s90
    %s92 = sphi 0, %s90
    %s93 = sphi 0, %s92
    %s107 = sphi 0, %s93
    %s111 = sphi 0, %s111
    %s113 = sphi 0, %s111
    %s114 = sphi 0, %s113
    %s128 = sphi 0, %s114
    %s134 = sphi 0, %s136
    %s137 = sphi 0, %s134
    %s138 = sphi 0, %s137
    %s154 = sphi 0, %s138
    %s160 = sphi 0, %s162
    %s163 = sphi 0, %s160
    %s164 = sphi 0, %s163
    %s180 = sphi 0, %s164
    %s186 = sphi 0, %s188
    %s189 = sphi 0, %s186
    %s190 = sphi 0, %s189
    %s206 = sphi 0, %s190
  $region4: #{block_forward.5} parent=0 // loop_header_branch
    %17 = sbr.rel (%p15) target = $region8
  $region5: #{block_forward.5} parent=0 // loop_body
    %s19 = ssub.s32 %s14, 1
    %s20 = ssub.s32 %s14, 2
    %s21 = sadd.s32 %s14, 1
    %s22 = ssub.s32 %s14, %s21
    %p23 = scmp.eq.s32.totalorder %s22, 0
    %s25 = sadd.s32 %s24, 1
    %s26 = scalar_select %p23, %s24, %s25
    %p29 = pneg %p23
    %p30 = scmp.eq.s32.totalorder %s14, 1
    %p31 = por %p29, %p30
    %p32 = scmp.ne.s32.totalorder %s24, %s27
    %p33 = scmp.eq.s32.totalorder %s14, 0
    %p34 = por %p32, %p33
    %p35 = scmp.ne.s32.totalorder %s24, %s27
    %p36 = scmp.eq.s32.totalorder %s19, 1
    %p37 = por %p35, %p36
    %p38 = scmp.ne.s32.totalorder %s27, %s28
    %p39 = scmp.eq.s32.totalorder %s19, 0
    %p40 = por %p38, %p39
    %p41 = scmp.ne.s32.totalorder %s27, %s28
    %p42 = scmp.eq.s32.totalorder %s20, 1
    %p43 = por %p41, %p42
    %p45 = scmp.ne.s32.totalorder %s28, %s44
    %p46 = scmp.eq.s32.totalorder %s20, 0
    %p47 = por %p45, %p46
    %s49 = sadd.s32 %s48, 1
    %p52 = scmp.eq.s32.totalorder %s14, 1
    %p53 = scmp.ne.s32.totalorder %s48, %s50
    %p54 = scmp.eq.s32.totalorder %s14, 0
    %p55 = por %p53, %p54
    %p56 = scmp.ne.s32.totalorder %s48, %s50
    %p57 = scmp.eq.s32.totalorder %s19, 1
    %p58 = por %p56, %p57
    %p59 = scmp.ne.s32.totalorder %s50, %s51
    %p60 = scmp.eq.s32.totalorder %s19, 0
    %p61 = por %p59, %p60
    %p62 = scmp.ne.s32.totalorder %s50, %s51
    %p63 = scmp.eq.s32.totalorder %s20, 1
    %p64 = por %p62, %p63
    %p66 = scmp.ne.s32.totalorder %s51, %s65
    %p67 = scmp.eq.s32.totalorder %s20, 0
    %p68 = por %p66, %p67
    %s70 = sadd.s32 %s69, 1
    %p73 = scmp.eq.s32.totalorder %s14, 1
    %p74 = scmp.ne.s32.totalorder %s69, %s71
    %p75 = scmp.eq.s32.totalorder %s14, 0
    %p76 = por %p74, %p75
    %p77 = scmp.ne.s32.totalorder %s69, %s71
    %p78 = scmp.eq.s32.totalorder %s19, 1
    %p79 = por %p77, %p78
    %p80 = scmp.ne.s32.totalorder %s71, %s72
    %p81 = scmp.eq.s32.totalorder %s19, 0
    %p82 = por %p80, %p81
    %p83 = scmp.ne.s32.totalorder %s71, %s72
    %p84 = scmp.eq.s32.totalorder %s20, 1
    %p85 = por %p83, %p84
    %p87 = scmp.ne.s32.totalorder %s72, %s86
    %p88 = scmp.eq.s32.totalorder %s20, 0
    %p89 = por %p87, %p88
    %s91 = sadd.s32 %s90, 1
    %p94 = scmp.eq.s32.totalorder %s14, 1
    %p95 = scmp.ne.s32.totalorder %s90, %s92
    %p96 = scmp.eq.s32.totalorder %s14, 0
    %p97 = por %p95, %p96
    %p98 = scmp.ne.s32.totalorder %s90, %s92
    %p99 = scmp.eq.s32.totalorder %s19, 1
    %p100 = por %p98, %p99
    %p101 = scmp.ne.s32.totalorder %s92, %s93
    %p102 = scmp.eq.s32.totalorder %s19, 0
    %p103 = por %p101, %p102
    %p104 = scmp.ne.s32.totalorder %s92, %s93
    %p105 = scmp.eq.s32.totalorder %s20, 1
    %p106 = por %p104, %p105
    %p108 = scmp.ne.s32.totalorder %s93, %s107
    %p109 = scmp.eq.s32.totalorder %s20, 0
    %p110 = por %p108, %p109
    %s112 = sadd.s32 %s111, 1
    %p115 = scmp.eq.s32.totalorder %s14, 1
    %p116 = scmp.ne.s32.totalorder %s111, %s113
    %p117 = scmp.eq.s32.totalorder %s14, 0
    %p118 = por %p116, %p117
    %p119 = scmp.ne.s32.totalorder %s111, %s113
    %p120 = scmp.eq.s32.totalorder %s19, 1
    %p121 = por %p119, %p120
    %p122 = scmp.ne.s32.totalorder %s113, %s114
    %p123 = scmp.eq.s32.totalorder %s19, 0
    %p124 = por %p122, %p123
    %p125 = scmp.ne.s32.totalorder %s113, %s114
    %p126 = scmp.eq.s32.totalorder %s20, 1
    %p127 = por %p125, %p126
    %p129 = scmp.ne.s32.totalorder %s114, %s128
    %p130 = scmp.eq.s32.totalorder %s20, 0
    %p131 = por %p129, %p130
    %s132 = ssub.s32 %s14, %s21
    %p133 = scmp.eq.s32.totalorder %s132, 0
    %s135 = sadd.s32 %s134, 1
    %s136 = scalar_select %p133, %s134, %s135
    %p139 = pneg %p133
    %p140 = scmp.eq.s32.totalorder %s14, 1
    %p141 = por %p139, %p140
    %p142 = scmp.ne.s32.totalorder %s134, %s137
    %p143 = scmp.eq.s32.totalorder %s14, 0
    %p144 = por %p142, %p143
    %p145 = scmp.ne.s32.totalorder %s134, %s137
    %p146 = scmp.eq.s32.totalorder %s19, 1
    %p147 = por %p145, %p146
    %p148 = scmp.ne.s32.totalorder %s137, %s138
    %p149 = scmp.eq.s32.totalorder %s19, 0
    %p150 = por %p148, %p149
    %p151 = scmp.ne.s32.totalorder %s137, %s138
    %p152 = scmp.eq.s32.totalorder %s20, 1
    %p153 = por %p151, %p152
    %p155 = scmp.ne.s32.totalorder %s138, %s154
    %p156 = scmp.eq.s32.totalorder %s20, 0
    %p157 = por %p155, %p156
    %s158 = ssub.s32 %s14, %s21
    %p159 = scmp.eq.s32.totalorder %s158, 0
    %s161 = sadd.s32 %s160, 1
    %s162 = scalar_select %p159, %s160, %s161
    %p165 = pneg %p159
    %p166 = scmp.eq.s32.totalorder %s14, 1
    %p167 = por %p165, %p166
    %p168 = scmp.ne.s32.totalorder %s160, %s163
    %p169 = scmp.eq.s32.totalorder %s14, 0
    %p170 = por %p168, %p169
    %p171 = scmp.ne.s32.totalorder %s160, %s163
    %p172 = scmp.eq.s32.totalorder %s19, 1
    %p173 = por %p171, %p172
    %p174 = scmp.ne.s32.totalorder %s163, %s164
    %p175 = scmp.eq.s32.totalorder %s19, 0
    %p176 = por %p174, %p175
    %p177 = scmp.ne.s32.totalorder %s163, %s164
    %p178 = scmp.eq.s32.totalorder %s20, 1
    %p179 = por %p177, %p178
    %p181 = scmp.ne.s32.totalorder %s164, %s180
    %p182 = scmp.eq.s32.totalorder %s20, 0
    %p183 = por %p181, %p182
    %s184 = ssub.s32 %s14, %s21
    %p185 = scmp.eq.s32.totalorder %s184, 0
    %s187 = sadd.s32 %s186, 1
    %s188 = scalar_select %p185, %s186, %s187
    %p191 = pneg %p185
    %p192 = scmp.eq.s32.totalorder %s14, 1
    %p193 = por %p191, %p192
    %p194 = scmp.ne.s32.totalorder %s186, %s189
    %p195 = scmp.eq.s32.totalorder %s14, 0
    %p196 = por %p194, %p195
    %p197 = scmp.ne.s32.totalorder %s186, %s189
    %p198 = scmp.eq.s32.totalorder %s19, 1
    %p199 = por %p197, %p198
    %p200 = scmp.ne.s32.totalorder %s189, %s190
    %p201 = scmp.eq.s32.totalorder %s19, 0
    %p202 = por %p200, %p201
    %p203 = scmp.ne.s32.totalorder %s189, %s190
    %p204 = scmp.eq.s32.totalorder %s20, 1
    %p205 = por %p203, %p204
    %p207 = scmp.ne.s32.totalorder %s190, %s206
    %p208 = scmp.eq.s32.totalorder %s20, 0
    %p209 = por %p207, %p208
    %p210 = scmp.le.s32.totalorder 1, %s14
    %p211 = scmp.lt.s32.totalorder %s14, 3
    %p212 = pnand %p210, %p211
    %p213 = pneg %p212
    // Predicated region
    $region9: #{block_forward.5} parent=5 // pred_check
      _
    $region10: #{block_forward.5} parent=5 // pred_check_branch
      %215 = sbr.rel (%p212) target = $region12
    $region11: #{block_forward.5} parent=5 // pred_region
      %s216 = ssub.s32 %s14, 1
      // Predicated region
      $region13: #{block_forward.5} parent=11 // pred_check
        %p217 = pneg %p61
      $region14: #{block_forward.5} parent=11 // pred_check_branch
        %219 = sbr.rel (%p217) target = $region16
      $region15: #{block_forward.5} parent=11 // pred_region
        _
      $region16: #{block_forward.5} parent=11 // pred_fallthru
        _
      // Predicated region
      $region17: #{block_forward.5} parent=11 // pred_check
        %p220 = pneg %p82
      $region18: #{block_forward.5} parent=11 // pred_check_branch
        %222 = sbr.rel (%p220) target = $region20
      $region19: #{block_forward.5} parent=11 // pred_region
        _
      $region20: #{block_forward.5} parent=11 // pred_fallthru
        _
      // Predicated region
      $region21: #{block_forward.5} parent=11 // pred_check
        %p223 = pneg %p103
      $region22: #{block_forward.5} parent=11 // pred_check_branch
        %225 = sbr.rel (%p223) target = $region24
      $region23: #{block_forward.5} parent=11 // pred_region
        _
      $region24: #{block_forward.5} parent=11 // pred_fallthru
        _
      // Predicated region
      $region25: #{block_forward.5} parent=11 // pred_check
        %p226 = pneg %p124
      $region26: #{block_forward.5} parent=11 // pred_check_branch
        %228 = sbr.rel (%p226) target = $region28
      $region27: #{block_forward.5} parent=11 // pred_region
        _
      $region28: #{block_forward.5} parent=11 // pred_fallthru
        _
    $region12: #{block_forward.5} parent=5 // pred_fallthru
      _
    %p229 = scmp.lt.s32.totalorder %s14, 2
    // Predicated region
    $region29: #{block_forward.5} parent=5 // pred_check
      %p230 = pneg %p229
    $region30: #{block_forward.5} parent=5 // pred_check_branch
      %232 = sbr.rel (%p230) target = $region32
    $region31: #{block_forward.5} parent=5 // pred_region
      // Predicated region
      $region33: #{block_forward.5} parent=31 // pred_check
        %p233 = pneg %p34
      $region34: #{block_forward.5} parent=31 // pred_check_branch
        %235 = sbr.rel (%p233) target = $region36
      $region35: #{block_forward.5} parent=31 // pred_region
        %p236 = scmp.lt.s32.totalorder %s14, 1
        %s237 = scalar_select %p236, %s14, 1
        %s238 = smul.addr %s237, 32
        %s239 = smul.addr %s238, 4
        %s240 = scalar_lea.vmem %s0, %s239
      $region36: #{block_forward.5} parent=31 // pred_fallthru
        _
    $region32: #{block_forward.5} parent=5 // pred_fallthru
      _
    %p241 = scmp.le.s32.totalorder 1, %s14
    %p242 = scmp.lt.s32.totalorder %s14, 3
    %p243 = pnand %p241, %p242
    %p244 = pneg %p243
    // Predicated region
    $region37: #{block_forward.5} parent=5 // pred_check
      _
    $region38: #{block_forward.5} parent=5 // pred_check_branch
      %246 = sbr.rel (%p243) target = $region40
    $region39: #{block_forward.5} parent=5 // pred_region
      %s247 = ssub.s32 %s14, 1
      %p248 = scmp.lt.s32.totalorder %s19, 1
      %s249 = scalar_select %p248, %s19, 1
      %s250 = smul.addr %s249, 32
      %s251 = smul.addr %s250, 4
      %s252 = scalar_lea.vmem %s0, %s251
      %p253 = pneg %p40
      %p254 = pneg %p37
      %p255 = pneg %p61
      %p256 = pneg %p58
      %p257 = pneg %p82
      %p258 = pneg %p79
      %p259 = pneg %p103
      %p260 = pneg %p100
      %p261 = pneg %p124
      %p262 = pneg %p121
      %p263 = pneg %p150
      %p264 = pneg %p147
      %p265 = scmp.lt.s32.totalorder %s19, 1
      %s266 = scalar_select %p265, %s19, 1
      %s267 = smul.addr %s266, 8
      %s268 = smul.addr %s267, 4
      %s269 = scalar_lea.vmem %s5, %s268
      %p270 = pneg %p176
      %p271 = pneg %p173
      %p272 = scmp.lt.s32.totalorder %s19, 1
      %s273 = scalar_select %p272, %s19, 1
      %s274 = scalar_lea.vmem %s6, %s273
      %p275 = pneg %p202
      %p276 = pneg %p199
      %p277 = scmp.lt.s32.totalorder %s19, 1
      %s278 = scalar_select %p277, %s19, 1
      %s279 = scalar_lea.vmem %s7, %s278
      %p280 = scmp.lt.s32.totalorder %s19, 1
      %s281 = scalar_select %p280, %s19, 1
      %s282 = smul.addr %s281, 32
      %s283 = smul.addr %s282, 4
      %s284 = scalar_lea.vmem %s0, %s283
      %p285 = scmp.lt.s32.totalorder %s19, 1
      %s286 = scalar_select %p285, %s19, 1
      %s287 = smul.addr %s286, 8
      %s288 = smul.addr %s287, 4
      %s289 = scalar_lea.vmem %s5, %s288
      %p290 = scmp.lt.s32.totalorder %s19, 1
      %s291 = scalar_select %p290, %s19, 1
      %s292 = scalar_lea.vmem %s6, %s291
      %p293 = scmp.lt.s32.totalorder %s19, 1
      %s294 = scalar_select %p293, %s19, 1
      %s295 = scalar_lea.vmem %s7, %s294
      %v297 = vld [vmem:[%s284] sm:$0xf]
      %v298 = vld [vmem:[%s284 + $0x4] sm:$0xf]
      %v299 = vld [vmem:[%s284 + $0x8] sm:$0xf]
      %v300 = vld [vmem:[%s284 + $0xc] sm:$0xf]
      %v301 = vld [vmem:[%s284 + $0x10] sm:$0xf]
      %v302 = vld [vmem:[%s284 + $0x14] sm:$0xf]
      %v303 = vld [vmem:[%s284 + $0x18] sm:$0xf]
      %v304 = vld [vmem:[%s284 + $0x1c] sm:$0xf]
      %v305 = vld [vmem:[%s284 + $0x20] sm:$0xf]
      %v306 = vld [vmem:[%s284 + $0x24] sm:$0xf]
      %v307 = vld [vmem:[%s284 + $0x28] sm:$0xf]
      %v308 = vld [vmem:[%s284 + $0x2c] sm:$0xf]
      %v309 = vld [vmem:[%s284 + $0x30] sm:$0xf]
      %v310 = vld [vmem:[%s284 + $0x34] sm:$0xf]
      %v311 = vld [vmem:[%s284 + $0x38] sm:$0xf]
      %v312 = vld [vmem:[%s284 + $0x3c] sm:$0xf]
      %v313 = vld [vmem:[%s284 + $0x40] sm:$0xf]
      %v314 = vld [vmem:[%s284 + $0x44] sm:$0xf]
      %v315 = vld [vmem:[%s284 + $0x48] sm:$0xf]
      %v316 = vld [vmem:[%s284 + $0x4c] sm:$0xf]
      %v317 = vld [vmem:[%s284 + $0x50] sm:$0xf]
      %v318 = vld [vmem:[%s284 + $0x54] sm:$0xf]
      %v319 = vld [vmem:[%s284 + $0x58] sm:$0xf]
      %v320 = vld [vmem:[%s284 + $0x5c] sm:$0xf]
      %v321 = vld [vmem:[%s284 + $0x60] sm:$0xf]
      %v322 = vld [vmem:[%s284 + $0x64] sm:$0xf]
      %v323 = vld [vmem:[%s284 + $0x68] sm:$0xf]
      %v324 = vld [vmem:[%s284 + $0x6c] sm:$0xf]
      %v325 = vld [vmem:[%s284 + $0x70] sm:$0xf]
      %v326 = vld [vmem:[%s284 + $0x74] sm:$0xf]
      %v327 = vld [vmem:[%s284 + $0x78] sm:$0xf]
      %v328 = vld [vmem:[%s284 + $0x7c] sm:$0xf]
      %v329 = vunpack.c.l.bf16 %v297
      %v330 = vunpack.c.l.bf16 %v298
      %v331 = vunpack.c.l.bf16 %v299
      %v332 = vunpack.c.l.bf16 %v300
      %v333 = vunpack.c.l.bf16 %v301
      %v334 = vunpack.c.l.bf16 %v302
      %v335 = vunpack.c.l.bf16 %v303
      %v336 = vunpack.c.l.bf16 %v304
      %v337 = vunpack.c.l.bf16 %v305
      %v338 = vunpack.c.l.bf16 %v306
      %v339 = vunpack.c.l.bf16 %v307
      %v340 = vunpack.c.l.bf16 %v308
      %v341 = vunpack.c.l.bf16 %v309
      %v342 = vunpack.c.l.bf16 %v310
      %v343 = vunpack.c.l.bf16 %v311
      %v344 = vunpack.c.l.bf16 %v312
      %v345 = vunpack.c.l.bf16 %v313
      %v346 = vunpack.c.l.bf16 %v314
      %v347 = vunpack.c.l.bf16 %v315
      %v348 = vunpack.c.l.bf16 %v316
      %v349 = vunpack.c.l.bf16 %v317
      %v350 = vunpack.c.l.bf16 %v318
      %v351 = vunpack.c.l.bf16 %v319
      %v352 = vunpack.c.l.bf16 %v320
      %v353 = vunpack.c.l.bf16 %v321
      %v354 = vunpack.c.l.bf16 %v322
      %v355 = vunpack.c.l.bf16 %v323
      %v356 = vunpack.c.l.bf16 %v324
      %v357 = vunpack.c.l.bf16 %v325
      %v358 = vunpack.c.l.bf16 %v326
      %v359 = vunpack.c.l.bf16 %v327
      %v360 = vunpack.c.l.bf16 %v328
      %v361 = vld [vmem:[%s1] sm:$0x1]
      %v363 = vlaneseq
      %v364 = vshrl.u32 %v363, 7
      %v365 = vsub.s32 0, %v364
      %v366 = vrot.slane %v361, %v365
      %v368 = vmul.f32 %v329, %v366
      %v369 = vmul.f32 %v330, %v366
      %v370 = vmul.f32 %v331, %v366
      %v371 = vmul.f32 %v332, %v366
      %v372 = vmul.f32 %v333, %v366
      %v373 = vmul.f32 %v334, %v366
      %v374 = vmul.f32 %v335, %v366
      %v375 = vmul.f32 %v336, %v366
      %v376 = vmul.f32 %v337, %v366
      %v377 = vmul.f32 %v338, %v366
      %v378 = vmul.f32 %v339, %v366
      %v379 = vmul.f32 %v340, %v366
      %v380 = vmul.f32 %v341, %v366
      %v381 = vmul.f32 %v342, %v366
      %v382 = vmul.f32 %v343, %v366
      %v383 = vmul.f32 %v344, %v366
      %v384 = vmul.f32 %v345, %v366
      %v385 = vmul.f32 %v346, %v366
      %v386 = vmul.f32 %v347, %v366
      %v387 = vmul.f32 %v348, %v366
      %v388 = vmul.f32 %v349, %v366
      %v389 = vmul.f32 %v350, %v366
      %v390 = vmul.f32 %v351, %v366
      %v391 = vmul.f32 %v352, %v366
      %v392 = vmul.f32 %v353, %v366
      %v393 = vmul.f32 %v354, %v366
      %v394 = vmul.f32 %v355, %v366
      %v395 = vmul.f32 %v356, %v366
      %v396 = vmul.f32 %v357, %v366
      %v397 = vmul.f32 %v358, %v366
      %v398 = vmul.f32 %v359, %v366
      %v399 = vmul.f32 %v360, %v366
      %v400 = vld [vmem:[%s2] sm:$0x1]
      %v402 = vlaneseq
      %v403 = vshrl.u32 %v402, 7
      %v404 = vsub.s32 0, %v403
      %v405 = vrot.slane %v400, %v404
      %v407 = vadd.f32 %v368, %v405
      %v408 = vadd.f32 %v369, %v405
      %v409 = vadd.f32 %v370, %v405
      %v410 = vadd.f32 %v371, %v405
      %v411 = vadd.f32 %v372, %v405
      %v412 = vadd.f32 %v373, %v405
      %v413 = vadd.f32 %v374, %v405
      %v414 = vadd.f32 %v375, %v405
      %v415 = vadd.f32 %v376, %v405
      %v416 = vadd.f32 %v377, %v405
      %v417 = vadd.f32 %v378, %v405
      %v418 = vadd.f32 %v379, %v405
      %v419 = vadd.f32 %v380, %v405
      %v420 = vadd.f32 %v381, %v405
      %v421 = vadd.f32 %v382, %v405
      %v422 = vadd.f32 %v383, %v405
      %v423 = vadd.f32 %v384, %v405
      %v424 = vadd.f32 %v385, %v405
      %v425 = vadd.f32 %v386, %v405
      %v426 = vadd.f32 %v387, %v405
      %v427 = vadd.f32 %v388, %v405
      %v428 = vadd.f32 %v389, %v405
      %v429 = vadd.f32 %v390, %v405
      %v430 = vadd.f32 %v391, %v405
      %v431 = vadd.f32 %v392, %v405
      %v432 = vadd.f32 %v393, %v405
      %v433 = vadd.f32 %v394, %v405
      %v434 = vadd.f32 %v395, %v405
      %v435 = vadd.f32 %v396, %v405
      %v436 = vadd.f32 %v397, %v405
      %v437 = vadd.f32 %v398, %v405
      %v438 = vadd.f32 %v399, %v405
      %v439 = vmax.f32 %v407, 0.0
      %v440 = vmax.f32 %v408, 0.0
      %v441 = vmax.f32 %v409, 0.0
      %v442 = vmax.f32 %v410, 0.0
      %v443 = vmax.f32 %v411, 0.0
      %v444 = vmax.f32 %v412, 0.0
      %v445 = vmax.f32 %v413, 0.0
      %v446 = vmax.f32 %v414, 0.0
      %v447 = vmax.f32 %v415, 0.0
      %v448 = vmax.f32 %v416, 0.0
      %v449 = vmax.f32 %v417, 0.0
      %v450 = vmax.f32 %v418, 0.0
      %v451 = vmax.f32 %v419, 0.0
      %v452 = vmax.f32 %v420, 0.0
      %v453 = vmax.f32 %v421, 0.0
      %v454 = vmax.f32 %v422, 0.0
      %v455 = vmax.f32 %v423, 0.0
      %v456 = vmax.f32 %v424, 0.0
      %v457 = vmax.f32 %v425, 0.0
      %v458 = vmax.f32 %v426, 0.0
      %v459 = vmax.f32 %v427, 0.0
      %v460 = vmax.f32 %v428, 0.0
      %v461 = vmax.f32 %v429, 0.0
      %v462 = vmax.f32 %v430, 0.0
      %v463 = vmax.f32 %v431, 0.0
      %v464 = vmax.f32 %v432, 0.0
      %v465 = vmax.f32 %v433, 0.0
      %v466 = vmax.f32 %v434, 0.0
      %v467 = vmax.f32 %v435, 0.0
      %v468 = vmax.f32 %v436, 0.0
      %v469 = vmax.f32 %v437, 0.0
      %v470 = vmax.f32 %v438, 0.0
      %471 = vst [vmem:[#allocation2] sm:$0xff] 0.0
      %472 = vst [vmem:[#allocation2 + $0x8] sm:$0xff] 0.0
      %473 = vst [vmem:[#allocation2 + $0x10] sm:$0xff] 0.0
      %474 = vst [vmem:[#allocation2 + $0xd8] sm:$0xff] 0.0
      %475 = vst [vmem:[#allocation2 + $0xe0] sm:$0xff] 0.0
      %476 = vst [vmem:[#allocation2 + $0xe8] sm:$0xff] 0.0
      %477 = vst [vmem:[#allocation2 + $0x1b0] sm:$0xff] 0.0
      %478 = vst [vmem:[#allocation2 + $0x1b8] sm:$0xff] 0.0
      %479 = vst [vmem:[#allocation2 + $0x1c0] sm:$0xff] 0.0
      %480 = vst [vmem:[#allocation2 + $0x288] sm:$0xff] 0.0
      %481 = vst [vmem:[#allocation2 + $0x290] sm:$0xff] 0.0
      %482 = vst [vmem:[#allocation2 + $0x298] sm:$0xff] 0.0
      %s483 = scalar_lea.vmem [#allocation2], 192
      %484 = vst [vmem:[%s483] sm:$0xff] 0.0
      %485 = vst [vmem:[%s483 + $0x8] sm:$0xff] 0.0
      %486 = vst [vmem:[%s483 + $0x10] sm:$0xff] 0.0
      %487 = vst [vmem:[%s483 + $0xd8] sm:$0xff] 0.0
      %488 = vst [vmem:[%s483 + $0xe0] sm:$0xff] 0.0
      %489 = vst [vmem:[%s483 + $0xe8] sm:$0xff] 0.0
      %490 = vst [vmem:[%s483 + $0x1b0] sm:$0xff] 0.0
      %491 = vst [vmem:[%s483 + $0x1b8] sm:$0xff] 0.0
      %492 = vst [vmem:[%s483 + $0x1c0] sm:$0xff] 0.0
      %493 = vst [vmem:[%s483 + $0x288] sm:$0xff] 0.0
      %494 = vst [vmem:[%s483 + $0x290] sm:$0xff] 0.0
      %495 = vst [vmem:[%s483 + $0x298] sm:$0xff] 0.0
      %496 = vst [vmem:[#allocation2] sm:$0xff] 0.0
      %497 = vst [vmem:[#allocation2 + $0x18] sm:$0xff] 0.0
      %498 = vst [vmem:[#allocation2 + $0x30] sm:$0xff] 0.0
      %499 = vst [vmem:[#allocation2 + $0x48] sm:$0xff] 0.0
      %500 = vst [vmem:[#allocation2 + $0x60] sm:$0xff] 0.0
      %501 = vst [vmem:[#allocation2 + $0x78] sm:$0xff] 0.0
      %502 = vst [vmem:[#allocation2 + $0x90] sm:$0xff] 0.0
      %503 = vst [vmem:[#allocation2 + $0xa8] sm:$0xff] 0.0
      %504 = vst [vmem:[#allocation2 + $0xc0] sm:$0xff] 0.0
      %505 = vst [vmem:[#allocation2 + $0xd8] sm:$0xff] 0.0
      %506 = vst [vmem:[#allocation2 + $0xf0] sm:$0xff] 0.0
      %507 = vst [vmem:[#allocation2 + $0x108] sm:$0xff] 0.0
      %508 = vst [vmem:[#allocation2 + $0x120] sm:$0xff] 0.0
      %509 = vst [vmem:[#allocation2 + $0x138] sm:$0xff] 0.0
      %510 = vst [vmem:[#allocation2 + $0x150] sm:$0xff] 0.0
      %511 = vst [vmem:[#allocation2 + $0x168] sm:$0xff] 0.0
      %512 = vst [vmem:[#allocation2 + $0x180] sm:$0xff] 0.0
      %513 = vst [vmem:[#allocation2 + $0x198] sm:$0xff] 0.0
      %514 = vst [vmem:[#allocation2 + $0x1b0] sm:$0xff] 0.0
      %515 = vst [vmem:[#allocation2 + $0x1c8] sm:$0xff] 0.0
      %516 = vst [vmem:[#allocation2 + $0x1e0] sm:$0xff] 0.0
      %517 = vst [vmem:[#allocation2 + $0x1f8] sm:$0xff] 0.0
      %518 = vst [vmem:[#allocation2 + $0x210] sm:$0xff] 0.0
      %519 = vst [vmem:[#allocation2 + $0x228] sm:$0xff] 0.0
      %520 = vst [vmem:[#allocation2 + $0x240] sm:$0xff] 0.0
      %521 = vst [vmem:[#allocation2 + $0x258] sm:$0xff] 0.0
      %522 = vst [vmem:[#allocation2 + $0x270] sm:$0xff] 0.0
      %523 = vst [vmem:[#allocation2 + $0x288] sm:$0xff] 0.0
      %524 = vst [vmem:[#allocation2 + $0x2a0] sm:$0xff] 0.0
      %525 = vst [vmem:[#allocation2 + $0x2b8] sm:$0xff] 0.0
      %526 = vst [vmem:[#allocation2 + $0x2d0] sm:$0xff] 0.0
      %527 = vst [vmem:[#allocation2 + $0x2e8] sm:$0xff] 0.0
      %528 = vst [vmem:[#allocation2 + $0x300] sm:$0xff] 0.0
      %529 = vst [vmem:[#allocation2 + $0x318] sm:$0xff] 0.0
      %530 = vst [vmem:[#allocation2 + $0x330] sm:$0xff] 0.0
      %531 = vst [vmem:[#allocation2 + $0x348] sm:$0xff] 0.0
      %532 = vst [vmem:[#allocation2 + $0x10] sm:$0xff] 0.0
      %533 = vst [vmem:[#allocation2 + $0x28] sm:$0xff] 0.0
      %534 = vst [vmem:[#allocation2 + $0x40] sm:$0xff] 0.0
      %535 = vst [vmem:[#allocation2 + $0x58] sm:$0xff] 0.0
      %536 = vst [vmem:[#allocation2 + $0x70] sm:$0xff] 0.0
      %537 = vst [vmem:[#allocation2 + $0x88] sm:$0xff] 0.0
      %538 = vst [vmem:[#allocation2 + $0xa0] sm:$0xff] 0.0
      %539 = vst [vmem:[#allocation2 + $0xb8] sm:$0xff] 0.0
      %540 = vst [vmem:[#allocation2 + $0xd0] sm:$0xff] 0.0
      %541 = vst [vmem:[#allocation2 + $0xe8] sm:$0xff] 0.0
      %542 = vst [vmem:[#allocation2 + $0x100] sm:$0xff] 0.0
      %543 = vst [vmem:[#allocation2 + $0x118] sm:$0xff] 0.0
      %544 = vst [vmem:[#allocation2 + $0x130] sm:$0xff] 0.0
      %545 = vst [vmem:[#allocation2 + $0x148] sm:$0xff] 0.0
      %546 = vst [vmem:[#allocation2 + $0x160] sm:$0xff] 0.0
      %547 = vst [vmem:[#allocation2 + $0x178] sm:$0xff] 0.0
      %548 = vst [vmem:[#allocation2 + $0x190] sm:$0xff] 0.0
      %549 = vst [vmem:[#allocation2 + $0x1a8] sm:$0xff] 0.0
      %550 = vst [vmem:[#allocation2 + $0x1c0] sm:$0xff] 0.0
      %551 = vst [vmem:[#allocation2 + $0x1d8] sm:$0xff] 0.0
      %552 = vst [vmem:[#allocation2 + $0x1f0] sm:$0xff] 0.0
      %553 = vst [vmem:[#allocation2 + $0x208] sm:$0xff] 0.0
      %554 = vst [vmem:[#allocation2 + $0x220] sm:$0xff] 0.0
      %555 = vst [vmem:[#allocation2 + $0x238] sm:$0xff] 0.0
      %556 = vst [vmem:[#allocation2 + $0x250] sm:$0xff] 0.0
      %557 = vst [vmem:[#allocation2 + $0x268] sm:$0xff] 0.0
      %558 = vst [vmem:[#allocation2 + $0x280] sm:$0xff] 0.0
      %559 = vst [vmem:[#allocation2 + $0x298] sm:$0xff] 0.0
      %560 = vst [vmem:[#allocation2 + $0x2b0] sm:$0xff] 0.0
      %561 = vst [vmem:[#allocation2 + $0x2c8] sm:$0xff] 0.0
      %562 = vst [vmem:[#allocation2 + $0x2e0] sm:$0xff] 0.0
      %563 = vst [vmem:[#allocation2 + $0x2f8] sm:$0xff] 0.0
      %564 = vst [vmem:[#allocation2 + $0x310] sm:$0xff] 0.0
      %565 = vst [vmem:[#allocation2 + $0x328] sm:$0xff] 0.0
      %566 = vst [vmem:[#allocation2 + $0x340] sm:$0xff] 0.0
      %567 = vst [vmem:[#allocation2 + $0x358] sm:$0xff] 0.0
      %s568 = scalar_lea.vmem [#allocation2], 24
      %569 = vst [vmem:[%s568 + $0x8] sm:$0xff] %v463
      %570 = vst [vmem:[%s568 + $0x20] sm:$0xff] %v464
      %571 = vst [vmem:[%s568 + $0x38] sm:$0xff] %v465
      %572 = vst [vmem:[%s568 + $0x50] sm:$0xff] %v466
      %573 = vst [vmem:[%s568 + $0x68] sm:$0xff] %v467
      %574 = vst [vmem:[%s568 + $0x80] sm:$0xff] %v468
      %575 = vst [vmem:[%s568 + $0x98] sm:$0xff] %v469
      %576 = vst [vmem:[%s568 + $0xb0] sm:$0xff] %v470
      %s577 = scalar_lea.vmem [#allocation2], 240
      %578 = vst [vmem:[%s577 + $0x8] sm:$0xff] %v455
      %579 = vst [vmem:[%s577 + $0x20] sm:$0xff] %v456
      %580 = vst [vmem:[%s577 + $0x38] sm:$0xff] %v457
      %581 = vst [vmem:[%s577 + $0x50] sm:$0xff] %v458
      %582 = vst [vmem:[%s577 + $0x68] sm:$0xff] %v459
      %583 = vst [vmem:[%s577 + $0x80] sm:$0xff] %v460
      %584 = vst [vmem:[%s577 + $0x98] sm:$0xff] %v461
      %585 = vst [vmem:[%s577 + $0xb0] sm:$0xff] %v462
      %s586 = scalar_lea.vmem [#allocation2], 432
      %587 = vst [vmem:[%s586 + $0x8] sm:$0xff] %v447
      %588 = vst [vmem:[%s586 + $0x20] sm:$0xff] %v448
      %589 = vst [vmem:[%s586 + $0x38] sm:$0xff] %v449
      %590 = vst [vmem:[%s586 + $0x50] sm:$0xff] %v450
      %591 = vst [vmem:[%s586 + $0x68] sm:$0xff] %v451
      %592 = vst [vmem:[%s586 + $0x80] sm:$0xff] %v452
      %593 = vst [vmem:[%s586 + $0x98] sm:$0xff] %v453
      %594 = vst [vmem:[%s586 + $0xb0] sm:$0xff] %v454
      %s595 = scalar_lea.vmem [#allocation2], 648
      %596 = vst [vmem:[%s595 + $0x8] sm:$0xff] %v439
      %597 = vst [vmem:[%s595 + $0x20] sm:$0xff] %v440
      %598 = vst [vmem:[%s595 + $0x38] sm:$0xff] %v441
      %599 = vst [vmem:[%s595 + $0x50] sm:$0xff] %v442
      %600 = vst [vmem:[%s595 + $0x68] sm:$0xff] %v443
      %601 = vst [vmem:[%s595 + $0x80] sm:$0xff] %v444
      %602 = vst [vmem:[%s595 + $0x98] sm:$0xff] %v445
      %603 = vst [vmem:[%s595 + $0xb0] sm:$0xff] %v446
      %v604 = vld [vmem:[#allocation2 + $0x7] sm:$0xff]
      %v605 = vld [vmem:[#allocation2 + $0x1f] sm:$0xff]
      %v606 = vld [vmem:[#allocation2 + $0x37] sm:$0xff]
      %v607 = vld [vmem:[#allocation2 + $0x4f] sm:$0xff]
      %v608 = vld [vmem:[#allocation2 + $0x67] sm:$0xff]
      %v609 = vld [vmem:[#allocation2 + $0x7f] sm:$0xff]
      %v610 = vld [vmem:[#allocation2 + $0x97] sm:$0xff]
      %v611 = vld [vmem:[#allocation2 + $0xaf] sm:$0xff]
      %v612 = vpack.c.bf16 %v605, %v604
      %v613 = vpack.c.bf16 %v607, %v606
      %v614 = vpack.c.bf16 %v609, %v608
      %v615 = vpack.c.bf16 %v611, %v610
      %s616 = scalar_lea.vmem [#allocation2], 216
      %v617 = vld [vmem:[%s616 + $0x8] sm:$0xff]
      %v618 = vld [vmem:[%s616 + $0x20] sm:$0xff]
      %v619 = vld [vmem:[%s616 + $0x38] sm:$0xff]
      %v620 = vld [vmem:[%s616 + $0x50] sm:$0xff]
      %v621 = vld [vmem:[%s616 + $0x68] sm:$0xff]
      %v622 = vld [vmem:[%s616 + $0x80] sm:$0xff]
      %v623 = vld [vmem:[%s616 + $0x98] sm:$0xff]
      %v624 = vld [vmem:[%s616 + $0xb0] sm:$0xff]
      %v625 = vpack.c.bf16 %v618, %v617
      %v626 = vpack.c.bf16 %v620, %v619
      %v627 = vpack.c.bf16 %v622, %v621
      %v628 = vpack.c.bf16 %v624, %v623
      %v629 = vld [vmem:[%s3] sm:$0xf]
      %v630 = vld [vmem:[%s3 + $0x4] sm:$0xf]
      %v631 = vld [vmem:[%s3 + $0x8] sm:$0xf]
      %v632 = vld [vmem:[%s3 + $0xc] sm:$0xf]
      %v633 = vld [vmem:[%s3 + $0x10] sm:$0xf]
      %v634 = vld [vmem:[%s3 + $0x14] sm:$0xf]
      %v635 = vld [vmem:[%s3 + $0x18] sm:$0xf]
      %v636 = vld [vmem:[%s3 + $0x1c] sm:$0xf]
      %v637 = vld [vmem:[%s3 + $0x20] sm:$0xf]
      %v638 = vld [vmem:[%s3 + $0x24] sm:$0xf]
      %v639 = vld [vmem:[%s3 + $0x28] sm:$0xf]
      %v640 = vld [vmem:[%s3 + $0x2c] sm:$0xf]
      %v641 = vld [vmem:[%s3 + $0x30] sm:$0xf]
      %v642 = vld [vmem:[%s3 + $0x34] sm:$0xf]
      %v643 = vld [vmem:[%s3 + $0x38] sm:$0xf]
      %v644 = vld [vmem:[%s3 + $0x3c] sm:$0xf]
      %v645 = vld [vmem:[%s3 + $0x40] sm:$0xf]
      %v646 = vld [vmem:[%s3 + $0x44] sm:$0xf]
      %v647 = vld [vmem:[%s3 + $0x48] sm:$0xf]
      %v648 = vld [vmem:[%s3 + $0x4c] sm:$0xf]
      %v649 = vld [vmem:[%s3 + $0x50] sm:$0xf]
      %v650 = vld [vmem:[%s3 + $0x54] sm:$0xf]
      %v651 = vld [vmem:[%s3 + $0x58] sm:$0xf]
      %v652 = vld [vmem:[%s3 + $0x5c] sm:$0xf]
      %v653 = vld [vmem:[%s3 + $0x60] sm:$0xf]
      %v654 = vld [vmem:[%s3 + $0x64] sm:$0xf]
      %v655 = vld [vmem:[%s3 + $0x68] sm:$0xf]
      %v656 = vld [vmem:[%s3 + $0x6c] sm:$0xf]
      %v657 = vld [vmem:[%s3 + $0x70] sm:$0xf]
      %v658 = vld [vmem:[%s3 + $0x74] sm:$0xf]
      %v659 = vld [vmem:[%s3 + $0x78] sm:$0xf]
      %v660 = vld [vmem:[%s3 + $0x7c] sm:$0xf]
      %v661 = vld [vmem:[#allocation2 + $0x8] sm:$0xff]
      %v662 = vld [vmem:[#allocation2 + $0x20] sm:$0xff]
      %v663 = vld [vmem:[#allocation2 + $0x38] sm:$0xff]
      %v664 = vld [vmem:[#allocation2 + $0x50] sm:$0xff]
      %v665 = vld [vmem:[#allocation2 + $0x68] sm:$0xff]
      %v666 = vld [vmem:[#allocation2 + $0x80] sm:$0xff]
      %v667 = vld [vmem:[#allocation2 + $0x98] sm:$0xff]
      %v668 = vld [vmem:[#allocation2 + $0xb0] sm:$0xff]
      %v669 = vpack.c.bf16 %v662, %v661
      %v670 = vpack.c.bf16 %v664, %v663
      %v671 = vpack.c.bf16 %v666, %v665
      %v672 = vpack.c.bf16 %v668, %v667
      %v673 = vld [vmem:[%s586 + $0x7] sm:$0xff]
      %v674 = vld [vmem:[%s586 + $0x1f] sm:$0xff]
      %v675 = vld [vmem:[%s586 + $0x37] sm:$0xff]
      %v676 = vld [vmem:[%s586 + $0x4f] sm:$0xff]
      %v677 = vld [vmem:[%s586 + $0x67] sm:$0xff]
      %v678 = vld [vmem:[%s586 + $0x7f] sm:$0xff]
      %v679 = vld [vmem:[%s586 + $0x97] sm:$0xff]
      %v680 = vld [vmem:[%s586 + $0xaf] sm:$0xff]
      %v681 = vpack.c.bf16 %v674, %v673
      %v682 = vpack.c.bf16 %v676, %v675
      %v683 = vpack.c.bf16 %v678, %v677
      %v684 = vpack.c.bf16 %v680, %v679
      %s685 = scalar_lea.vmem %s3, 128
      %v686 = vld [vmem:[%s685] sm:$0xf]
      %v687 = vld [vmem:[%s685 + $0x4] sm:$0xf]
      %v688 = vld [vmem:[%s685 + $0x8] sm:$0xf]
      %v689 = vld [vmem:[%s685 + $0xc] sm:$0xf]
      %v690 = vld [vmem:[%s685 + $0x10] sm:$0xf]
      %v691 = vld [vmem:[%s685 + $0x14] sm:$0xf]
      %v692 = vld [vmem:[%s685 + $0x18] sm:$0xf]
      %v693 = vld [vmem:[%s685 + $0x1c] sm:$0xf]
      %v694 = vld [vmem:[%s685 + $0x20] sm:$0xf]
      %v695 = vld [vmem:[%s685 + $0x24] sm:$0xf]
      %v696 = vld [vmem:[%s685 + $0x28] sm:$0xf]
      %v697 = vld [vmem:[%s685 + $0x2c] sm:$0xf]
      %v698 = vld [vmem:[%s685 + $0x30] sm:$0xf]
      %v699 = vld [vmem:[%s685 + $0x34] sm:$0xf]
      %v700 = vld [vmem:[%s685 + $0x38] sm:$0xf]
      %v701 = vld [vmem:[%s685 + $0x3c] sm:$0xf]
      %v702 = vld [vmem:[%s685 + $0x40] sm:$0xf]
      %v703 = vld [vmem:[%s685 + $0x44] sm:$0xf]
      %v704 = vld [vmem:[%s685 + $0x48] sm:$0xf]
      %v705 = vld [vmem:[%s685 + $0x4c] sm:$0xf]
      %v706 = vld [vmem:[%s685 + $0x50] sm:$0xf]
      %v707 = vld [vmem:[%s685 + $0x54] sm:$0xf]
      %v708 = vld [vmem:[%s685 + $0x58] sm:$0xf]
      %v709 = vld [vmem:[%s685 + $0x5c] sm:$0xf]
      %v710 = vld [vmem:[%s685 + $0x60] sm:$0xf]
      %v711 = vld [vmem:[%s685 + $0x64] sm:$0xf]
      %v712 = vld [vmem:[%s685 + $0x68] sm:$0xf]
      %v713 = vld [vmem:[%s685 + $0x6c] sm:$0xf]
      %v714 = vld [vmem:[%s685 + $0x70] sm:$0xf]
      %v715 = vld [vmem:[%s685 + $0x74] sm:$0xf]
      %v716 = vld [vmem:[%s685 + $0x78] sm:$0xf]
      %v717 = vld [vmem:[%s685 + $0x7c] sm:$0xf]
      %v750 = vunpack.c.l.b16 %v686
      %v751 = vunpack.c.l.b16 %v687
      %v752 = vunpack.c.l.b16 %v688
      %v753 = vunpack.c.l.b16 %v689
      %v754 = vunpack.c.l.b16 %v690
      %v755 = vunpack.c.l.b16 %v691
      %v756 = vunpack.c.l.b16 %v692
      %v757 = vunpack.c.l.b16 %v693
      %v758 = vunpack.c.l.b16 %v694
      %v759 = vunpack.c.l.b16 %v695
      %v760 = vunpack.c.l.b16 %v696
      %v761 = vunpack.c.l.b16 %v697
      %v762 = vunpack.c.l.b16 %v698
      %v763 = vunpack.c.l.b16 %v699
      %v764 = vunpack.c.l.b16 %v700
      %v765 = vunpack.c.l.b16 %v701
      %v766 = vunpack.c.l.b16 %v702
      %v767 = vunpack.c.l.b16 %v703
      %v768 = vunpack.c.l.b16 %v704
      %v769 = vunpack.c.l.b16 %v705
      %v770 = vunpack.c.l.b16 %v706
      %v771 = vunpack.c.l.b16 %v707
      %v772 = vunpack.c.l.b16 %v708
      %v773 = vunpack.c.l.b16 %v709
      %v774 = vunpack.c.l.b16 %v710
      %v775 = vunpack.c.l.b16 %v711
      %v776 = vunpack.c.l.b16 %v712
      %v777 = vunpack.c.l.b16 %v713
      %v778 = vunpack.c.l.b16 %v714
      %v779 = vunpack.c.l.b16 %v715
      %v780 = vunpack.c.l.b16 %v716
      %v781 = vunpack.c.l.b16 %v717
      %v782 = vpack.c.b16 %v751, %v750
      %v783 = vpack.c.b16 %v753, %v752
      %v784 = vpack.c.b16 %v755, %v754
      %v785 = vpack.c.b16 %v757, %v756
      %v786 = vpack.c.b16 %v759, %v758
      %v787 = vpack.c.b16 %v761, %v760
      %v788 = vpack.c.b16 %v763, %v762
      %v789 = vpack.c.b16 %v765, %v764
      %v790 = vpack.c.b16 %v767, %v766
      %v791 = vpack.c.b16 %v769, %v768
      %v792 = vpack.c.b16 %v771, %v770
      %v793 = vpack.c.b16 %v773, %v772
      %v794 = vpack.c.b16 %v775, %v774
      %v795 = vpack.c.b16 %v777, %v776
      %v796 = vpack.c.b16 %v779, %v778
      %v797 = vpack.c.b16 %v781, %v780
      %814 = vmatprep.subr.bf16.mxu0 0
      %815 = vmatpush1.bf16.msra.mxu0 %v782
      %816 = vmatprep.subr.bf16.mxu0 0
      %817 = vmatpush1.bf16.msra.mxu0 %v783
      %818 = vmatprep.subr.bf16.mxu0 0
      %819 = vmatpush1.bf16.msra.mxu0 %v784
      %820 = vmatprep.subr.bf16.mxu0 0
      %821 = vmatpush1.bf16.msra.mxu0 %v785
      %822 = vmatprep.subr.bf16.mxu0 0
      %823 = vmatpush1.bf16.msra.mxu0 %v786
      %824 = vmatprep.subr.bf16.mxu0 0
      %825 = vmatpush1.bf16.msra.mxu0 %v787
      %826 = vmatprep.subr.bf16.mxu0 0
      %827 = vmatpush1.bf16.msra.mxu0 %v788
      %828 = vmatprep.subr.bf16.mxu0 0
      %829 = vmatpush1.bf16.msra.mxu0 %v789
      %830 = vmatprep.subr.bf16.mxu0 0
      %831 = vmatpush1.bf16.msra.mxu0 %v790
      %832 = vmatprep.subr.bf16.mxu0 0
      %833 = vmatpush1.bf16.msra.mxu0 %v791
      %834 = vmatprep.subr.bf16.mxu0 0
      %835 = vmatpush1.bf16.msra.mxu0 %v792
      %836 = vmatprep.subr.bf16.mxu0 0
      %837 = vmatpush1.bf16.msra.mxu0 %v793
      %838 = vmatprep.subr.bf16.mxu0 0
      %839 = vmatpush1.bf16.msra.mxu0 %v794
      %840 = vmatprep.subr.bf16.mxu0 0
      %841 = vmatpush1.bf16.msra.mxu0 %v795
      %842 = vmatprep.subr.bf16.mxu0 0
      %843 = vmatpush1.bf16.msra.mxu0 %v796
      %844 = vmatprep.subr.bf16.mxu0 0
      %845 = vmatpush1.bf16.msra.mxu0 %v797
      %846 = vmatprep.mubr.bf16.mxu0 %v681
      %847 = vmatmul.mubr.bf16.gmra.mrb[0].mxu0 %v669
      %v848 = vpop.f32.mrb[0].mxu0
      %v849 = vadd.f32 0.0, %v848
      %v850 = vpop.f32.mrb[0].mxu0
      %v851 = vpop.f32.mrb[0].mxu0
      %v852 = vadd.f32 0.0, %v851
      %v853 = vpop.f32.mrb[0].mxu0
      %854 = vmatprep.mubr.bf16.mxu0 %v682
      %855 = vmatmul.mubr.bf16.gmra.mrb[0].mxu0 %v670
      %v856 = vpop.f32.mrb[0].mxu0
      %v857 = vadd.f32 0.0, %v856
      %v858 = vpop.f32.mrb[0].mxu0
      %v859 = vpop.f32.mrb[0].mxu0
      %v860 = vadd.f32 0.0, %v859
      %v861 = vpop.f32.mrb[0].mxu0
      %862 = vmatprep.mubr.bf16.mxu0 %v683
      %863 = vmatmul.mubr.bf16.gmra.mrb[0].mxu0 %v671
      %v864 = vpop.f32.mrb[0].mxu0
      %v865 = vadd.f32 0.0, %v864
      %v866 = vpop.f32.mrb[0].mxu0
      %v867 = vpop.f32.mrb[0].mxu0
      %v868 = vadd.f32 0.0, %v867
      %v869 = vpop.f32.mrb[0].mxu0
      %870 = vmatprep.mubr.bf16.mxu0 %v684
      %871 = vmatmul.mubr.bf16.gmra.mrb[0].mxu0 %v672
      %v872 = vpop.f32.mrb[0].mxu0
      %v873 = vadd.f32 0.0, %v872
      %v874 = vpop.f32.mrb[0].mxu0
      %v875 = vpop.f32.mrb[0].mxu0
      %v876 = vadd.f32 0.0, %v875
      %v877 = vpop.f32.mrb[0].mxu0
      %878 = vdwg.mxu0
      %v911 = vunpack.c.l.b16 %v629
      %v912 = vunpack.c.l.b16 %v630
      %v913 = vunpack.c.l.b16 %v631
      %v914 = vunpack.c.l.b16 %v632
      %v915 = vunpack.c.l.b16 %v633
      %v916 = vunpack.c.l.b16 %v634
      %v917 = vunpack.c.l.b16 %v635
      %v918 = vunpack.c.l.b16 %v636
      %v919 = vunpack.c.l.b16 %v637
      %v920 = vunpack.c.l.b16 %v638
      %v921 = vunpack.c.l.b16 %v639
      %v922 = vunpack.c.l.b16 %v640
      %v923 = vunpack.c.l.b16 %v641
      %v924 = vunpack.c.l.b16 %v642
      %v925 = vunpack.c.l.b16 %v643
      %v926 = vunpack.c.l.b16 %v644
      %v927 = vunpack.c.l.b16 %v645
      %v928 = vunpack.c.l.b16 %v646
      %v929 = vunpack.c.l.b16 %v647
      %v930 = vunpack.c.l.b16 %v648
      %v931 = vunpack.c.l.b16 %v649
      %v932 = vunpack.c.l.b16 %v650
      %v933 = vunpack.c.l.b16 %v651
      %v934 = vunpack.c.l.b16 %v652
      %v935 = vunpack.c.l.b16 %v653
      %v936 = vunpack.c.l.b16 %v654
      %v937 = vunpack.c.l.b16 %v655
      %v938 = vunpack.c.l.b16 %v656
      %v939 = vunpack.c.l.b16 %v657
      %v940 = vunpack.c.l.b16 %v658
      %v941 = vunpack.c.l.b16 %v659
      %v942 = vunpack.c.l.b16 %v660
      %v943 = vpack.c.b16 %v912, %v911
      %v944 = vpack.c.b16 %v914, %v913
      %v945 = vpack.c.b16 %v916, %v915
      %v946 = vpack.c.b16 %v918, %v917
      %v947 = vpack.c.b16 %v920, %v919
      %v948 = vpack.c.b16 %v922, %v921
      %v949 = vpack.c.b16 %v924, %v923
      %v950 = vpack.c.b16 %v926, %v925
      %v951 = vpack.c.b16 %v928, %v927
      %v952 = vpack.c.b16 %v930, %v929
      %v953 = vpack.c.b16 %v932, %v931
      %v954 = vpack.c.b16 %v934, %v933
      %v955 = vpack.c.b16 %v936, %v935
      %v956 = vpack.c.b16 %v938, %v937
      %v957 = vpack.c.b16 %v940, %v939
      %v958 = vpack.c.b16 %v942, %v941
      %975 = vmatprep.subr.bf16.mxu0 0
      %976 = vmatpush1.bf16.msra.mxu0 %v943
      %977 = vmatprep.subr.bf16.mxu0 0
      %978 = vmatpush1.bf16.msra.mxu0 %v944
      %979 = vmatprep.subr.bf16.mxu0 0
      %980 = vmatpush1.bf16.msra.mxu0 %v945
      %981 = vmatprep.subr.bf16.mxu0 0
      %982 = vmatpush1.bf16.msra.mxu0 %v946
      %983 = vmatprep.subr.bf16.mxu0 0
      %984 = vmatpush1.bf16.msra.mxu0 %v947
      %985 = vmatprep.subr.bf16.mxu0 0
      %986 = vmatpush1.bf16.msra.mxu0 %v948
      %987 = vmatprep.subr.bf16.mxu0 0
      %988 = vmatpush1.bf16.msra.mxu0 %v949
      %989 = vmatprep.subr.bf16.mxu0 0
      %990 = vmatpush1.bf16.msra.mxu0 %v950
      %991 = vmatprep.subr.bf16.mxu0 0
      %992 = vmatpush1.bf16.msra.mxu0 %v951
      %993 = vmatprep.subr.bf16.mxu0 0
      %994 = vmatpush1.bf16.msra.mxu0 %v952
      %995 = vmatprep.subr.bf16.mxu0 0
      %996 = vmatpush1.bf16.msra.mxu0 %v953
      %997 = vmatprep.subr.bf16.mxu0 0
      %998 = vmatpush1.bf16.msra.mxu0 %v954
      %999 = vmatprep.subr.bf16.mxu0 0
      %1000 = vmatpush1.bf16.msra.mxu0 %v955
      %1001 = vmatprep.subr.bf16.mxu0 0
      %1002 = vmatpush1.bf16.msra.mxu0 %v956
      %1003 = vmatprep.subr.bf16.mxu0 0
      %1004 = vmatpush1.bf16.msra.mxu0 %v957
      %1005 = vmatprep.subr.bf16.mxu0 0
      %1006 = vmatpush1.bf16.msra.mxu0 %v958
      %1007 = vmatprep.mubr.bf16.mxu0 %v625
      %1008 = vmatmul.mubr.bf16.gmra.mrb[0].mxu0 %v612
      %v1009 = vpop.f32.mrb[0].mxu0
      %v1010 = vadd.f32 %v849, %v1009
      %v1011 = vpop.f32.mrb[0].mxu0
      %v1012 = vpop.f32.mrb[0].mxu0
      %v1013 = vadd.f32 %v852, %v1012
      %v1014 = vpop.f32.mrb[0].mxu0
      %1015 = vmatprep.mubr.bf16.mxu0 %v626
      %1016 = vmatmul.mubr.bf16.gmra.mrb[0].mxu0 %v613
      %v1017 = vpop.f32.mrb[0].mxu0
      %v1018 = vadd.f32 %v857, %v1017
      %v1019 = vpop.f32.mrb[0].mxu0
      %v1020 = vpop.f32.mrb[0].mxu0
      %v1021 = vadd.f32 %v860, %v1020
      %v1022 = vpop.f32.mrb[0].mxu0
      %1023 = vmatprep.mubr.bf16.mxu0 %v627
      %1024 = vmatmul.mubr.bf16.gmra.mrb[0].mxu0 %v614
      %v1025 = vpop.f32.mrb[0].mxu0
      %v1026 = vadd.f32 %v865, %v1025
      %v1027 = vpop.f32.mrb[0].mxu0
      %v1028 = vpop.f32.mrb[0].mxu0
      %v1029 = vadd.f32 %v868, %v1028
      %v1030 = vpop.f32.mrb[0].mxu0
      %1031 = vmatprep.mubr.bf16.mxu0 %v628
      %1032 = vmatmul.mubr.bf16.gmra.mrb[0].mxu0 %v615
      %v1033 = vpop.f32.mrb[0].mxu0
      %v1034 = vadd.f32 %v873, %v1033
      %v1035 = vpop.f32.mrb[0].mxu0
      %v1036 = vpop.f32.mrb[0].mxu0
      %v1037 = vadd.f32 %v876, %v1036
      %v1038 = vpop.f32.mrb[0].mxu0
      %1039 = vdwg.mxu0
      %v1040 = vld [vmem:[%s595 + $0x8] sm:$0xff]
      %v1041 = vld [vmem:[%s595 + $0x20] sm:$0xff]
      %v1042 = vld [vmem:[%s595 + $0x38] sm:$0xff]
      %v1043 = vld [vmem:[%s595 + $0x50] sm:$0xff]
      %v1044 = vld [vmem:[%s595 + $0x68] sm:$0xff]
      %v1045 = vld [vmem:[%s595 + $0x80] sm:$0xff]
      %v1046 = vld [vmem:[%s595 + $0x98] sm:$0xff]
      %v1047 = vld [vmem:[%s595 + $0xb0] sm:$0xff]
      %v1048 = vpack.c.bf16 %v1041, %v1040
      %v1049 = vpack.c.bf16 %v1043, %v1042
      %v1050 = vpack.c.bf16 %v1045, %v1044
      %v1051 = vpack.c.bf16 %v1047, %v1046
      %v1052 = vld [vmem:[%s586 + $0x8] sm:$0xff]
      %v1053 = vld [vmem:[%s586 + $0x20] sm:$0xff]
      %v1054 = vld [vmem:[%s586 + $0x38] sm:$0xff]
      %v1055 = vld [vmem:[%s586 + $0x50] sm:$0xff]
      %v1056 = vld [vmem:[%s586 + $0x68] sm:$0xff]
      %v1057 = vld [vmem:[%s586 + $0x80] sm:$0xff]
      %v1058 = vld [vmem:[%s586 + $0x98] sm:$0xff]
      %v1059 = vld [vmem:[%s586 + $0xb0] sm:$0xff]
      %v1060 = vpack.c.bf16 %v1053, %v1052
      %v1061 = vpack.c.bf16 %v1055, %v1054
      %v1062 = vpack.c.bf16 %v1057, %v1056
      %v1063 = vpack.c.bf16 %v1059, %v1058
      %s1064 = scalar_lea.vmem %s3, 256
      %v1065 = vld [vmem:[%s1064] sm:$0xf]
      %v1066 = vld [vmem:[%s1064 + $0x4] sm:$0xf]
      %v1067 = vld [vmem:[%s1064 + $0x8] sm:$0xf]
      %v1068 = vld [vmem:[%s1064 + $0xc] sm:$0xf]
      %v1069 = vld [vmem:[%s1064 + $0x10] sm:$0xf]
      %v1070 = vld [vmem:[%s1064 + $0x14] sm:$0xf]
      %v1071 = vld [vmem:[%s1064 + $0x18] sm:$0xf]
      %v1072 = vld [vmem:[%s1064 + $0x1c] sm:$0xf]
      %v1073 = vld [vmem:[%s1064 + $0x20] sm:$0xf]
      %v1074 = vld [vmem:[%s1064 + $0x24] sm:$0xf]
      %v1075 = vld [vmem:[%s1064 + $0x28] sm:$0xf]
      %v1076 = vld [vmem:[%s1064 + $0x2c] sm:$0xf]
      %v1077 = vld [vmem:[%s1064 + $0x30] sm:$0xf]
      %v1078 = vld [vmem:[%s1064 + $0x34] sm:$0xf]
      %v1079 = vld [vmem:[%s1064 + $0x38] sm:$0xf]
      %v1080 = vld [vmem:[%s1064 + $0x3c] sm:$0xf]
      %v1081 = vld [vmem:[%s1064 + $0x40] sm:$0xf]
      %v1082 = vld [vmem:[%s1064 + $0x44] sm:$0xf]
      %v1083 = vld [vmem:[%s1064 + $0x48] sm:$0xf]
      %v1084 = vld [vmem:[%s1064 + $0x4c] sm:$0xf]
      %v1085 = vld [vmem:[%s1064 + $0x50] sm:$0xf]
      %v1086 = vld [vmem:[%s1064 + $0x54] sm:$0xf]
      %v1087 = vld [vmem:[%s1064 + $0x58] sm:$0xf]
      %v1088 = vld [vmem:[%s1064 + $0x5c] sm:$0xf]
      %v1089 = vld [vmem:[%s1064 + $0x60] sm:$0xf]
      %v1090 = vld [vmem:[%s1064 + $0x64] sm:$0xf]
      %v1091 = vld [vmem:[%s1064 + $0x68] sm:$0xf]
      %v1092 = vld [vmem:[%s1064 + $0x6c] sm:$0xf]
      %v1093 = vld [vmem:[%s1064 + $0x70] sm:$0xf]
      %v1094 = vld [vmem:[%s1064 + $0x74] sm:$0xf]
      %v1095 = vld [vmem:[%s1064 + $0x78] sm:$0xf]
      %v1096 = vld [vmem:[%s1064 + $0x7c] sm:$0xf]
      %v1129 = vunpack.c.l.b16 %v1065
      %v1130 = vunpack.c.l.b16 %v1066
      %v1131 = vunpack.c.l.b16 %v1067
      %v1132 = vunpack.c.l.b16 %v1068
      %v1133 = vunpack.c.l.b16 %v1069
      %v1134 = vunpack.c.l.b16 %v1070
      %v1135 = vunpack.c.l.b16 %v1071
      %v1136 = vunpack.c.l.b16 %v1072
      %v1137 = vunpack.c.l.b16 %v1073
      %v1138 = vunpack.c.l.b16 %v1074
      %v1139 = vunpack.c.l.b16 %v1075
      %v1140 = vunpack.c.l.b16 %v1076
      %v1141 = vunpack.c.l.b16 %v1077
      %v1142 = vunpack.c.l.b16 %v1078
      %v1143 = vunpack.c.l.b16 %v1079
      %v1144 = vunpack.c.l.b16 %v1080
      %v1145 = vunpack.c.l.b16 %v1081
      %v1146 = vunpack.c.l.b16 %v1082
      %v1147 = vunpack.c.l.b16 %v1083
      %v1148 = vunpack.c.l.b16 %v1084
      %v1149 = vunpack.c.l.b16 %v1085
      %v1150 = vunpack.c.l.b16 %v1086
      %v1151 = vunpack.c.l.b16 %v1087
      %v1152 = vunpack.c.l.b16 %v1088
      %v1153 = vunpack.c.l.b16 %v1089
      %v1154 = vunpack.c.l.b16 %v1090
      %v1155 = vunpack.c.l.b16 %v1091
      %v1156 = vunpack.c.l.b16 %v1092
      %v1157 = vunpack.c.l.b16 %v1093
      %v1158 = vunpack.c.l.b16 %v1094
      %v1159 = vunpack.c.l.b16 %v1095
      %v1160 = vunpack.c.l.b16 %v1096
      %v1161 = vpack.c.b16 %v1130, %v1129
      %v1162 = vpack.c.b16 %v1132, %v1131
      %v1163 = vpack.c.b16 %v1134, %v1133
      %v1164 = vpack.c.b16 %v1136, %v1135
      %v1165 = vpack.c.b16 %v1138, %v1137
      %v1166 = vpack.c.b16 %v1140, %v1139
      %v1167 = vpack.c.b16 %v1142, %v1141
      %v1168 = vpack.c.b16 %v1144, %v1143
      %v1169 = vpack.c.b16 %v1146, %v1145
      %v1170 = vpack.c.b16 %v1148, %v1147
      %v1171 = vpack.c.b16 %v1150, %v1149
      %v1172 = vpack.c.b16 %v1152, %v1151
      %v1173 = vpack.c.b16 %v1154, %v1153
      %v1174 = vpack.c.b16 %v1156, %v1155
      %v1175 = vpack.c.b16 %v1158, %v1157
      %v1176 = vpack.c.b16 %v1160, %v1159
      %1193 = vmatprep.subr.bf16.mxu0 0
      %1194 = vmatpush1.bf16.msra.mxu0 %v1161
      %1195 = vmatprep.subr.bf16.mxu0 0
      %1196 = vmatpush1.bf16.msra.mxu0 %v1162
      %1197 = vmatprep.subr.bf16.mxu0 0
      %1198 = vmatpush1.bf16.msra.mxu0 %v1163
      %1199 = vmatprep.subr.bf16.mxu0 0
      %1200 = vmatpush1.bf16.msra.mxu0 %v1164
      %1201 = vmatprep.subr.bf16.mxu0 0
      %1202 = vmatpush1.bf16.msra.mxu0 %v1165
      %1203 = vmatprep.subr.bf16.mxu0 0
      %1204 = vmatpush1.bf16.msra.mxu0 %v1166
      %1205 = vmatprep.subr.bf16.mxu0 0
      %1206 = vmatpush1.bf16.msra.mxu0 %v1167
      %1207 = vmatprep.subr.bf16.mxu0 0
      %1208 = vmatpush1.bf16.msra.mxu0 %v1168
      %1209 = vmatprep.subr.bf16.mxu0 0
      %1210 = vmatpush1.bf16.msra.mxu0 %v1169
      %1211 = vmatprep.subr.bf16.mxu0 0
      %1212 = vmatpush1.bf16.msra.mxu0 %v1170
      %1213 = vmatprep.subr.bf16.mxu0 0
      %1214 = vmatpush1.bf16.msra.mxu0 %v1171
      %1215 = vmatprep.subr.bf16.mxu0 0
      %1216 = vmatpush1.bf16.msra.mxu0 %v1172
      %1217 = vmatprep.subr.bf16.mxu0 0
      %1218 = vmatpush1.bf16.msra.mxu0 %v1173
      %1219 = vmatprep.subr.bf16.mxu0 0
      %1220 = vmatpush1.bf16.msra.mxu0 %v1174
      %1221 = vmatprep.subr.bf16.mxu0 0
      %1222 = vmatpush1.bf16.msra.mxu0 %v1175
      %1223 = vmatprep.subr.bf16.mxu0 0
      %1224 = vmatpush1.bf16.msra.mxu0 %v1176
      %1225 = vmatprep.mubr.bf16.mxu0 %v1060
      %1226 = vmatmul.mubr.bf16.gmra.mrb[0].mxu0 %v1048
      %v1227 = vpop.f32.mrb[0].mxu0
      %v1228 = vadd.f32 0.0, %v1227
      %v1229 = vpop.f32.mrb[0].mxu0
      %v1230 = vpop.f32.mrb[0].mxu0
      %v1231 = vadd.f32 0.0, %v1230
      %v1232 = vpop.f32.mrb[0].mxu0
      %1233 = vmatprep.mubr.bf16.mxu0 %v1061
      %1234 = vmatmul.mubr.bf16.gmra.mrb[0].mxu0 %v1049
      %v1235 = vpop.f32.mrb[0].mxu0
      %v1236 = vadd.f32 0.0, %v1235
      %v1237 = vpop.f32.mrb[0].mxu0
      %v1238 = vpop.f32.mrb[0].mxu0
      %v1239 = vadd.f32 0.0, %v1238
      %v1240 = vpop.f32.mrb[0].mxu0
      %1241 = vmatprep.mubr.bf16.mxu0 %v1062
      %1242 = vmatmul.mubr.bf16.gmra.mrb[0].mxu0 %v1050
      %v1243 = vpop.f32.mrb[0].mxu0
      %v1244 = vadd.f32 0.0, %v1243
      %v1245 = vpop.f32.mrb[0].mxu0
      %v1246 = vpop.f32.mrb[0].mxu0
      %v1247 = vadd.f32 0.0, %v1246
      %v1248 = vpop.f32.mrb[0].mxu0
      %1249 = vmatprep.mubr.bf16.mxu0 %v1063
      %1250 = vmatmul.mubr.bf16.gmra.mrb[0].mxu0 %v1051
      %v1251 = vpop.f32.mrb[0].mxu0
      %v1252 = vadd.f32 0.0, %v1251
      %v1253 = vpop.f32.mrb[0].mxu0
      %v1254 = vpop.f32.mrb[0].mxu0
      %v1255 = vadd.f32 0.0, %v1254
      %v1256 = vpop.f32.mrb[0].mxu0
      %1257 = vdwg.mxu0
      %v1258 = vadd.f32 %v1010, %v1228
      %v1259 = vadd.f32 %v1013, %v1231
      %v1260 = vadd.f32 %v1018, %v1236
      %v1261 = vadd.f32 %v1021, %v1239
      %v1262 = vadd.f32 %v1026, %v1244
      %v1263 = vadd.f32 %v1029, %v1247
      %v1264 = vadd.f32 %v1034, %v1252
      %v1265 = vadd.f32 %v1037, %v1255
      %v1266 = vld [vmem:[%s568 + $0x7] sm:$0xff]
      %v1267 = vld [vmem:[%s568 + $0x1f] sm:$0xff]
      %v1268 = vld [vmem:[%s568 + $0x37] sm:$0xff]
      %v1269 = vld [vmem:[%s568 + $0x4f] sm:$0xff]
      %v1270 = vld [vmem:[%s568 + $0x67] sm:$0xff]
      %v1271 = vld [vmem:[%s568 + $0x7f] sm:$0xff]
      %v1272 = vld [vmem:[%s568 + $0x97] sm:$0xff]
      %v1273 = vld [vmem:[%s568 + $0xaf] sm:$0xff]
      %v1274 = vpack.c.bf16 %v1267, %v1266
      %v1275 = vpack.c.bf16 %v1269, %v1268
      %v1276 = vpack.c.bf16 %v1271, %v1270
      %v1277 = vpack.c.bf16 %v1273, %v1272
      %v1278 = vld [vmem:[%s577 + $0x8] sm:$0xff]
      %v1279 = vld [vmem:[%s577 + $0x20] sm:$0xff]
      %v1280 = vld [vmem:[%s577 + $0x38] sm:$0xff]
      %v1281 = vld [vmem:[%s577 + $0x50] sm:$0xff]
      %v1282 = vld [vmem:[%s577 + $0x68] sm:$0xff]
      %v1283 = vld [vmem:[%s577 + $0x80] sm:$0xff]
      %v1284 = vld [vmem:[%s577 + $0x98] sm:$0xff]
      %v1285 = vld [vmem:[%s577 + $0xb0] sm:$0xff]
      %v1286 = vpack.c.bf16 %v1279, %v1278
      %v1287 = vpack.c.bf16 %v1281, %v1280
      %v1288 = vpack.c.bf16 %v1283, %v1282
      %v1289 = vpack.c.bf16 %v1285, %v1284
      %s1290 = scalar_lea.vmem %s3, 384
      %v1291 = vld [vmem:[%s1290] sm:$0xf]
      %v1292 = vld [vmem:[%s1290 + $0x4] sm:$0xf]
      %v1293 = vld [vmem:[%s1290 + $0x8] sm:$0xf]
      %v1294 = vld [vmem:[%s1290 + $0xc] sm:$0xf]
      %v1295 = vld [vmem:[%s1290 + $0x10] sm:$0xf]
      %v1296 = vld [vmem:[%s1290 + $0x14] sm:$0xf]
      %v1297 = vld [vmem:[%s1290 + $0x18] sm:$0xf]
      %v1298 = vld [vmem:[%s1290 + $0x1c] sm:$0xf]
      %v1299 = vld [vmem:[%s1290 + $0x20] sm:$0xf]
      %v1300 = vld [vmem:[%s1290 + $0x24] sm:$0xf]
      %v1301 = vld [vmem:[%s1290 + $0x28] sm:$0xf]
      %v1302 = vld [vmem:[%s1290 + $0x2c] sm:$0xf]
      %v1303 = vld [vmem:[%s1290 + $0x30] sm:$0xf]
      %v1304 = vld [vmem:[%s1290 + $0x34] sm:$0xf]
      %v1305 = vld [vmem:[%s1290 + $0x38] sm:$0xf]
      %v1306 = vld [vmem:[%s1290 + $0x3c] sm:$0xf]
      %v1307 = vld [vmem:[%s1290 + $0x40] sm:$0xf]
      %v1308 = vld [vmem:[%s1290 + $0x44] sm:$0xf]
      %v1309 = vld [vmem:[%s1290 + $0x48] sm:$0xf]
      %v1310 = vld [vmem:[%s1290 + $0x4c] sm:$0xf]
      %v1311 = vld [vmem:[%s1290 + $0x50] sm:$0xf]
      %v1312 = vld [vmem:[%s1290 + $0x54] sm:$0xf]
      %v1313 = vld [vmem:[%s1290 + $0x58] sm:$0xf]
      %v1314 = vld [vmem:[%s1290 + $0x5c] sm:$0xf]
      %v1315 = vld [vmem:[%s1290 + $0x60] sm:$0xf]
      %v1316 = vld [vmem:[%s1290 + $0x64] sm:$0xf]
      %v1317 = vld [vmem:[%s1290 + $0x68] sm:$0xf]
      %v1318 = vld [vmem:[%s1290 + $0x6c] sm:$0xf]
      %v1319 = vld [vmem:[%s1290 + $0x70] sm:$0xf]
      %v1320 = vld [vmem:[%s1290 + $0x74] sm:$0xf]
      %v1321 = vld [vmem:[%s1290 + $0x78] sm:$0xf]
      %v1322 = vld [vmem:[%s1290 + $0x7c] sm:$0xf]
      %v1355 = vunpack.c.l.b16 %v1291
      %v1356 = vunpack.c.l.b16 %v1292
      %v1357 = vunpack.c.l.b16 %v1293
      %v1358 = vunpack.c.l.b16 %v1294
      %v1359 = vunpack.c.l.b16 %v1295
      %v1360 = vunpack.c.l.b16 %v1296
      %v1361 = vunpack.c.l.b16 %v1297
      %v1362 = vunpack.c.l.b16 %v1298
      %v1363 = vunpack.c.l.b16 %v1299
      %v1364 = vunpack.c.l.b16 %v1300
      %v1365 = vunpack.c.l.b16 %v1301
      %v1366 = vunpack.c.l.b16 %v1302
      %v1367 = vunpack.c.l.b16 %v1303
      %v1368 = vunpack.c.l.b16 %v1304
      %v1369 = vunpack.c.l.b16 %v1305
      %v1370 = vunpack.c.l.b16 %v1306
      %v1371 = vunpack.c.l.b16 %v1307
      %v1372 = vunpack.c.l.b16 %v1308
      %v1373 = vunpack.c.l.b16 %v1309
      %v1374 = vunpack.c.l.b16 %v1310
      %v1375 = vunpack.c.l.b16 %v1311
      %v1376 = vunpack.c.l.b16 %v1312
      %v1377 = vunpack.c.l.b16 %v1313
      %v1378 = vunpack.c.l.b16 %v1314
      %v1379 = vunpack.c.l.b16 %v1315
      %v1380 = vunpack.c.l.b16 %v1316
      %v1381 = vunpack.c.l.b16 %v1317
      %v1382 = vunpack.c.l.b16 %v1318
      %v1383 = vunpack.c.l.b16 %v1319
      %v1384 = vunpack.c.l.b16 %v1320
      %v1385 = vunpack.c.l.b16 %v1321
      %v1386 = vunpack.c.l.b16 %v1322
      %v1387 = vpack.c.b16 %v1356, %v1355
      %v1388 = vpack.c.b16 %v1358, %v1357
      %v1389 = vpack.c.b16 %v1360, %v1359
      %v1390 = vpack.c.b16 %v1362, %v1361
      %v1391 = vpack.c.b16 %v1364, %v1363
      %v1392 = vpack.c.b16 %v1366, %v1365
      %v1393 = vpack.c.b16 %v1368, %v1367
      %v1394 = vpack.c.b16 %v1370, %v1369
      %v1395 = vpack.c.b16 %v1372, %v1371
      %v1396 = vpack.c.b16 %v1374, %v1373
      %v1397 = vpack.c.b16 %v1376, %v1375
      %v1398 = vpack.c.b16 %v1378, %v1377
      %v1399 = vpack.c.b16 %v1380, %v1379
      %v1400 = vpack.c.b16 %v1382, %v1381
      %v1401 = vpack.c.b16 %v1384, %v1383
      %v1402 = vpack.c.b16 %v1386, %v1385
      %1419 = vmatprep.subr.bf16.mxu0 0
      %1420 = vmatpush1.bf16.msra.mxu0 %v1387
      %1421 = vmatprep.subr.bf16.mxu0 0
      %1422 = vmatpush1.bf16.msra.mxu0 %v1388
      %1423 = vmatprep.subr.bf16.mxu0 0
      %1424 = vmatpush1.bf16.msra.mxu0 %v1389
      %1425 = vmatprep.subr.bf16.mxu0 0
      %1426 = vmatpush1.bf16.msra.mxu0 %v1390
      %1427 = vmatprep.subr.bf16.mxu0 0
      %1428 = vmatpush1.bf16.msra.mxu0 %v1391
      %1429 = vmatprep.subr.bf16.mxu0 0
      %1430 = vmatpush1.bf16.msra.mxu0 %v1392
      %1431 = vmatprep.subr.bf16.mxu0 0
      %1432 = vmatpush1.bf16.msra.mxu0 %v1393
      %1433 = vmatprep.subr.bf16.mxu0 0
      %1434 = vmatpush1.bf16.msra.mxu0 %v1394
      %1435 = vmatprep.subr.bf16.mxu0 0
      %1436 = vmatpush1.bf16.msra.mxu0 %v1395
      %1437 = vmatprep.subr.bf16.mxu0 0
      %1438 = vmatpush1.bf16.msra.mxu0 %v1396
      %1439 = vmatprep.subr.bf16.mxu0 0
      %1440 = vmatpush1.bf16.msra.mxu0 %v1397
      %1441 = vmatprep.subr.bf16.mxu0 0
      %1442 = vmatpush1.bf16.msra.mxu0 %v1398
      %1443 = vmatprep.subr.bf16.mxu0 0
      %1444 = vmatpush1.bf16.msra.mxu0 %v1399
      %1445 = vmatprep.subr.bf16.mxu0 0
      %1446 = vmatpush1.bf16.msra.mxu0 %v1400
      %1447 = vmatprep.subr.bf16.mxu0 0
      %1448 = vmatpush1.bf16.msra.mxu0 %v1401
      %1449 = vmatprep.subr.bf16.mxu0 0
      %1450 = vmatpush1.bf16.msra.mxu0 %v1402
      %1451 = vmatprep.mubr.bf16.mxu0 %v1286
      %1452 = vmatmul.mubr.bf16.gmra.mrb[0].mxu0 %v1274
      %v1453 = vpop.f32.mrb[0].mxu0
      %v1454 = vadd.f32 0.0, %v1453
      %v1455 = vpop.f32.mrb[0].mxu0
      %v1456 = vpop.f32.mrb[0].mxu0
      %v1457 = vadd.f32 0.0, %v1456
      %v1458 = vpop.f32.mrb[0].mxu0
      %1459 = vmatprep.mubr.bf16.mxu0 %v1287
      %1460 = vmatmul.mubr.bf16.gmra.mrb[0].mxu0 %v1275
      %v1461 = vpop.f32.mrb[0].mxu0
      %v1462 = vadd.f32 0.0, %v1461
      %v1463 = vpop.f32.mrb[0].mxu0
      %v1464 = vpop.f32.mrb[0].mxu0
      %v1465 = vadd.f32 0.0, %v1464
      %v1466 = vpop.f32.mrb[0].mxu0
      %1467 = vmatprep.mubr.bf16.mxu0 %v1288
      %1468 = vmatmul.mubr.bf16.gmra.mrb[0].mxu0 %v1276
      %v1469 = vpop.f32.mrb[0].mxu0
      %v1470 = vadd.f32 0.0, %v1469
      %v1471 = vpop.f32.mrb[0].mxu0
      %v1472 = vpop.f32.mrb[0].mxu0
      %v1473 = vadd.f32 0.0, %v1472
      %v1474 = vpop.f32.mrb[0].mxu0
      %1475 = vmatprep.mubr.bf16.mxu0 %v1289
      %1476 = vmatmul.mubr.bf16.gmra.mrb[0].mxu0 %v1277
      %v1477 = vpop.f32.mrb[0].mxu0
      %v1478 = vadd.f32 0.0, %v1477
      %v1479 = vpop.f32.mrb[0].mxu0
      %v1480 = vpop.f32.mrb[0].mxu0
      %v1481 = vadd.f32 0.0, %v1480
      %v1482 = vpop.f32.mrb[0].mxu0
      %1483 = vdwg.mxu0
      %v1484 = vadd.f32 %v1258, %v1454
      %v1485 = vadd.f32 %v1259, %v1457
      %v1486 = vadd.f32 %v1260, %v1462
      %v1487 = vadd.f32 %v1261, %v1465
      %v1488 = vadd.f32 %v1262, %v1470
      %v1489 = vadd.f32 %v1263, %v1473
      %v1490 = vadd.f32 %v1264, %v1478
      %v1491 = vadd.f32 %v1265, %v1481
      %v1492 = vld [vmem:[%s568 + $0x8] sm:$0xff]
      %v1493 = vld [vmem:[%s568 + $0x20] sm:$0xff]
      %v1494 = vld [vmem:[%s568 + $0x38] sm:$0xff]
      %v1495 = vld [vmem:[%s568 + $0x50] sm:$0xff]
      %v1496 = vld [vmem:[%s568 + $0x68] sm:$0xff]
      %v1497 = vld [vmem:[%s568 + $0x80] sm:$0xff]
      %v1498 = vld [vmem:[%s568 + $0x98] sm:$0xff]
      %v1499 = vld [vmem:[%s568 + $0xb0] sm:$0xff]
      %v1500 = vpack.c.bf16 %v1493, %v1492
      %v1501 = vpack.c.bf16 %v1495, %v1494
      %v1502 = vpack.c.bf16 %v1497, %v1496
      %v1503 = vpack.c.bf16 %v1499, %v1498
      %v1504 = vld [vmem:[%s4] sm:$0xf]
      %v1505 = vld [vmem:[%s4 + $0x4] sm:$0xf]
      %v1506 = vld [vmem:[%s4 + $0x8] sm:$0xf]
      %v1507 = vld [vmem:[%s4 + $0xc] sm:$0xf]
      %v1508 = vld [vmem:[%s4 + $0x10] sm:$0xf]
      %v1509 = vld [vmem:[%s4 + $0x14] sm:$0xf]
      %v1510 = vld [vmem:[%s4 + $0x18] sm:$0xf]
      %v1511 = vld [vmem:[%s4 + $0x1c] sm:$0xf]
      %v1512 = vld [vmem:[%s4 + $0x20] sm:$0xf]
      %v1513 = vld [vmem:[%s4 + $0x24] sm:$0xf]
      %v1514 = vld [vmem:[%s4 + $0x28] sm:$0xf]
      %v1515 = vld [vmem:[%s4 + $0x2c] sm:$0xf]
      %v1516 = vld [vmem:[%s4 + $0x30] sm:$0xf]
      %v1517 = vld [vmem:[%s4 + $0x34] sm:$0xf]
      %v1518 = vld [vmem:[%s4 + $0x38] sm:$0xf]
      %v1519 = vld [vmem:[%s4 + $0x3c] sm:$0xf]
      %v1536 = vunpack.c.l.b16 %v1504
      %v1537 = vunpack.c.l.b16 %v1505
      %v1538 = vunpack.c.l.b16 %v1506
      %v1539 = vunpack.c.l.b16 %v1507
      %v1540 = vunpack.c.l.b16 %v1508
      %v1541 = vunpack.c.l.b16 %v1509
      %v1542 = vunpack.c.l.b16 %v1510
      %v1543 = vunpack.c.l.b16 %v1511
      %v1544 = vunpack.c.l.b16 %v1512
      %v1545 = vunpack.c.l.b16 %v1513
      %v1546 = vunpack.c.l.b16 %v1514
      %v1547 = vunpack.c.l.b16 %v1515
      %v1548 = vunpack.c.l.b16 %v1516
      %v1549 = vunpack.c.l.b16 %v1517
      %v1550 = vunpack.c.l.b16 %v1518
      %v1551 = vunpack.c.l.b16 %v1519
      %v1552 = vpack.c.b16 %v1537, %v1536
      %v1553 = vpack.c.b16 %v1539, %v1538
      %v1554 = vpack.c.b16 %v1541, %v1540
      %v1555 = vpack.c.b16 %v1543, %v1542
      %v1556 = vpack.c.b16 %v1545, %v1544
      %v1557 = vpack.c.b16 %v1547, %v1546
      %v1558 = vpack.c.b16 %v1549, %v1548
      %v1559 = vpack.c.b16 %v1551, %v1550
      %1568 = vmatprep.subr.bf16.mxu0 0
      %1569 = vmatpush1.bf16.msra.mxu0 %v1552
      %1570 = vmatprep.subr.bf16.mxu0 0
      %1571 = vmatpush1.bf16.msra.mxu0 %v1553
      %1572 = vmatprep.subr.bf16.mxu0 0
      %1573 = vmatpush1.bf16.msra.mxu0 %v1554
      %1574 = vmatprep.subr.bf16.mxu0 0
      %1575 = vmatpush1.bf16.msra.mxu0 %v1555
      %1576 = vmatprep.subr.bf16.mxu0 0
      %1577 = vmatpush1.bf16.msra.mxu0 %v1556
      %1578 = vmatprep.subr.bf16.mxu0 0
      %1579 = vmatpush1.bf16.msra.mxu0 %v1557
      %1580 = vmatprep.subr.bf16.mxu0 0
      %1581 = vmatpush1.bf16.msra.mxu0 %v1558
      %1582 = vmatprep.subr.bf16.mxu0 0
      %1583 = vmatpush1.bf16.msra.mxu0 %v1559
      %1584 = vmatprep.subr.bf16.mxu0 0
      %1585 = vmatpush1.bf16.msra.mxu0 0
      %1586 = vmatprep.subr.bf16.mxu0 0
      %1587 = vmatpush1.bf16.msra.mxu0 0
      %1588 = vmatprep.subr.bf16.mxu0 0
      %1589 = vmatpush1.bf16.msra.mxu0 0
      %1590 = vmatprep.subr.bf16.mxu0 0
      %1591 = vmatpush1.bf16.msra.mxu0 0
      %1592 = vmatprep.subr.bf16.mxu0 0
      %1593 = vmatpush1.bf16.msra.mxu0 0
      %1594 = vmatprep.subr.bf16.mxu0 0
      %1595 = vmatpush1.bf16.msra.mxu0 0
      %1596 = vmatprep.subr.bf16.mxu0 0
      %1597 = vmatpush1.bf16.msra.mxu0 0
      %1598 = vmatprep.subr.bf16.mxu0 0
      %1599 = vmatpush1.bf16.msra.mxu0 0
      %1600 = vmatprep.mubr.bf16.mxu0 0
      %1601 = vmatmul.mubr.bf16.gmra.mrb[0].mxu0 %v1500
      %v1602 = vpop.f32.mrb[0].mxu0
      %v1603 = vadd.f32 0.0, %v1602
      %v1604 = vpop.f32.mrb[0].mxu0
      %v1605 = vpop.f32.mrb[0].mxu0
      %v1606 = vadd.f32 0.0, %v1605
      %v1607 = vpop.f32.mrb[0].mxu0
      %1608 = vmatprep.mubr.bf16.mxu0 0
      %1609 = vmatmul.mubr.bf16.gmra.mrb[0].mxu0 %v1501
      %v1610 = vpop.f32.mrb[0].mxu0
      %v1611 = vadd.f32 0.0, %v1610
      %v1612 = vpop.f32.mrb[0].mxu0
      %v1613 = vpop.f32.mrb[0].mxu0
      %v1614 = vadd.f32 0.0, %v1613
      %v1615 = vpop.f32.mrb[0].mxu0
      %1616 = vmatprep.mubr.bf16.mxu0 0
      %1617 = vmatmul.mubr.bf16.gmra.mrb[0].mxu0 %v1502
      %v1618 = vpop.f32.mrb[0].mxu0
      %v1619 = vadd.f32 0.0, %v1618
      %v1620 = vpop.f32.mrb[0].mxu0
      %v1621 = vpop.f32.mrb[0].mxu0
      %v1622 = vadd.f32 0.0, %v1621
      %v1623 = vpop.f32.mrb[0].mxu0
      %1624 = vmatprep.mubr.bf16.mxu0 0
      %1625 = vmatmul.mubr.bf16.gmra.mrb[0].mxu0 %v1503
      %v1626 = vpop.f32.mrb[0].mxu0
      %v1627 = vadd.f32 0.0, %v1626
      %v1628 = vpop.f32.mrb[0].mxu0
      %v1629 = vpop.f32.mrb[0].mxu0
      %v1630 = vadd.f32 0.0, %v1629
      %v1631 = vpop.f32.mrb[0].mxu0
      %1632 = vdwg.mxu0
      %v1633 = vadd.f32 %v1484, %v1603
      %v1634 = vadd.f32 %v1485, %v1606
      %v1635 = vadd.f32 %v1486, %v1611
      %v1636 = vadd.f32 %v1487, %v1614
      %v1637 = vadd.f32 %v1488, %v1619
      %v1638 = vadd.f32 %v1489, %v1622
      %v1639 = vadd.f32 %v1490, %v1627
      %v1640 = vadd.f32 %v1491, %v1630
      %v1641 = vpack.c.bf16 %v1634, %v1633
      %v1642 = vpack.c.bf16 %v1636, %v1635
      %v1643 = vpack.c.bf16 %v1638, %v1637
      %v1644 = vpack.c.bf16 %v1640, %v1639
      %v1649 = vunpack.c.l.b16 %v1641
      %v1650 = vunpack.c.h.b16 %v1641
      %v1651 = vunpack.c.l.b16 %v1642
      %v1652 = vunpack.c.h.b16 %v1642
      %v1653 = vunpack.c.l.b16 %v1643
      %v1654 = vunpack.c.h.b16 %v1643
      %v1655 = vunpack.c.l.b16 %v1644
      %v1656 = vunpack.c.h.b16 %v1644
      %v1657 = vpack.c.b16 %v1649, %v1649
      %v1658 = vpack.c.b16 %v1650, %v1650
      %v1659 = vpack.c.b16 %v1651, %v1651
      %v1660 = vpack.c.b16 %v1652, %v1652
      %v1661 = vpack.c.b16 %v1653, %v1653
      %v1662 = vpack.c.b16 %v1654, %v1654
      %v1663 = vpack.c.b16 %v1655, %v1655
      %v1664 = vpack.c.b16 %v1656, %v1656
      %1673 = vst [vmem:[%s289] sm:$0xf] %v1657
      %1674 = vst [vmem:[%s289 + $0x4] sm:$0xf] %v1658
      %1675 = vst [vmem:[%s289 + $0x8] sm:$0xf] %v1659
      %1676 = vst [vmem:[%s289 + $0xc] sm:$0xf] %v1660
      %1677 = vst [vmem:[%s289 + $0x10] sm:$0xf] %v1661
      %1678 = vst [vmem:[%s289 + $0x14] sm:$0xf] %v1662
      %1679 = vst [vmem:[%s289 + $0x18] sm:$0xf] %v1663
      %1680 = vst [vmem:[%s289 + $0x1c] sm:$0xf] %v1664
      %v1681 = vadd.f32 %v1633, %v1634
      %v1682 = vadd.f32 %v1681, %v1635
      %v1683 = vadd.f32 %v1682, %v1636
      %v1684 = vadd.f32 %v1683, %v1637
      %v1685 = vadd.f32 %v1684, %v1638
      %v1686 = vadd.f32 %v1685, %v1639
      %v1687 = vadd.f32 %v1686, %v1640
      %v1688 = vrot.slane %v1687, 4
      %v1689 = vadd.f32 %v1687, %v1688
      %v1690 = vrot.slane %v1689, 2
      %v1691 = vadd.f32 %v1689, %v1690
      %v1692 = vrot.slane %v1691, 1
      %v1693 = vadd.f32 %v1691, %v1692
      %1694 = vst [vmem:[%s292] sm:$0x1] %v1693
      %v1695 = vmul.f32 %v1633, %v1633
      %v1696 = vmul.f32 %v1634, %v1634
      %v1697 = vmul.f32 %v1635, %v1635
      %v1698 = vmul.f32 %v1636, %v1636
      %v1699 = vmul.f32 %v1637, %v1637
      %v1700 = vmul.f32 %v1638, %v1638
      %v1701 = vmul.f32 %v1639, %v1639
      %v1702 = vmul.f32 %v1640, %v1640
      %v1703 = vadd.f32 %v1695, %v1696
      %v1704 = vadd.f32 %v1703, %v1697
      %v1705 = vadd.f32 %v1704, %v1698
      %v1706 = vadd.f32 %v1705, %v1699
      %v1707 = vadd.f32 %v1706, %v1700
      %v1708 = vadd.f32 %v1707, %v1701
      %v1709 = vadd.f32 %v1708, %v1702
      %v1710 = vrot.slane %v1709, 4
      %v1711 = vadd.f32 %v1709, %v1710
      %v1712 = vrot.slane %v1711, 2
      %v1713 = vadd.f32 %v1711, %v1712
      %v1714 = vrot.slane %v1713, 1
      %v1715 = vadd.f32 %v1713, %v1714
      %1716 = vst [vmem:[%s295] sm:$0x1] %v1715
      %p1717 = scmp.lt.s32.totalorder %s19, 1
      %s1718 = scalar_select %p1717, %s19, 1
      %s1719 = smul.addr %s1718, 8
      %s1720 = smul.addr %s1719, 4
      %s1721 = scalar_lea.vmem %s5, %s1720
      %p1722 = scmp.lt.s32.totalorder %s19, 1
      %s1723 = scalar_select %p1722, %s19, 1
      %s1724 = scalar_lea.vmem %s6, %s1723
      %p1725 = scmp.lt.s32.totalorder %s19, 1
      %s1726 = scalar_select %p1725, %s19, 1
      %s1727 = scalar_lea.vmem %s7, %s1726
      // Predicated region
      $region41: #{block_forward.5} parent=39 // pred_check
        %p1728 = pneg %p147
      $region42: #{block_forward.5} parent=39 // pred_check_branch
        %1730 = sbr.rel (%p1728) target = $region44
      $region43: #{block_forward.5} parent=39 // pred_region
        _
      $region44: #{block_forward.5} parent=39 // pred_fallthru
        _
      // Predicated region
      $region45: #{block_forward.5} parent=39 // pred_check
        %p1731 = pneg %p173
      $region46: #{block_forward.5} parent=39 // pred_check_branch
        %1733 = sbr.rel (%p1731) target = $region48
      $region47: #{block_forward.5} parent=39 // pred_region
        _
      $region48: #{block_forward.5} parent=39 // pred_fallthru
        _
      // Predicated region
      $region49: #{block_forward.5} parent=39 // pred_check
        %p1734 = pneg %p199
      $region50: #{block_forward.5} parent=39 // pred_check_branch
        %1736 = sbr.rel (%p1734) target = $region52
      $region51: #{block_forward.5} parent=39 // pred_region
        _
      $region52: #{block_forward.5} parent=39 // pred_fallthru
        _
    $region40: #{block_forward.5} parent=5 // pred_fallthru
      _
    %p1737 = scmp.le.s32.totalorder 2, %s14
    // Predicated region
    $region53: #{block_forward.5} parent=5 // pred_check
      %p1738 = pneg %p1737
    $region54: #{block_forward.5} parent=5 // pred_check_branch
      %1740 = sbr.rel (%p1738) target = $region56
    $region55: #{block_forward.5} parent=5 // pred_region
      %s1741 = ssub.s32 %s14, 2
      // Predicated region
      $region57: #{block_forward.5} parent=55 // pred_check
        %p1742 = pneg %p153
      $region58: #{block_forward.5} parent=55 // pred_check_branch
        %1744 = sbr.rel (%p1742) target = $region60
      $region59: #{block_forward.5} parent=55 // pred_region
        %p1745 = scmp.lt.s32.totalorder %s20, 1
        %s1746 = scalar_select %p1745, %s20, 1
        %s1747 = smul.addr %s1746, 8
        %s1748 = smul.addr %s1747, 4
        %s1749 = scalar_lea.vmem %s5, %s1748
      $region60: #{block_forward.5} parent=55 // pred_fallthru
        _
      // Predicated region
      $region61: #{block_forward.5} parent=55 // pred_check
        %p1750 = pneg %p179
      $region62: #{block_forward.5} parent=55 // pred_check_branch
        %1752 = sbr.rel (%p1750) target = $region64
      $region63: #{block_forward.5} parent=55 // pred_region
        %p1753 = scmp.lt.s32.totalorder %s20, 1
        %s1754 = scalar_select %p1753, %s20, 1
        %s1755 = scalar_lea.vmem %s6, %s1754
      $region64: #{block_forward.5} parent=55 // pred_fallthru
        _
      // Predicated region
      $region65: #{block_forward.5} parent=55 // pred_check
        %p1756 = pneg %p205
      $region66: #{block_forward.5} parent=55 // pred_check_branch
        %1758 = sbr.rel (%p1756) target = $region68
      $region67: #{block_forward.5} parent=55 // pred_region
        %p1759 = scmp.lt.s32.totalorder %s20, 1
        %s1760 = scalar_select %p1759, %s20, 1
        %s1761 = scalar_lea.vmem %s7, %s1760
      $region68: #{block_forward.5} parent=55 // pred_fallthru
        _
    $region56: #{block_forward.5} parent=5 // pred_fallthru
      _
  $region6: #{block_forward.5} parent=0 // loop_footer
    %s18 = sadd.s32 1, %s14
  $region7: #{block_forward.5} parent=0 // loop_footer_branch
    %13 = sbr.rel target = $region3
  $region8: #{block_forward.5} parent=0 // loop_exit
    _

// kernel: block_forward.6
$region0: #{block_forward.6}
  #allocation0 [shape = 'u32[]', space=smem, size = 0x4, offset = 0x4, fixed_abs, tag = 'smem constant byte address 0x4 - core index']
  #allocation1 [shape = 'u32[144,128]{1,0:T(1,128)}', space=vmem, size = 0x12000, scoped, tag = 'internal scratch']
  %s0 = inlined_call_operand.vmem [shape: bf16[128,128], index: 0, kind: input, shape index: {}]
  %s1 = inlined_call_operand.vmem [shape: bf16[128,128], index: 1, kind: input, shape index: {}]
  %s2 = inlined_call_operand.vmem [shape: bf16[128,128], index: 2, kind: input, shape index: {}]
  %s3 = inlined_call_operand.vmem [shape: bf16[128,128], index: 3, kind: input, shape index: {}]
  %s4 = inlined_call_operand.vmem [shape: f32[1,128], index: 4, kind: input, shape index: {}]
  %s5 = inlined_call_operand.vmem [shape: f32[1,128], index: 5, kind: input, shape index: {}]
  %s6 = inlined_call_operand.vmem [shape: f32[1,1,128], index: 6, kind: output, shape index: {0}]
  %s7 = inlined_call_operand.vmem [shape: f32[1,1,128], index: 7, kind: output, shape index: {1}]
  %s8 = inlined_call_operand.vmem [shape: f32[1,1,128], index: 8, kind: output, shape index: {2}]
  %s9 = inlined_call_operand.vmem [shape: f32[1,1,128], index: 9, kind: output, shape index: {3}]
  %10 = xla_tuple %s6, %s7, %s8, %s9
  %s11 = sld [smem:[#allocation0]]
  $region58: #{block_forward.6} parent=0
    _
  %s13 = ssub.s32 1, %s11
  %s14 = scalar_select 0, %s13, %s11
  // Predicated region
  $region2: #{block_forward.6} parent=0 // pred_check
    _
  $region3: #{block_forward.6} parent=0 // pred_check_branch
    %16 = sbr.rel (0) target = $region5
  $region4: #{block_forward.6} parent=0 // pred_region
    _
  $region5: #{block_forward.6} parent=0 // pred_fallthru
    _
  // Predicated region
  $region6: #{block_forward.6} parent=0 // pred_check
    _
  $region7: #{block_forward.6} parent=0 // pred_check_branch
    %18 = sbr.rel (0) target = $region9
  $region8: #{block_forward.6} parent=0 // pred_region
    _
  $region9: #{block_forward.6} parent=0 // pred_fallthru
    _
  // Predicated region
  $region10: #{block_forward.6} parent=0 // pred_check
    _
  $region11: #{block_forward.6} parent=0 // pred_check_branch
    %20 = sbr.rel (0) target = $region13
  $region12: #{block_forward.6} parent=0 // pred_region
    _
  $region13: #{block_forward.6} parent=0 // pred_fallthru
    _
  // Predicated region
  $region14: #{block_forward.6} parent=0 // pred_check
    _
  $region15: #{block_forward.6} parent=0 // pred_check_branch
    %22 = sbr.rel (0) target = $region17
  $region16: #{block_forward.6} parent=0 // pred_region
    _
  $region17: #{block_forward.6} parent=0 // pred_fallthru
    _
  // Predicated region
  $region18: #{block_forward.6} parent=0 // pred_check
    _
  $region19: #{block_forward.6} parent=0 // pred_check_branch
    %24 = sbr.rel (0) target = $region21
  $region20: #{block_forward.6} parent=0 // pred_region
    _
  $region21: #{block_forward.6} parent=0 // pred_fallthru
    _
  // Predicated region
  $region22: #{block_forward.6} parent=0 // pred_check
    _
  $region23: #{block_forward.6} parent=0 // pred_check_branch
    %26 = sbr.rel (0) target = $region25
  $region24: #{block_forward.6} parent=0 // pred_region
    _
  $region25: #{block_forward.6} parent=0 // pred_fallthru
    _
  %v28 = vld [vmem:[%s0] sm:$0xf]
  %v29 = vld [vmem:[%s0 + $0x4] sm:$0xf]
  %v30 = vld [vmem:[%s0 + $0x8] sm:$0xf]
  %v31 = vld [vmem:[%s0 + $0xc] sm:$0xf]
  %v32 = vld [vmem:[%s0 + $0x10] sm:$0xf]
  %v33 = vld [vmem:[%s0 + $0x14] sm:$0xf]
  %v34 = vld [vmem:[%s0 + $0x18] sm:$0xf]
  %v35 = vld [vmem:[%s0 + $0x1c] sm:$0xf]
  %v36 = vld [vmem:[%s0 + $0x20] sm:$0xf]
  %v37 = vld [vmem:[%s0 + $0x24] sm:$0xf]
  %v38 = vld [vmem:[%s0 + $0x28] sm:$0xf]
  %v39 = vld [vmem:[%s0 + $0x2c] sm:$0xf]
  %v40 = vld [vmem:[%s0 + $0x30] sm:$0xf]
  %v41 = vld [vmem:[%s0 + $0x34] sm:$0xf]
  %v42 = vld [vmem:[%s0 + $0x38] sm:$0xf]
  %v43 = vld [vmem:[%s0 + $0x3c] sm:$0xf]
  %v44 = vunpack.c.l.bf16 %v28
  %v45 = vunpack.c.l.bf16 %v29
  %v46 = vunpack.c.l.bf16 %v30
  %v47 = vunpack.c.l.bf16 %v31
  %v48 = vunpack.c.l.bf16 %v32
  %v49 = vunpack.c.l.bf16 %v33
  %v50 = vunpack.c.l.bf16 %v34
  %v51 = vunpack.c.l.bf16 %v35
  %v52 = vunpack.c.l.bf16 %v36
  %v53 = vunpack.c.l.bf16 %v37
  %v54 = vunpack.c.l.bf16 %v38
  %v55 = vunpack.c.l.bf16 %v39
  %v56 = vunpack.c.l.bf16 %v40
  %v57 = vunpack.c.l.bf16 %v41
  %v58 = vunpack.c.l.bf16 %v42
  %v59 = vunpack.c.l.bf16 %v43
  %v60 = vld [vmem:[%s4] sm:$0x1]
  %v62 = vlaneseq
  %v63 = vshrl.u32 %v62, 7
  %v64 = vsub.s32 0, %v63
  %v65 = vrot.slane %v60, %v64
  %v67 = vmul.f32 %v44, %v65
  %v68 = vmul.f32 %v45, %v65
  %v69 = vmul.f32 %v46, %v65
  %v70 = vmul.f32 %v47, %v65
  %v71 = vmul.f32 %v48, %v65
  %v72 = vmul.f32 %v49, %v65
  %v73 = vmul.f32 %v50, %v65
  %v74 = vmul.f32 %v51, %v65
  %v75 = vmul.f32 %v52, %v65
  %v76 = vmul.f32 %v53, %v65
  %v77 = vmul.f32 %v54, %v65
  %v78 = vmul.f32 %v55, %v65
  %v79 = vmul.f32 %v56, %v65
  %v80 = vmul.f32 %v57, %v65
  %v81 = vmul.f32 %v58, %v65
  %v82 = vmul.f32 %v59, %v65
  %v83 = vld [vmem:[%s5] sm:$0x1]
  %v85 = vlaneseq
  %v86 = vshrl.u32 %v85, 7
  %v87 = vsub.s32 0, %v86
  %v88 = vrot.slane %v83, %v87
  %v90 = vadd.f32 %v67, %v88
  %v91 = vadd.f32 %v68, %v88
  %v92 = vadd.f32 %v69, %v88
  %v93 = vadd.f32 %v70, %v88
  %v94 = vadd.f32 %v71, %v88
  %v95 = vadd.f32 %v72, %v88
  %v96 = vadd.f32 %v73, %v88
  %v97 = vadd.f32 %v74, %v88
  %v98 = vadd.f32 %v75, %v88
  %v99 = vadd.f32 %v76, %v88
  %v100 = vadd.f32 %v77, %v88
  %v101 = vadd.f32 %v78, %v88
  %v102 = vadd.f32 %v79, %v88
  %v103 = vadd.f32 %v80, %v88
  %v104 = vadd.f32 %v81, %v88
  %v105 = vadd.f32 %v82, %v88
  %v106 = vmax.f32 %v90, 0.0
  %v107 = vmax.f32 %v91, 0.0
  %v108 = vmax.f32 %v92, 0.0
  %v109 = vmax.f32 %v93, 0.0
  %v110 = vmax.f32 %v94, 0.0
  %v111 = vmax.f32 %v95, 0.0
  %v112 = vmax.f32 %v96, 0.0
  %v113 = vmax.f32 %v97, 0.0
  %v114 = vmax.f32 %v98, 0.0
  %v115 = vmax.f32 %v99, 0.0
  %v116 = vmax.f32 %v100, 0.0
  %v117 = vmax.f32 %v101, 0.0
  %v118 = vmax.f32 %v102, 0.0
  %v119 = vmax.f32 %v103, 0.0
  %v120 = vmax.f32 %v104, 0.0
  %v121 = vmax.f32 %v105, 0.0
  %v122 = vpack.c.bf16 %v107, %v106
  %v123 = vpack.c.bf16 %v109, %v108
  %v124 = vpack.c.bf16 %v111, %v110
  %v125 = vpack.c.bf16 %v113, %v112
  %v126 = vpack.c.bf16 %v115, %v114
  %v127 = vpack.c.bf16 %v117, %v116
  %v128 = vpack.c.bf16 %v119, %v118
  %v129 = vpack.c.bf16 %v121, %v120
  %v130 = vld [vmem:[%s2] sm:$0xf]
  %v131 = vld [vmem:[%s2 + $0x4] sm:$0xf]
  %v132 = vld [vmem:[%s2 + $0x8] sm:$0xf]
  %v133 = vld [vmem:[%s2 + $0xc] sm:$0xf]
  %v134 = vld [vmem:[%s2 + $0x10] sm:$0xf]
  %v135 = vld [vmem:[%s2 + $0x14] sm:$0xf]
  %v136 = vld [vmem:[%s2 + $0x18] sm:$0xf]
  %v137 = vld [vmem:[%s2 + $0x1c] sm:$0xf]
  %v138 = vld [vmem:[%s2 + $0x20] sm:$0xf]
  %v139 = vld [vmem:[%s2 + $0x24] sm:$0xf]
  %v140 = vld [vmem:[%s2 + $0x28] sm:$0xf]
  %v141 = vld [vmem:[%s2 + $0x2c] sm:$0xf]
  %v142 = vld [vmem:[%s2 + $0x30] sm:$0xf]
  %v143 = vld [vmem:[%s2 + $0x34] sm:$0xf]
  %v144 = vld [vmem:[%s2 + $0x38] sm:$0xf]
  %v145 = vld [vmem:[%s2 + $0x3c] sm:$0xf]
  %v162 = vunpack.c.l.b16 %v130
  %v163 = vunpack.c.l.b16 %v131
  %v164 = vunpack.c.l.b16 %v132
  %v165 = vunpack.c.l.b16 %v133
  %v166 = vunpack.c.l.b16 %v134
  %v167 = vunpack.c.l.b16 %v135
  %v168 = vunpack.c.l.b16 %v136
  %v169 = vunpack.c.l.b16 %v137
  %v170 = vunpack.c.l.b16 %v138
  %v171 = vunpack.c.l.b16 %v139
  %v172 = vunpack.c.l.b16 %v140
  %v173 = vunpack.c.l.b16 %v141
  %v174 = vunpack.c.l.b16 %v142
  %v175 = vunpack.c.l.b16 %v143
  %v176 = vunpack.c.l.b16 %v144
  %v177 = vunpack.c.l.b16 %v145
  %v178 = vpack.c.b16 %v163, %v162
  %v179 = vpack.c.b16 %v165, %v164
  %v180 = vpack.c.b16 %v167, %v166
  %v181 = vpack.c.b16 %v169, %v168
  %v182 = vpack.c.b16 %v171, %v170
  %v183 = vpack.c.b16 %v173, %v172
  %v184 = vpack.c.b16 %v175, %v174
  %v185 = vpack.c.b16 %v177, %v176
  %194 = vmatprep.subr.bf16.mxu0 0
  %195 = vmatpush1.bf16.msra.mxu0 %v178
  %196 = vmatprep.subr.bf16.mxu0 0
  %197 = vmatpush1.bf16.msra.mxu0 %v179
  %198 = vmatprep.subr.bf16.mxu0 0
  %199 = vmatpush1.bf16.msra.mxu0 %v180
  %200 = vmatprep.subr.bf16.mxu0 0
  %201 = vmatpush1.bf16.msra.mxu0 %v181
  %202 = vmatprep.subr.bf16.mxu0 0
  %203 = vmatpush1.bf16.msra.mxu0 %v182
  %204 = vmatprep.subr.bf16.mxu0 0
  %205 = vmatpush1.bf16.msra.mxu0 %v183
  %206 = vmatprep.subr.bf16.mxu0 0
  %207 = vmatpush1.bf16.msra.mxu0 %v184
  %208 = vmatprep.subr.bf16.mxu0 0
  %209 = vmatpush1.bf16.msra.mxu0 %v185
  %210 = vmatprep.subr.bf16.mxu0 0
  %211 = vmatpush1.bf16.msra.mxu0 0
  %212 = vmatprep.subr.bf16.mxu0 0
  %213 = vmatpush1.bf16.msra.mxu0 0
  %214 = vmatprep.subr.bf16.mxu0 0
  %215 = vmatpush1.bf16.msra.mxu0 0
  %216 = vmatprep.subr.bf16.mxu0 0
  %217 = vmatpush1.bf16.msra.mxu0 0
  %218 = vmatprep.subr.bf16.mxu0 0
  %219 = vmatpush1.bf16.msra.mxu0 0
  %220 = vmatprep.subr.bf16.mxu0 0
  %221 = vmatpush1.bf16.msra.mxu0 0
  %222 = vmatprep.subr.bf16.mxu0 0
  %223 = vmatpush1.bf16.msra.mxu0 0
  %224 = vmatprep.subr.bf16.mxu0 0
  %225 = vmatpush1.bf16.msra.mxu0 0
  %226 = vmatprep.mubr.bf16.mxu0 0
  %227 = vmatmul.mubr.bf16.gmra.mrb[0].mxu0 %v122
  %v228 = vpop.f32.mrb[0].mxu0
  %v229 = vadd.f32 0.0, %v228
  %v230 = vpop.f32.mrb[0].mxu0
  %v231 = vpop.f32.mrb[0].mxu0
  %v232 = vadd.f32 0.0, %v231
  %v233 = vpop.f32.mrb[0].mxu0
  %234 = vmatprep.mubr.bf16.mxu0 0
  %235 = vmatmul.mubr.bf16.gmra.mrb[0].mxu0 %v123
  %v236 = vpop.f32.mrb[0].mxu0
  %v237 = vadd.f32 0.0, %v236
  %v238 = vpop.f32.mrb[0].mxu0
  %v239 = vpop.f32.mrb[0].mxu0
  %v240 = vadd.f32 0.0, %v239
  %v241 = vpop.f32.mrb[0].mxu0
  %242 = vmatprep.mubr.bf16.mxu0 0
  %243 = vmatmul.mubr.bf16.gmra.mrb[0].mxu0 %v124
  %v244 = vpop.f32.mrb[0].mxu0
  %v245 = vadd.f32 0.0, %v244
  %v246 = vpop.f32.mrb[0].mxu0
  %v247 = vpop.f32.mrb[0].mxu0
  %v248 = vadd.f32 0.0, %v247
  %v249 = vpop.f32.mrb[0].mxu0
  %250 = vmatprep.mubr.bf16.mxu0 0
  %251 = vmatmul.mubr.bf16.gmra.mrb[0].mxu0 %v125
  %v252 = vpop.f32.mrb[0].mxu0
  %v253 = vadd.f32 0.0, %v252
  %v254 = vpop.f32.mrb[0].mxu0
  %v255 = vpop.f32.mrb[0].mxu0
  %v256 = vadd.f32 0.0, %v255
  %v257 = vpop.f32.mrb[0].mxu0
  %258 = vmatprep.mubr.bf16.mxu0 0
  %259 = vmatmul.mubr.bf16.gmra.mrb[0].mxu0 %v126
  %v260 = vpop.f32.mrb[0].mxu0
  %v261 = vadd.f32 0.0, %v260
  %v262 = vpop.f32.mrb[0].mxu0
  %v263 = vpop.f32.mrb[0].mxu0
  %v264 = vadd.f32 0.0, %v263
  %v265 = vpop.f32.mrb[0].mxu0
  %266 = vmatprep.mubr.bf16.mxu0 0
  %267 = vmatmul.mubr.bf16.gmra.mrb[0].mxu0 %v127
  %v268 = vpop.f32.mrb[0].mxu0
  %v269 = vadd.f32 0.0, %v268
  %v270 = vpop.f32.mrb[0].mxu0
  %v271 = vpop.f32.mrb[0].mxu0
  %v272 = vadd.f32 0.0, %v271
  %v273 = vpop.f32.mrb[0].mxu0
  %274 = vmatprep.mubr.bf16.mxu0 0
  %275 = vmatmul.mubr.bf16.gmra.mrb[0].mxu0 %v128
  %v276 = vpop.f32.mrb[0].mxu0
  %v277 = vadd.f32 0.0, %v276
  %v278 = vpop.f32.mrb[0].mxu0
  %v279 = vpop.f32.mrb[0].mxu0
  %v280 = vadd.f32 0.0, %v279
  %v281 = vpop.f32.mrb[0].mxu0
  %282 = vmatprep.mubr.bf16.mxu0 0
  %283 = vmatmul.mubr.bf16.gmra.mrb[0].mxu0 %v129
  %v284 = vpop.f32.mrb[0].mxu0
  %v285 = vadd.f32 0.0, %v284
  %v286 = vpop.f32.mrb[0].mxu0
  %v287 = vpop.f32.mrb[0].mxu0
  %v288 = vadd.f32 0.0, %v287
  %v289 = vpop.f32.mrb[0].mxu0
  %290 = vdwg.mxu0
  %v291 = vadd.f32 %v229, %v232
  %v292 = vadd.f32 %v291, %v237
  %v293 = vadd.f32 %v292, %v240
  %v294 = vadd.f32 %v293, %v245
  %v295 = vadd.f32 %v294, %v248
  %v296 = vadd.f32 %v295, %v253
  %v297 = vadd.f32 %v296, %v256
  %v298 = vadd.f32 %v297, %v261
  %v299 = vadd.f32 %v298, %v264
  %v300 = vadd.f32 %v299, %v269
  %v301 = vadd.f32 %v300, %v272
  %v302 = vadd.f32 %v301, %v277
  %v303 = vadd.f32 %v302, %v280
  %v304 = vadd.f32 %v303, %v285
  %v305 = vadd.f32 %v304, %v288
  %v306 = vrot.slane %v305, 4
  %v307 = vadd.f32 %v305, %v306
  %v308 = vrot.slane %v307, 2
  %v309 = vadd.f32 %v307, %v308
  %v310 = vrot.slane %v309, 1
  %v311 = vadd.f32 %v309, %v310
  %312 = vst [vmem:[%s6] sm:$0x1] %v311
  %v313 = vmul.f32 %v229, %v229
  %v314 = vmul.f32 %v232, %v232
  %v315 = vmul.f32 %v237, %v237
  %v316 = vmul.f32 %v240, %v240
  %v317 = vmul.f32 %v245, %v245
  %v318 = vmul.f32 %v248, %v248
  %v319 = vmul.f32 %v253, %v253
  %v320 = vmul.f32 %v256, %v256
  %v321 = vmul.f32 %v261, %v261
  %v322 = vmul.f32 %v264, %v264
  %v323 = vmul.f32 %v269, %v269
  %v324 = vmul.f32 %v272, %v272
  %v325 = vmul.f32 %v277, %v277
  %v326 = vmul.f32 %v280, %v280
  %v327 = vmul.f32 %v285, %v285
  %v328 = vmul.f32 %v288, %v288
  %v329 = vadd.f32 %v313, %v314
  %v330 = vadd.f32 %v329, %v315
  %v331 = vadd.f32 %v330, %v316
  %v332 = vadd.f32 %v331, %v317
  %v333 = vadd.f32 %v332, %v318
  %v334 = vadd.f32 %v333, %v319
  %v335 = vadd.f32 %v334, %v320
  %v336 = vadd.f32 %v335, %v321
  %v337 = vadd.f32 %v336, %v322
  %v338 = vadd.f32 %v337, %v323
  %v339 = vadd.f32 %v338, %v324
  %v340 = vadd.f32 %v339, %v325
  %v341 = vadd.f32 %v340, %v326
  %v342 = vadd.f32 %v341, %v327
  %v343 = vadd.f32 %v342, %v328
  %v344 = vrot.slane %v343, 4
  %v345 = vadd.f32 %v343, %v344
  %v346 = vrot.slane %v345, 2
  %v347 = vadd.f32 %v345, %v346
  %v348 = vrot.slane %v347, 1
  %v349 = vadd.f32 %v347, %v348
  %350 = vst [vmem:[%s7] sm:$0x1] %v349
  %v351 = vld [vmem:[%s1] sm:$0xf]
  %v352 = vld [vmem:[%s1 + $0x4] sm:$0xf]
  %v353 = vld [vmem:[%s1 + $0x8] sm:$0xf]
  %v354 = vld [vmem:[%s1 + $0xc] sm:$0xf]
  %v355 = vld [vmem:[%s1 + $0x10] sm:$0xf]
  %v356 = vld [vmem:[%s1 + $0x14] sm:$0xf]
  %v357 = vld [vmem:[%s1 + $0x18] sm:$0xf]
  %v358 = vld [vmem:[%s1 + $0x1c] sm:$0xf]
  %v359 = vld [vmem:[%s1 + $0x20] sm:$0xf]
  %v360 = vld [vmem:[%s1 + $0x24] sm:$0xf]
  %v361 = vld [vmem:[%s1 + $0x28] sm:$0xf]
  %v362 = vld [vmem:[%s1 + $0x2c] sm:$0xf]
  %v363 = vld [vmem:[%s1 + $0x30] sm:$0xf]
  %v364 = vld [vmem:[%s1 + $0x34] sm:$0xf]
  %v365 = vld [vmem:[%s1 + $0x38] sm:$0xf]
  %v366 = vld [vmem:[%s1 + $0x3c] sm:$0xf]
  %v367 = vld [vmem:[%s3] sm:$0xf]
  %v368 = vld [vmem:[%s3 + $0x4] sm:$0xf]
  %v369 = vld [vmem:[%s3 + $0x8] sm:$0xf]
  %v370 = vld [vmem:[%s3 + $0xc] sm:$0xf]
  %v371 = vld [vmem:[%s3 + $0x10] sm:$0xf]
  %v372 = vld [vmem:[%s3 + $0x14] sm:$0xf]
  %v373 = vld [vmem:[%s3 + $0x18] sm:$0xf]
  %v374 = vld [vmem:[%s3 + $0x1c] sm:$0xf]
  %v375 = vld [vmem:[%s3 + $0x20] sm:$0xf]
  %v376 = vld [vmem:[%s3 + $0x24] sm:$0xf]
  %v377 = vld [vmem:[%s3 + $0x28] sm:$0xf]
  %v378 = vld [vmem:[%s3 + $0x2c] sm:$0xf]
  %v379 = vld [vmem:[%s3 + $0x30] sm:$0xf]
  %v380 = vld [vmem:[%s3 + $0x34] sm:$0xf]
  %v381 = vld [vmem:[%s3 + $0x38] sm:$0xf]
  %v382 = vld [vmem:[%s3 + $0x3c] sm:$0xf]
  %v399 = vunpack.c.l.b16 %v351
  %v400 = vunpack.c.l.b16 %v352
  %v401 = vunpack.c.l.b16 %v353
  %v402 = vunpack.c.l.b16 %v354
  %v403 = vunpack.c.l.b16 %v355
  %v404 = vunpack.c.l.b16 %v356
  %v405 = vunpack.c.l.b16 %v357
  %v406 = vunpack.c.l.b16 %v358
  %v407 = vunpack.c.l.b16 %v359
  %v408 = vunpack.c.l.b16 %v360
  %v409 = vunpack.c.l.b16 %v361
  %v410 = vunpack.c.l.b16 %v362
  %v411 = vunpack.c.l.b16 %v363
  %v412 = vunpack.c.l.b16 %v364
  %v413 = vunpack.c.l.b16 %v365
  %v414 = vunpack.c.l.b16 %v366
  %v415 = vpack.c.b16 %v400, %v399
  %v416 = vpack.c.b16 %v402, %v401
  %v417 = vpack.c.b16 %v404, %v403
  %v418 = vpack.c.b16 %v406, %v405
  %v419 = vpack.c.b16 %v408, %v407
  %v420 = vpack.c.b16 %v410, %v409
  %v421 = vpack.c.b16 %v412, %v411
  %v422 = vpack.c.b16 %v414, %v413
  %v447 = vunpack.c.l.b16 %v367
  %v448 = vunpack.c.l.b16 %v368
  %v449 = vunpack.c.l.b16 %v369
  %v450 = vunpack.c.l.b16 %v370
  %v451 = vunpack.c.l.b16 %v371
  %v452 = vunpack.c.l.b16 %v372
  %v453 = vunpack.c.l.b16 %v373
  %v454 = vunpack.c.l.b16 %v374
  %v455 = vunpack.c.l.b16 %v375
  %v456 = vunpack.c.l.b16 %v376
  %v457 = vunpack.c.l.b16 %v377
  %v458 = vunpack.c.l.b16 %v378
  %v459 = vunpack.c.l.b16 %v379
  %v460 = vunpack.c.l.b16 %v380
  %v461 = vunpack.c.l.b16 %v381
  %v462 = vunpack.c.l.b16 %v382
  %v463 = vpack.c.b16 %v448, %v447
  %v464 = vpack.c.b16 %v450, %v449
  %v465 = vpack.c.b16 %v452, %v451
  %v466 = vpack.c.b16 %v454, %v453
  %v467 = vpack.c.b16 %v456, %v455
  %v468 = vpack.c.b16 %v458, %v457
  %v469 = vpack.c.b16 %v460, %v459
  %v470 = vpack.c.b16 %v462, %v461
  %479 = vmatprep.subr.bf16.mxu0 0
  %480 = vmatpush1.bf16.msra.mxu0 %v463
  %481 = vmatprep.subr.bf16.mxu0 0
  %482 = vmatpush1.bf16.msra.mxu0 %v464
  %483 = vmatprep.subr.bf16.mxu0 0
  %484 = vmatpush1.bf16.msra.mxu0 %v465
  %485 = vmatprep.subr.bf16.mxu0 0
  %486 = vmatpush1.bf16.msra.mxu0 %v466
  %487 = vmatprep.subr.bf16.mxu0 0
  %488 = vmatpush1.bf16.msra.mxu0 %v467
  %489 = vmatprep.subr.bf16.mxu0 0
  %490 = vmatpush1.bf16.msra.mxu0 %v468
  %491 = vmatprep.subr.bf16.mxu0 0
  %492 = vmatpush1.bf16.msra.mxu0 %v469
  %493 = vmatprep.subr.bf16.mxu0 0
  %494 = vmatpush1.bf16.msra.mxu0 %v470
  %495 = vmatprep.subr.bf16.mxu0 0
  %496 = vmatpush1.bf16.msra.mxu0 0
  %497 = vmatprep.subr.bf16.mxu0 0
  %498 = vmatpush1.bf16.msra.mxu0 0
  %499 = vmatprep.subr.bf16.mxu0 0
  %500 = vmatpush1.bf16.msra.mxu0 0
  %501 = vmatprep.subr.bf16.mxu0 0
  %502 = vmatpush1.bf16.msra.mxu0 0
  %503 = vmatprep.subr.bf16.mxu0 0
  %504 = vmatpush1.bf16.msra.mxu0 0
  %505 = vmatprep.subr.bf16.mxu0 0
  %506 = vmatpush1.bf16.msra.mxu0 0
  %507 = vmatprep.subr.bf16.mxu0 0
  %508 = vmatpush1.bf16.msra.mxu0 0
  %509 = vmatprep.subr.bf16.mxu0 0
  %510 = vmatpush1.bf16.msra.mxu0 0
  %511 = vmatprep.mubr.bf16.mxu0 0
  %512 = vmatmul.mubr.bf16.gmra.mrb[0].mxu0 %v415
  %v513 = vpop.f32.mrb[0].mxu0
  %v514 = vadd.f32 0.0, %v513
  %v515 = vpop.f32.mrb[0].mxu0
  %v516 = vpop.f32.mrb[0].mxu0
  %v517 = vadd.f32 0.0, %v516
  %v518 = vpop.f32.mrb[0].mxu0
  %519 = vmatprep.mubr.bf16.mxu0 0
  %520 = vmatmul.mubr.bf16.gmra.mrb[0].mxu0 %v416
  %v521 = vpop.f32.mrb[0].mxu0
  %v522 = vadd.f32 0.0, %v521
  %v523 = vpop.f32.mrb[0].mxu0
  %v524 = vpop.f32.mrb[0].mxu0
  %v525 = vadd.f32 0.0, %v524
  %v526 = vpop.f32.mrb[0].mxu0
  %527 = vmatprep.mubr.bf16.mxu0 0
  %528 = vmatmul.mubr.bf16.gmra.mrb[0].mxu0 %v417
  %v529 = vpop.f32.mrb[0].mxu0
  %v530 = vadd.f32 0.0, %v529
  %v531 = vpop.f32.mrb[0].mxu0
  %v532 = vpop.f32.mrb[0].mxu0
  %v533 = vadd.f32 0.0, %v532
  %v534 = vpop.f32.mrb[0].mxu0
  %535 = vmatprep.mubr.bf16.mxu0 0
  %536 = vmatmul.mubr.bf16.gmra.mrb[0].mxu0 %v418
  %v537 = vpop.f32.mrb[0].mxu0
  %v538 = vadd.f32 0.0, %v537
  %v539 = vpop.f32.mrb[0].mxu0
  %v540 = vpop.f32.mrb[0].mxu0
  %v541 = vadd.f32 0.0, %v540
  %v542 = vpop.f32.mrb[0].mxu0
  %543 = vmatprep.mubr.bf16.mxu0 0
  %544 = vmatmul.mubr.bf16.gmra.mrb[0].mxu0 %v419
  %v545 = vpop.f32.mrb[0].mxu0
  %v546 = vadd.f32 0.0, %v545
  %v547 = vpop.f32.mrb[0].mxu0
  %v548 = vpop.f32.mrb[0].mxu0
  %v549 = vadd.f32 0.0, %v548
  %v550 = vpop.f32.mrb[0].mxu0
  %551 = vmatprep.mubr.bf16.mxu0 0
  %552 = vmatmul.mubr.bf16.gmra.mrb[0].mxu0 %v420
  %v553 = vpop.f32.mrb[0].mxu0
  %v554 = vadd.f32 0.0, %v553
  %v555 = vpop.f32.mrb[0].mxu0
  %v556 = vpop.f32.mrb[0].mxu0
  %v557 = vadd.f32 0.0, %v556
  %v558 = vpop.f32.mrb[0].mxu0
  %559 = vmatprep.mubr.bf16.mxu0 0
  %560 = vmatmul.mubr.bf16.gmra.mrb[0].mxu0 %v421
  %v561 = vpop.f32.mrb[0].mxu0
  %v562 = vadd.f32 0.0, %v561
  %v563 = vpop.f32.mrb[0].mxu0
  %v564 = vpop.f32.mrb[0].mxu0
  %v565 = vadd.f32 0.0, %v564
  %v566 = vpop.f32.mrb[0].mxu0
  %567 = vmatprep.mubr.bf16.mxu0 0
  %568 = vmatmul.mubr.bf16.gmra.mrb[0].mxu0 %v422
  %v569 = vpop.f32.mrb[0].mxu0
  %v570 = vadd.f32 0.0, %v569
  %v571 = vpop.f32.mrb[0].mxu0
  %v572 = vpop.f32.mrb[0].mxu0
  %v573 = vadd.f32 0.0, %v572
  %v574 = vpop.f32.mrb[0].mxu0
  %575 = vdwg.mxu0
  %v576 = vadd.f32 %v514, %v517
  %v577 = vadd.f32 %v576, %v522
  %v578 = vadd.f32 %v577, %v525
  %v579 = vadd.f32 %v578, %v530
  %v580 = vadd.f32 %v579, %v533
  %v581 = vadd.f32 %v580, %v538
  %v582 = vadd.f32 %v581, %v541
  %v583 = vadd.f32 %v582, %v546
  %v584 = vadd.f32 %v583, %v549
  %v585 = vadd.f32 %v584, %v554
  %v586 = vadd.f32 %v585, %v557
  %v587 = vadd.f32 %v586, %v562
  %v588 = vadd.f32 %v587, %v565
  %v589 = vadd.f32 %v588, %v570
  %v590 = vadd.f32 %v589, %v573
  %v591 = vrot.slane %v590, 4
  %v592 = vadd.f32 %v590, %v591
  %v593 = vrot.slane %v592, 2
  %v594 = vadd.f32 %v592, %v593
  %v595 = vrot.slane %v594, 1
  %v596 = vadd.f32 %v594, %v595
  %597 = vst [vmem:[%s8] sm:$0x1] %v596
  %v598 = vmul.f32 %v514, %v514
  %v599 = vmul.f32 %v517, %v517
  %v600 = vmul.f32 %v522, %v522
  %v601 = vmul.f32 %v525, %v525
  %v602 = vmul.f32 %v530, %v530
  %v603 = vmul.f32 %v533, %v533
  %v604 = vmul.f32 %v538, %v538
  %v605 = vmul.f32 %v541, %v541
  %v606 = vmul.f32 %v546, %v546
  %v607 = vmul.f32 %v549, %v549
  %v608 = vmul.f32 %v554, %v554
  %v609 = vmul.f32 %v557, %v557
  %v610 = vmul.f32 %v562, %v562
  %v611 = vmul.f32 %v565, %v565
  %v612 = vmul.f32 %v570, %v570
  %v613 = vmul.f32 %v573, %v573
  %v614 = vadd.f32 %v598, %v599
  %v615 = vadd.f32 %v614, %v600
  %v616 = vadd.f32 %v615, %v601
  %v617 = vadd.f32 %v616, %v602
  %v618 = vadd.f32 %v617, %v603
  %v619 = vadd.f32 %v618, %v604
  %v620 = vadd.f32 %v619, %v605
  %v621 = vadd.f32 %v620, %v606
  %v622 = vadd.f32 %v621, %v607
  %v623 = vadd.f32 %v622, %v608
  %v624 = vadd.f32 %v623, %v609
  %v625 = vadd.f32 %v624, %v610
  %v626 = vadd.f32 %v625, %v611
  %v627 = vadd.f32 %v626, %v612
  %v628 = vadd.f32 %v627, %v613
  %v629 = vrot.slane %v628, 4
  %v630 = vadd.f32 %v628, %v629
  %v631 = vrot.slane %v630, 2
  %v632 = vadd.f32 %v630, %v631
  %v633 = vrot.slane %v632, 1
  %v634 = vadd.f32 %v632, %v633
  %635 = vst [vmem:[%s9] sm:$0x1] %v634
  // Predicated region
  $region26: #{block_forward.6} parent=0 // pred_check
    _
  $region27: #{block_forward.6} parent=0 // pred_check_branch
    %637 = sbr.rel (0) target = $region29
  $region28: #{block_forward.6} parent=0 // pred_region
    _
  $region29: #{block_forward.6} parent=0 // pred_fallthru
    _
  // Predicated region
  $region30: #{block_forward.6} parent=0 // pred_check
    _
  $region31: #{block_forward.6} parent=0 // pred_check_branch
    %639 = sbr.rel (0) target = $region33
  $region32: #{block_forward.6} parent=0 // pred_region
    _
  $region33: #{block_forward.6} parent=0 // pred_fallthru
    _
  // Predicated region
  $region34: #{block_forward.6} parent=0 // pred_check
    _
  $region35: #{block_forward.6} parent=0 // pred_check_branch
    %641 = sbr.rel (0) target = $region37
  $region36: #{block_forward.6} parent=0 // pred_region
    _
  $region37: #{block_forward.6} parent=0 // pred_fallthru
    _
  // Predicated region
  $region38: #{block_forward.6} parent=0 // pred_check
    _
  $region39: #{block_forward.6} parent=0 // pred_check_branch
    %643 = sbr.rel (0) target = $region41
  $region40: #{block_forward.6} parent=0 // pred_region
    _
  $region41: #{block_forward.6} parent=0 // pred_fallthru
    _
  // Predicated region
  $region42: #{block_forward.6} parent=0 // pred_check
    _
  $region43: #{block_forward.6} parent=0 // pred_check_branch
    %645 = sbr.rel (0) target = $region45
  $region44: #{block_forward.6} parent=0 // pred_region
    _
  $region45: #{block_forward.6} parent=0 // pred_fallthru
    _
  // Predicated region
  $region46: #{block_forward.6} parent=0 // pred_check
    _
  $region47: #{block_forward.6} parent=0 // pred_check_branch
    %647 = sbr.rel (0) target = $region49
  $region48: #{block_forward.6} parent=0 // pred_region
    _
  $region49: #{block_forward.6} parent=0 // pred_fallthru
    _
  // Predicated region
  $region50: #{block_forward.6} parent=0 // pred_check
    _
  $region51: #{block_forward.6} parent=0 // pred_check_branch
    %649 = sbr.rel (0) target = $region53
  $region52: #{block_forward.6} parent=0 // pred_region
    _
  $region53: #{block_forward.6} parent=0 // pred_fallthru
    _
  // Predicated region
  $region54: #{block_forward.6} parent=0 // pred_check
    _
  $region55: #{block_forward.6} parent=0 // pred_check_branch
    %651 = sbr.rel (0) target = $region57
  $region56: #{block_forward.6} parent=0 // pred_region
    _
  $region57: #{block_forward.6} parent=0 // pred_fallthru
    _

// kernel: block_forward.7
$region0: #{block_forward.7}
  #allocation0 [shape = 'u32[]', space=smem, size = 0x4, offset = 0x4, fixed_abs, tag = 'smem constant byte address 0x4 - core index']
  #allocation1 [shape = 'u32[144,128]{1,0:T(1,128)}', space=vmem, size = 0x12000, scoped, tag = 'internal scratch']
  %s0 = inlined_call_operand.vmem [shape: bf16[128,128], index: 0, kind: input, shape index: {}]
  %s1 = inlined_call_operand.vmem [shape: bf16[128,128], index: 1, kind: input, shape index: {}]
  %s2 = inlined_call_operand.vmem [shape: bf16[128,128], index: 2, kind: input, shape index: {}]
  %s3 = inlined_call_operand.vmem [shape: bf16[128,128], index: 3, kind: input, shape index: {}]
  %s4 = inlined_call_operand.vmem [shape: f32[1,128], index: 4, kind: input, shape index: {}]
  %s5 = inlined_call_operand.vmem [shape: f32[1,128], index: 5, kind: input, shape index: {}]
  %s6 = inlined_call_operand.vmem [shape: f32[1,128], index: 6, kind: input, shape index: {}]
  %s7 = inlined_call_operand.vmem [shape: f32[1,128], index: 7, kind: input, shape index: {}]
  %s8 = inlined_call_operand.vmem [shape: f32[1,128], index: 8, kind: input, shape index: {}]
  %s9 = inlined_call_operand.vmem [shape: f32[1,128], index: 9, kind: input, shape index: {}]
  %s10 = inlined_call_operand.vmem [shape: f32[128,128], index: 10, kind: output, shape index: {}]
  %s11 = sld [smem:[#allocation0]]
  $region50: #{block_forward.7} parent=0
    _
  %s13 = ssub.s32 1, %s11
  %s14 = scalar_select 0, %s13, %s11
  // Predicated region
  $region2: #{block_forward.7} parent=0 // pred_check
    _
  $region3: #{block_forward.7} parent=0 // pred_check_branch
    %16 = sbr.rel (0) target = $region5
  $region4: #{block_forward.7} parent=0 // pred_region
    _
  $region5: #{block_forward.7} parent=0 // pred_fallthru
    _
  // Predicated region
  $region6: #{block_forward.7} parent=0 // pred_check
    _
  $region7: #{block_forward.7} parent=0 // pred_check_branch
    %18 = sbr.rel (0) target = $region9
  $region8: #{block_forward.7} parent=0 // pred_region
    _
  $region9: #{block_forward.7} parent=0 // pred_fallthru
    _
  // Predicated region
  $region10: #{block_forward.7} parent=0 // pred_check
    _
  $region11: #{block_forward.7} parent=0 // pred_check_branch
    %20 = sbr.rel (0) target = $region13
  $region12: #{block_forward.7} parent=0 // pred_region
    _
  $region13: #{block_forward.7} parent=0 // pred_fallthru
    _
  // Predicated region
  $region14: #{block_forward.7} parent=0 // pred_check
    _
  $region15: #{block_forward.7} parent=0 // pred_check_branch
    %22 = sbr.rel (0) target = $region17
  $region16: #{block_forward.7} parent=0 // pred_region
    _
  $region17: #{block_forward.7} parent=0 // pred_fallthru
    _
  // Predicated region
  $region18: #{block_forward.7} parent=0 // pred_check
    _
  $region19: #{block_forward.7} parent=0 // pred_check_branch
    %24 = sbr.rel (0) target = $region21
  $region20: #{block_forward.7} parent=0 // pred_region
    _
  $region21: #{block_forward.7} parent=0 // pred_fallthru
    _
  // Predicated region
  $region22: #{block_forward.7} parent=0 // pred_check
    _
  $region23: #{block_forward.7} parent=0 // pred_check_branch
    %26 = sbr.rel (0) target = $region25
  $region24: #{block_forward.7} parent=0 // pred_region
    _
  $region25: #{block_forward.7} parent=0 // pred_fallthru
    _
  // Predicated region
  $region26: #{block_forward.7} parent=0 // pred_check
    _
  $region27: #{block_forward.7} parent=0 // pred_check_branch
    %28 = sbr.rel (0) target = $region29
  $region28: #{block_forward.7} parent=0 // pred_region
    _
  $region29: #{block_forward.7} parent=0 // pred_fallthru
    _
  // Predicated region
  $region30: #{block_forward.7} parent=0 // pred_check
    _
  $region31: #{block_forward.7} parent=0 // pred_check_branch
    %30 = sbr.rel (0) target = $region33
  $region32: #{block_forward.7} parent=0 // pred_region
    _
  $region33: #{block_forward.7} parent=0 // pred_fallthru
    _
  // Predicated region
  $region34: #{block_forward.7} parent=0 // pred_check
    _
  $region35: #{block_forward.7} parent=0 // pred_check_branch
    %32 = sbr.rel (0) target = $region37
  $region36: #{block_forward.7} parent=0 // pred_region
    _
  $region37: #{block_forward.7} parent=0 // pred_fallthru
    _
  // Predicated region
  $region38: #{block_forward.7} parent=0 // pred_check
    _
  $region39: #{block_forward.7} parent=0 // pred_check_branch
    %34 = sbr.rel (0) target = $region41
  $region40: #{block_forward.7} parent=0 // pred_region
    _
  $region41: #{block_forward.7} parent=0 // pred_fallthru
    _
  %v36 = vld [vmem:[%s0] sm:$0xf]
  %v37 = vld [vmem:[%s0 + $0x4] sm:$0xf]
  %v38 = vld [vmem:[%s0 + $0x8] sm:$0xf]
  %v39 = vld [vmem:[%s0 + $0xc] sm:$0xf]
  %v40 = vld [vmem:[%s0 + $0x10] sm:$0xf]
  %v41 = vld [vmem:[%s0 + $0x14] sm:$0xf]
  %v42 = vld [vmem:[%s0 + $0x18] sm:$0xf]
  %v43 = vld [vmem:[%s0 + $0x1c] sm:$0xf]
  %v44 = vld [vmem:[%s0 + $0x20] sm:$0xf]
  %v45 = vld [vmem:[%s0 + $0x24] sm:$0xf]
  %v46 = vld [vmem:[%s0 + $0x28] sm:$0xf]
  %v47 = vld [vmem:[%s0 + $0x2c] sm:$0xf]
  %v48 = vld [vmem:[%s0 + $0x30] sm:$0xf]
  %v49 = vld [vmem:[%s0 + $0x34] sm:$0xf]
  %v50 = vld [vmem:[%s0 + $0x38] sm:$0xf]
  %v51 = vld [vmem:[%s0 + $0x3c] sm:$0xf]
  %v52 = vunpack.c.l.bf16 %v36
  %v53 = vunpack.c.l.bf16 %v37
  %v54 = vunpack.c.l.bf16 %v38
  %v55 = vunpack.c.l.bf16 %v39
  %v56 = vunpack.c.l.bf16 %v40
  %v57 = vunpack.c.l.bf16 %v41
  %v58 = vunpack.c.l.bf16 %v42
  %v59 = vunpack.c.l.bf16 %v43
  %v60 = vunpack.c.l.bf16 %v44
  %v61 = vunpack.c.l.bf16 %v45
  %v62 = vunpack.c.l.bf16 %v46
  %v63 = vunpack.c.l.bf16 %v47
  %v64 = vunpack.c.l.bf16 %v48
  %v65 = vunpack.c.l.bf16 %v49
  %v66 = vunpack.c.l.bf16 %v50
  %v67 = vunpack.c.l.bf16 %v51
  %v68 = vld [vmem:[%s4] sm:$0x1]
  %v70 = vlaneseq
  %v71 = vshrl.u32 %v70, 7
  %v72 = vsub.s32 0, %v71
  %v73 = vrot.slane %v68, %v72
  %v75 = vmul.f32 %v52, %v73
  %v76 = vmul.f32 %v53, %v73
  %v77 = vmul.f32 %v54, %v73
  %v78 = vmul.f32 %v55, %v73
  %v79 = vmul.f32 %v56, %v73
  %v80 = vmul.f32 %v57, %v73
  %v81 = vmul.f32 %v58, %v73
  %v82 = vmul.f32 %v59, %v73
  %v83 = vmul.f32 %v60, %v73
  %v84 = vmul.f32 %v61, %v73
  %v85 = vmul.f32 %v62, %v73
  %v86 = vmul.f32 %v63, %v73
  %v87 = vmul.f32 %v64, %v73
  %v88 = vmul.f32 %v65, %v73
  %v89 = vmul.f32 %v66, %v73
  %v90 = vmul.f32 %v67, %v73
  %v91 = vld [vmem:[%s5] sm:$0x1]
  %v93 = vlaneseq
  %v94 = vshrl.u32 %v93, 7
  %v95 = vsub.s32 0, %v94
  %v96 = vrot.slane %v91, %v95
  %v98 = vadd.f32 %v75, %v96
  %v99 = vadd.f32 %v76, %v96
  %v100 = vadd.f32 %v77, %v96
  %v101 = vadd.f32 %v78, %v96
  %v102 = vadd.f32 %v79, %v96
  %v103 = vadd.f32 %v80, %v96
  %v104 = vadd.f32 %v81, %v96
  %v105 = vadd.f32 %v82, %v96
  %v106 = vadd.f32 %v83, %v96
  %v107 = vadd.f32 %v84, %v96
  %v108 = vadd.f32 %v85, %v96
  %v109 = vadd.f32 %v86, %v96
  %v110 = vadd.f32 %v87, %v96
  %v111 = vadd.f32 %v88, %v96
  %v112 = vadd.f32 %v89, %v96
  %v113 = vadd.f32 %v90, %v96
  %v114 = vmax.f32 %v98, 0.0
  %v115 = vmax.f32 %v99, 0.0
  %v116 = vmax.f32 %v100, 0.0
  %v117 = vmax.f32 %v101, 0.0
  %v118 = vmax.f32 %v102, 0.0
  %v119 = vmax.f32 %v103, 0.0
  %v120 = vmax.f32 %v104, 0.0
  %v121 = vmax.f32 %v105, 0.0
  %v122 = vmax.f32 %v106, 0.0
  %v123 = vmax.f32 %v107, 0.0
  %v124 = vmax.f32 %v108, 0.0
  %v125 = vmax.f32 %v109, 0.0
  %v126 = vmax.f32 %v110, 0.0
  %v127 = vmax.f32 %v111, 0.0
  %v128 = vmax.f32 %v112, 0.0
  %v129 = vmax.f32 %v113, 0.0
  %v130 = vpack.c.bf16 %v115, %v114
  %v131 = vpack.c.bf16 %v117, %v116
  %v132 = vpack.c.bf16 %v119, %v118
  %v133 = vpack.c.bf16 %v121, %v120
  %v134 = vpack.c.bf16 %v123, %v122
  %v135 = vpack.c.bf16 %v125, %v124
  %v136 = vpack.c.bf16 %v127, %v126
  %v137 = vpack.c.bf16 %v129, %v128
  %v138 = vld [vmem:[%s2] sm:$0xf]
  %v139 = vld [vmem:[%s2 + $0x4] sm:$0xf]
  %v140 = vld [vmem:[%s2 + $0x8] sm:$0xf]
  %v141 = vld [vmem:[%s2 + $0xc] sm:$0xf]
  %v142 = vld [vmem:[%s2 + $0x10] sm:$0xf]
  %v143 = vld [vmem:[%s2 + $0x14] sm:$0xf]
  %v144 = vld [vmem:[%s2 + $0x18] sm:$0xf]
  %v145 = vld [vmem:[%s2 + $0x1c] sm:$0xf]
  %v146 = vld [vmem:[%s2 + $0x20] sm:$0xf]
  %v147 = vld [vmem:[%s2 + $0x24] sm:$0xf]
  %v148 = vld [vmem:[%s2 + $0x28] sm:$0xf]
  %v149 = vld [vmem:[%s2 + $0x2c] sm:$0xf]
  %v150 = vld [vmem:[%s2 + $0x30] sm:$0xf]
  %v151 = vld [vmem:[%s2 + $0x34] sm:$0xf]
  %v152 = vld [vmem:[%s2 + $0x38] sm:$0xf]
  %v153 = vld [vmem:[%s2 + $0x3c] sm:$0xf]
  %v170 = vunpack.c.l.b16 %v138
  %v171 = vunpack.c.l.b16 %v139
  %v172 = vunpack.c.l.b16 %v140
  %v173 = vunpack.c.l.b16 %v141
  %v174 = vunpack.c.l.b16 %v142
  %v175 = vunpack.c.l.b16 %v143
  %v176 = vunpack.c.l.b16 %v144
  %v177 = vunpack.c.l.b16 %v145
  %v178 = vunpack.c.l.b16 %v146
  %v179 = vunpack.c.l.b16 %v147
  %v180 = vunpack.c.l.b16 %v148
  %v181 = vunpack.c.l.b16 %v149
  %v182 = vunpack.c.l.b16 %v150
  %v183 = vunpack.c.l.b16 %v151
  %v184 = vunpack.c.l.b16 %v152
  %v185 = vunpack.c.l.b16 %v153
  %v186 = vpack.c.b16 %v171, %v170
  %v187 = vpack.c.b16 %v173, %v172
  %v188 = vpack.c.b16 %v175, %v174
  %v189 = vpack.c.b16 %v177, %v176
  %v190 = vpack.c.b16 %v179, %v178
  %v191 = vpack.c.b16 %v181, %v180
  %v192 = vpack.c.b16 %v183, %v182
  %v193 = vpack.c.b16 %v185, %v184
  %202 = vmatprep.subr.bf16.mxu0 0
  %203 = vmatpush1.bf16.msra.mxu0 %v186
  %204 = vmatprep.subr.bf16.mxu0 0
  %205 = vmatpush1.bf16.msra.mxu0 %v187
  %206 = vmatprep.subr.bf16.mxu0 0
  %207 = vmatpush1.bf16.msra.mxu0 %v188
  %208 = vmatprep.subr.bf16.mxu0 0
  %209 = vmatpush1.bf16.msra.mxu0 %v189
  %210 = vmatprep.subr.bf16.mxu0 0
  %211 = vmatpush1.bf16.msra.mxu0 %v190
  %212 = vmatprep.subr.bf16.mxu0 0
  %213 = vmatpush1.bf16.msra.mxu0 %v191
  %214 = vmatprep.subr.bf16.mxu0 0
  %215 = vmatpush1.bf16.msra.mxu0 %v192
  %216 = vmatprep.subr.bf16.mxu0 0
  %217 = vmatpush1.bf16.msra.mxu0 %v193
  %218 = vmatprep.subr.bf16.mxu0 0
  %219 = vmatpush1.bf16.msra.mxu0 0
  %220 = vmatprep.subr.bf16.mxu0 0
  %221 = vmatpush1.bf16.msra.mxu0 0
  %222 = vmatprep.subr.bf16.mxu0 0
  %223 = vmatpush1.bf16.msra.mxu0 0
  %224 = vmatprep.subr.bf16.mxu0 0
  %225 = vmatpush1.bf16.msra.mxu0 0
  %226 = vmatprep.subr.bf16.mxu0 0
  %227 = vmatpush1.bf16.msra.mxu0 0
  %228 = vmatprep.subr.bf16.mxu0 0
  %229 = vmatpush1.bf16.msra.mxu0 0
  %230 = vmatprep.subr.bf16.mxu0 0
  %231 = vmatpush1.bf16.msra.mxu0 0
  %232 = vmatprep.subr.bf16.mxu0 0
  %233 = vmatpush1.bf16.msra.mxu0 0
  %234 = vmatprep.mubr.bf16.mxu0 0
  %235 = vmatmul.mubr.bf16.gmra.mrb[0].mxu0 %v130
  %v236 = vpop.f32.mrb[0].mxu0
  %v237 = vadd.f32 0.0, %v236
  %v238 = vpop.f32.mrb[0].mxu0
  %v239 = vpop.f32.mrb[0].mxu0
  %v240 = vadd.f32 0.0, %v239
  %v241 = vpop.f32.mrb[0].mxu0
  %242 = vmatprep.mubr.bf16.mxu0 0
  %243 = vmatmul.mubr.bf16.gmra.mrb[0].mxu0 %v131
  %v244 = vpop.f32.mrb[0].mxu0
  %v245 = vadd.f32 0.0, %v244
  %v246 = vpop.f32.mrb[0].mxu0
  %v247 = vpop.f32.mrb[0].mxu0
  %v248 = vadd.f32 0.0, %v247
  %v249 = vpop.f32.mrb[0].mxu0
  %250 = vmatprep.mubr.bf16.mxu0 0
  %251 = vmatmul.mubr.bf16.gmra.mrb[0].mxu0 %v132
  %v252 = vpop.f32.mrb[0].mxu0
  %v253 = vadd.f32 0.0, %v252
  %v254 = vpop.f32.mrb[0].mxu0
  %v255 = vpop.f32.mrb[0].mxu0
  %v256 = vadd.f32 0.0, %v255
  %v257 = vpop.f32.mrb[0].mxu0
  %258 = vmatprep.mubr.bf16.mxu0 0
  %259 = vmatmul.mubr.bf16.gmra.mrb[0].mxu0 %v133
  %v260 = vpop.f32.mrb[0].mxu0
  %v261 = vadd.f32 0.0, %v260
  %v262 = vpop.f32.mrb[0].mxu0
  %v263 = vpop.f32.mrb[0].mxu0
  %v264 = vadd.f32 0.0, %v263
  %v265 = vpop.f32.mrb[0].mxu0
  %266 = vmatprep.mubr.bf16.mxu0 0
  %267 = vmatmul.mubr.bf16.gmra.mrb[0].mxu0 %v134
  %v268 = vpop.f32.mrb[0].mxu0
  %v269 = vadd.f32 0.0, %v268
  %v270 = vpop.f32.mrb[0].mxu0
  %v271 = vpop.f32.mrb[0].mxu0
  %v272 = vadd.f32 0.0, %v271
  %v273 = vpop.f32.mrb[0].mxu0
  %274 = vmatprep.mubr.bf16.mxu0 0
  %275 = vmatmul.mubr.bf16.gmra.mrb[0].mxu0 %v135
  %v276 = vpop.f32.mrb[0].mxu0
  %v277 = vadd.f32 0.0, %v276
  %v278 = vpop.f32.mrb[0].mxu0
  %v279 = vpop.f32.mrb[0].mxu0
  %v280 = vadd.f32 0.0, %v279
  %v281 = vpop.f32.mrb[0].mxu0
  %282 = vmatprep.mubr.bf16.mxu0 0
  %283 = vmatmul.mubr.bf16.gmra.mrb[0].mxu0 %v136
  %v284 = vpop.f32.mrb[0].mxu0
  %v285 = vadd.f32 0.0, %v284
  %v286 = vpop.f32.mrb[0].mxu0
  %v287 = vpop.f32.mrb[0].mxu0
  %v288 = vadd.f32 0.0, %v287
  %v289 = vpop.f32.mrb[0].mxu0
  %290 = vmatprep.mubr.bf16.mxu0 0
  %291 = vmatmul.mubr.bf16.gmra.mrb[0].mxu0 %v137
  %v292 = vpop.f32.mrb[0].mxu0
  %v293 = vadd.f32 0.0, %v292
  %v294 = vpop.f32.mrb[0].mxu0
  %v295 = vpop.f32.mrb[0].mxu0
  %v296 = vadd.f32 0.0, %v295
  %v297 = vpop.f32.mrb[0].mxu0
  %298 = vdwg.mxu0
  %v299 = vld [vmem:[%s1] sm:$0xf]
  %v300 = vld [vmem:[%s1 + $0x4] sm:$0xf]
  %v301 = vld [vmem:[%s1 + $0x8] sm:$0xf]
  %v302 = vld [vmem:[%s1 + $0xc] sm:$0xf]
  %v303 = vld [vmem:[%s1 + $0x10] sm:$0xf]
  %v304 = vld [vmem:[%s1 + $0x14] sm:$0xf]
  %v305 = vld [vmem:[%s1 + $0x18] sm:$0xf]
  %v306 = vld [vmem:[%s1 + $0x1c] sm:$0xf]
  %v307 = vld [vmem:[%s1 + $0x20] sm:$0xf]
  %v308 = vld [vmem:[%s1 + $0x24] sm:$0xf]
  %v309 = vld [vmem:[%s1 + $0x28] sm:$0xf]
  %v310 = vld [vmem:[%s1 + $0x2c] sm:$0xf]
  %v311 = vld [vmem:[%s1 + $0x30] sm:$0xf]
  %v312 = vld [vmem:[%s1 + $0x34] sm:$0xf]
  %v313 = vld [vmem:[%s1 + $0x38] sm:$0xf]
  %v314 = vld [vmem:[%s1 + $0x3c] sm:$0xf]
  %v315 = vld [vmem:[%s3] sm:$0xf]
  %v316 = vld [vmem:[%s3 + $0x4] sm:$0xf]
  %v317 = vld [vmem:[%s3 + $0x8] sm:$0xf]
  %v318 = vld [vmem:[%s3 + $0xc] sm:$0xf]
  %v319 = vld [vmem:[%s3 + $0x10] sm:$0xf]
  %v320 = vld [vmem:[%s3 + $0x14] sm:$0xf]
  %v321 = vld [vmem:[%s3 + $0x18] sm:$0xf]
  %v322 = vld [vmem:[%s3 + $0x1c] sm:$0xf]
  %v323 = vld [vmem:[%s3 + $0x20] sm:$0xf]
  %v324 = vld [vmem:[%s3 + $0x24] sm:$0xf]
  %v325 = vld [vmem:[%s3 + $0x28] sm:$0xf]
  %v326 = vld [vmem:[%s3 + $0x2c] sm:$0xf]
  %v327 = vld [vmem:[%s3 + $0x30] sm:$0xf]
  %v328 = vld [vmem:[%s3 + $0x34] sm:$0xf]
  %v329 = vld [vmem:[%s3 + $0x38] sm:$0xf]
  %v330 = vld [vmem:[%s3 + $0x3c] sm:$0xf]
  %v347 = vunpack.c.l.b16 %v299
  %v348 = vunpack.c.l.b16 %v300
  %v349 = vunpack.c.l.b16 %v301
  %v350 = vunpack.c.l.b16 %v302
  %v351 = vunpack.c.l.b16 %v303
  %v352 = vunpack.c.l.b16 %v304
  %v353 = vunpack.c.l.b16 %v305
  %v354 = vunpack.c.l.b16 %v306
  %v355 = vunpack.c.l.b16 %v307
  %v356 = vunpack.c.l.b16 %v308
  %v357 = vunpack.c.l.b16 %v309
  %v358 = vunpack.c.l.b16 %v310
  %v359 = vunpack.c.l.b16 %v311
  %v360 = vunpack.c.l.b16 %v312
  %v361 = vunpack.c.l.b16 %v313
  %v362 = vunpack.c.l.b16 %v314
  %v363 = vpack.c.b16 %v348, %v347
  %v364 = vpack.c.b16 %v350, %v349
  %v365 = vpack.c.b16 %v352, %v351
  %v366 = vpack.c.b16 %v354, %v353
  %v367 = vpack.c.b16 %v356, %v355
  %v368 = vpack.c.b16 %v358, %v357
  %v369 = vpack.c.b16 %v360, %v359
  %v370 = vpack.c.b16 %v362, %v361
  %v395 = vunpack.c.l.b16 %v315
  %v396 = vunpack.c.l.b16 %v316
  %v397 = vunpack.c.l.b16 %v317
  %v398 = vunpack.c.l.b16 %v318
  %v399 = vunpack.c.l.b16 %v319
  %v400 = vunpack.c.l.b16 %v320
  %v401 = vunpack.c.l.b16 %v321
  %v402 = vunpack.c.l.b16 %v322
  %v403 = vunpack.c.l.b16 %v323
  %v404 = vunpack.c.l.b16 %v324
  %v405 = vunpack.c.l.b16 %v325
  %v406 = vunpack.c.l.b16 %v326
  %v407 = vunpack.c.l.b16 %v327
  %v408 = vunpack.c.l.b16 %v328
  %v409 = vunpack.c.l.b16 %v329
  %v410 = vunpack.c.l.b16 %v330
  %v411 = vpack.c.b16 %v396, %v395
  %v412 = vpack.c.b16 %v398, %v397
  %v413 = vpack.c.b16 %v400, %v399
  %v414 = vpack.c.b16 %v402, %v401
  %v415 = vpack.c.b16 %v404, %v403
  %v416 = vpack.c.b16 %v406, %v405
  %v417 = vpack.c.b16 %v408, %v407
  %v418 = vpack.c.b16 %v410, %v409
  %427 = vmatprep.subr.bf16.mxu0 0
  %428 = vmatpush1.bf16.msra.mxu0 %v411
  %429 = vmatprep.subr.bf16.mxu0 0
  %430 = vmatpush1.bf16.msra.mxu0 %v412
  %431 = vmatprep.subr.bf16.mxu0 0
  %432 = vmatpush1.bf16.msra.mxu0 %v413
  %433 = vmatprep.subr.bf16.mxu0 0
  %434 = vmatpush1.bf16.msra.mxu0 %v414
  %435 = vmatprep.subr.bf16.mxu0 0
  %436 = vmatpush1.bf16.msra.mxu0 %v415
  %437 = vmatprep.subr.bf16.mxu0 0
  %438 = vmatpush1.bf16.msra.mxu0 %v416
  %439 = vmatprep.subr.bf16.mxu0 0
  %440 = vmatpush1.bf16.msra.mxu0 %v417
  %441 = vmatprep.subr.bf16.mxu0 0
  %442 = vmatpush1.bf16.msra.mxu0 %v418
  %443 = vmatprep.subr.bf16.mxu0 0
  %444 = vmatpush1.bf16.msra.mxu0 0
  %445 = vmatprep.subr.bf16.mxu0 0
  %446 = vmatpush1.bf16.msra.mxu0 0
  %447 = vmatprep.subr.bf16.mxu0 0
  %448 = vmatpush1.bf16.msra.mxu0 0
  %449 = vmatprep.subr.bf16.mxu0 0
  %450 = vmatpush1.bf16.msra.mxu0 0
  %451 = vmatprep.subr.bf16.mxu0 0
  %452 = vmatpush1.bf16.msra.mxu0 0
  %453 = vmatprep.subr.bf16.mxu0 0
  %454 = vmatpush1.bf16.msra.mxu0 0
  %455 = vmatprep.subr.bf16.mxu0 0
  %456 = vmatpush1.bf16.msra.mxu0 0
  %457 = vmatprep.subr.bf16.mxu0 0
  %458 = vmatpush1.bf16.msra.mxu0 0
  %459 = vmatprep.mubr.bf16.mxu0 0
  %460 = vmatmul.mubr.bf16.gmra.mrb[0].mxu0 %v363
  %v461 = vpop.f32.mrb[0].mxu0
  %v462 = vadd.f32 0.0, %v461
  %v463 = vpop.f32.mrb[0].mxu0
  %v464 = vpop.f32.mrb[0].mxu0
  %v465 = vadd.f32 0.0, %v464
  %v466 = vpop.f32.mrb[0].mxu0
  %467 = vmatprep.mubr.bf16.mxu0 0
  %468 = vmatmul.mubr.bf16.gmra.mrb[0].mxu0 %v364
  %v469 = vpop.f32.mrb[0].mxu0
  %v470 = vadd.f32 0.0, %v469
  %v471 = vpop.f32.mrb[0].mxu0
  %v472 = vpop.f32.mrb[0].mxu0
  %v473 = vadd.f32 0.0, %v472
  %v474 = vpop.f32.mrb[0].mxu0
  %475 = vmatprep.mubr.bf16.mxu0 0
  %476 = vmatmul.mubr.bf16.gmra.mrb[0].mxu0 %v365
  %v477 = vpop.f32.mrb[0].mxu0
  %v478 = vadd.f32 0.0, %v477
  %v479 = vpop.f32.mrb[0].mxu0
  %v480 = vpop.f32.mrb[0].mxu0
  %v481 = vadd.f32 0.0, %v480
  %v482 = vpop.f32.mrb[0].mxu0
  %483 = vmatprep.mubr.bf16.mxu0 0
  %484 = vmatmul.mubr.bf16.gmra.mrb[0].mxu0 %v366
  %v485 = vpop.f32.mrb[0].mxu0
  %v486 = vadd.f32 0.0, %v485
  %v487 = vpop.f32.mrb[0].mxu0
  %v488 = vpop.f32.mrb[0].mxu0
  %v489 = vadd.f32 0.0, %v488
  %v490 = vpop.f32.mrb[0].mxu0
  %491 = vmatprep.mubr.bf16.mxu0 0
  %492 = vmatmul.mubr.bf16.gmra.mrb[0].mxu0 %v367
  %v493 = vpop.f32.mrb[0].mxu0
  %v494 = vadd.f32 0.0, %v493
  %v495 = vpop.f32.mrb[0].mxu0
  %v496 = vpop.f32.mrb[0].mxu0
  %v497 = vadd.f32 0.0, %v496
  %v498 = vpop.f32.mrb[0].mxu0
  %499 = vmatprep.mubr.bf16.mxu0 0
  %500 = vmatmul.mubr.bf16.gmra.mrb[0].mxu0 %v368
  %v501 = vpop.f32.mrb[0].mxu0
  %v502 = vadd.f32 0.0, %v501
  %v503 = vpop.f32.mrb[0].mxu0
  %v504 = vpop.f32.mrb[0].mxu0
  %v505 = vadd.f32 0.0, %v504
  %v506 = vpop.f32.mrb[0].mxu0
  %507 = vmatprep.mubr.bf16.mxu0 0
  %508 = vmatmul.mubr.bf16.gmra.mrb[0].mxu0 %v369
  %v509 = vpop.f32.mrb[0].mxu0
  %v510 = vadd.f32 0.0, %v509
  %v511 = vpop.f32.mrb[0].mxu0
  %v512 = vpop.f32.mrb[0].mxu0
  %v513 = vadd.f32 0.0, %v512
  %v514 = vpop.f32.mrb[0].mxu0
  %515 = vmatprep.mubr.bf16.mxu0 0
  %516 = vmatmul.mubr.bf16.gmra.mrb[0].mxu0 %v370
  %v517 = vpop.f32.mrb[0].mxu0
  %v518 = vadd.f32 0.0, %v517
  %v519 = vpop.f32.mrb[0].mxu0
  %v520 = vpop.f32.mrb[0].mxu0
  %v521 = vadd.f32 0.0, %v520
  %v522 = vpop.f32.mrb[0].mxu0
  %523 = vdwg.mxu0
  %v524 = vld [vmem:[%s6] sm:$0x1]
  %v526 = vlaneseq
  %v527 = vshrl.u32 %v526, 7
  %v528 = vsub.s32 0, %v527
  %v529 = vrot.slane %v524, %v528
  %v531 = vmul.f32 %v237, %v529
  %v532 = vmul.f32 %v240, %v529
  %v533 = vmul.f32 %v245, %v529
  %v534 = vmul.f32 %v248, %v529
  %v535 = vmul.f32 %v253, %v529
  %v536 = vmul.f32 %v256, %v529
  %v537 = vmul.f32 %v261, %v529
  %v538 = vmul.f32 %v264, %v529
  %v539 = vmul.f32 %v269, %v529
  %v540 = vmul.f32 %v272, %v529
  %v541 = vmul.f32 %v277, %v529
  %v542 = vmul.f32 %v280, %v529
  %v543 = vmul.f32 %v285, %v529
  %v544 = vmul.f32 %v288, %v529
  %v545 = vmul.f32 %v293, %v529
  %v546 = vmul.f32 %v296, %v529
  %v547 = vld [vmem:[%s7] sm:$0x1]
  %v549 = vlaneseq
  %v550 = vshrl.u32 %v549, 7
  %v551 = vsub.s32 0, %v550
  %v552 = vrot.slane %v547, %v551
  %v554 = vadd.f32 %v531, %v552
  %v555 = vadd.f32 %v532, %v552
  %v556 = vadd.f32 %v533, %v552
  %v557 = vadd.f32 %v534, %v552
  %v558 = vadd.f32 %v535, %v552
  %v559 = vadd.f32 %v536, %v552
  %v560 = vadd.f32 %v537, %v552
  %v561 = vadd.f32 %v538, %v552
  %v562 = vadd.f32 %v539, %v552
  %v563 = vadd.f32 %v540, %v552
  %v564 = vadd.f32 %v541, %v552
  %v565 = vadd.f32 %v542, %v552
  %v566 = vadd.f32 %v543, %v552
  %v567 = vadd.f32 %v544, %v552
  %v568 = vadd.f32 %v545, %v552
  %v569 = vadd.f32 %v546, %v552
  %v570 = vld [vmem:[%s8] sm:$0x1]
  %v572 = vlaneseq
  %v573 = vshrl.u32 %v572, 7
  %v574 = vsub.s32 0, %v573
  %v575 = vrot.slane %v570, %v574
  %v577 = vmul.f32 %v462, %v575
  %v578 = vmul.f32 %v465, %v575
  %v579 = vmul.f32 %v470, %v575
  %v580 = vmul.f32 %v473, %v575
  %v581 = vmul.f32 %v478, %v575
  %v582 = vmul.f32 %v481, %v575
  %v583 = vmul.f32 %v486, %v575
  %v584 = vmul.f32 %v489, %v575
  %v585 = vmul.f32 %v494, %v575
  %v586 = vmul.f32 %v497, %v575
  %v587 = vmul.f32 %v502, %v575
  %v588 = vmul.f32 %v505, %v575
  %v589 = vmul.f32 %v510, %v575
  %v590 = vmul.f32 %v513, %v575
  %v591 = vmul.f32 %v518, %v575
  %v592 = vmul.f32 %v521, %v575
  %v593 = vadd.f32 %v554, %v577
  %v594 = vadd.f32 %v555, %v578
  %v595 = vadd.f32 %v556, %v579
  %v596 = vadd.f32 %v557, %v580
  %v597 = vadd.f32 %v558, %v581
  %v598 = vadd.f32 %v559, %v582
  %v599 = vadd.f32 %v560, %v583
  %v600 = vadd.f32 %v561, %v584
  %v601 = vadd.f32 %v562, %v585
  %v602 = vadd.f32 %v563, %v586
  %v603 = vadd.f32 %v564, %v587
  %v604 = vadd.f32 %v565, %v588
  %v605 = vadd.f32 %v566, %v589
  %v606 = vadd.f32 %v567, %v590
  %v607 = vadd.f32 %v568, %v591
  %v608 = vadd.f32 %v569, %v592
  %v609 = vld [vmem:[%s9] sm:$0x1]
  %v611 = vlaneseq
  %v612 = vshrl.u32 %v611, 7
  %v613 = vsub.s32 0, %v612
  %v614 = vrot.slane %v609, %v613
  %v616 = vadd.f32 %v593, %v614
  %v617 = vadd.f32 %v594, %v614
  %v618 = vadd.f32 %v595, %v614
  %v619 = vadd.f32 %v596, %v614
  %v620 = vadd.f32 %v597, %v614
  %v621 = vadd.f32 %v598, %v614
  %v622 = vadd.f32 %v599, %v614
  %v623 = vadd.f32 %v600, %v614
  %v624 = vadd.f32 %v601, %v614
  %v625 = vadd.f32 %v602, %v614
  %v626 = vadd.f32 %v603, %v614
  %v627 = vadd.f32 %v604, %v614
  %v628 = vadd.f32 %v605, %v614
  %v629 = vadd.f32 %v606, %v614
  %v630 = vadd.f32 %v607, %v614
  %v631 = vadd.f32 %v608, %v614
  %v632 = vmax.f32 %v616, 0.0
  %v633 = vmax.f32 %v617, 0.0
  %v634 = vmax.f32 %v618, 0.0
  %v635 = vmax.f32 %v619, 0.0
  %v636 = vmax.f32 %v620, 0.0
  %v637 = vmax.f32 %v621, 0.0
  %v638 = vmax.f32 %v622, 0.0
  %v639 = vmax.f32 %v623, 0.0
  %v640 = vmax.f32 %v624, 0.0
  %v641 = vmax.f32 %v625, 0.0
  %v642 = vmax.f32 %v626, 0.0
  %v643 = vmax.f32 %v627, 0.0
  %v644 = vmax.f32 %v628, 0.0
  %v645 = vmax.f32 %v629, 0.0
  %v646 = vmax.f32 %v630, 0.0
  %v647 = vmax.f32 %v631, 0.0
  %648 = vst [vmem:[%s10] sm:$0xff] %v632
  %649 = vst [vmem:[%s10 + $0x8] sm:$0xff] %v633
  %650 = vst [vmem:[%s10 + $0x10] sm:$0xff] %v634
  %651 = vst [vmem:[%s10 + $0x18] sm:$0xff] %v635
  %652 = vst [vmem:[%s10 + $0x20] sm:$0xff] %v636
  %653 = vst [vmem:[%s10 + $0x28] sm:$0xff] %v637
  %654 = vst [vmem:[%s10 + $0x30] sm:$0xff] %v638
  %655 = vst [vmem:[%s10 + $0x38] sm:$0xff] %v639
  %656 = vst [vmem:[%s10 + $0x40] sm:$0xff] %v640
  %657 = vst [vmem:[%s10 + $0x48] sm:$0xff] %v641
  %658 = vst [vmem:[%s10 + $0x50] sm:$0xff] %v642
  %659 = vst [vmem:[%s10 + $0x58] sm:$0xff] %v643
  %660 = vst [vmem:[%s10 + $0x60] sm:$0xff] %v644
  %661 = vst [vmem:[%s10 + $0x68] sm:$0xff] %v645
  %662 = vst [vmem:[%s10 + $0x70] sm:$0xff] %v646
  %663 = vst [vmem:[%s10 + $0x78] sm:$0xff] %v647
  // Predicated region
  $region42: #{block_forward.7} parent=0 // pred_check
    _
  $region43: #{block_forward.7} parent=0 // pred_check_branch
    %665 = sbr.rel (0) target = $region45
  $region44: #{block_forward.7} parent=0 // pred_region
    _
  $region45: #{block_forward.7} parent=0 // pred_fallthru
    _
  // Predicated region
  $region46: #{block_forward.7} parent=0 // pred_check
    _
  $region47: #{block_forward.7} parent=0 // pred_check_branch
    %667 = sbr.rel (0) target = $region49
  $region48: #{block_forward.7} parent=0 // pred_region
    _
  $region49: #{block_forward.7} parent=0 // pred_fallthru
    _

</llo_original>
